<compile_context>
chip_gen: v7x
topology: tpu7x:2x2x1
jax: 0.10.0
libtpu: 0.0.40
codegen_flags: <defaults>
</compile_context>

<pallas_src>
import jax
import jax.numpy as jnp
from jax import lax
from jax.experimental import pallas as pl
from jax.experimental.pallas import tpu as pltpu


def dacblock137_forward_impl(x, w1, w2, w3, wc, b1, b2, b3, bc):
    """x: (B,C,H,W) NCHW f32.  w1/w2/w3: (C,C,3,3) OIHW.  wc: (C,C,1,1).  b*: (C,)."""
    B, C, H, W = x.shape
    HW = H * W
    # Lane-aligned zero halo on the flattened spatial axis.  The largest tap
    # offset is dilation*(W+1) with dilation 7, so round 7*W+7 up to a multiple
    # of 128 lanes (keeps every concat boundary on a lane-tile boundary).
    LPAD = max(128, ((7 * W + 7 + 127) // 128) * 128)

    def kernel(x_ref, w1_ref, w2_ref, w3_ref, wc_ref,
               b1_ref, b2_ref, b3_ref, bc_ref, o_ref):
        xv = x_ref[0]                                           # (C, HW)

        # Column index of every flattened spatial position (for wrap masks).
        col = lax.broadcasted_iota(jnp.int32, (1, HW), 1) % W
        zpad = jnp.zeros((C, LPAD), jnp.float32)

        def pad_flat(v):                                        # (C,HW) -> (C,HW+2*LPAD)
            return jnp.concatenate([zpad, v, zpad], axis=1)

        def conv3x3(vp, wm_ref, b_ref, d):
            """Dilated 3x3 'same' conv on a flat-padded input (C, HW+2*LPAD).
            Row overflow lands in the zero halo; only the column wrap between
            adjacent image rows needs masking.  Returns (C, HW) f32."""
            wm = wm_ref[...]                                    # (C, 9*C) tap-major / ci-minor
            # Hoist the two column-wrap masks out of the 9-tap loop.
            ok_left = (col - d) >= 0                            # for dw = -d
            ok_right = (col + d) < W                            # for dw = +d
            acc = jnp.zeros((C, HW), jnp.float32)
            for kh in range(3):
                dh = (kh - 1) * d
                for kw in range(3):
                    dw = (kw - 1) * d
                    s = dh * W + dw
                    patch = vp[:, LPAD + s:LPAD + s + HW]       # (C,HW), static lane window
                    if dw < 0:
                        patch = jnp.where(ok_left, patch, 0.0)
                    elif dw > 0:
                        patch = jnp.where(ok_right, patch, 0.0)
                    j = (kh * 3 + kw) * C
                    acc = acc + jnp.dot(wm[:, j:j + C], patch,
                                        preferred_element_type=jnp.float32)
            return acc + b_ref[...]                             # (C,1) bias broadcasts over lanes

        def conv1x1_relu(v):
            y = jnp.dot(wc_ref[...], v,
                        preferred_element_type=jnp.float32) + bc_ref[...]
            return jnp.maximum(y, 0.0)

        xp = pad_flat(xv)
        t1 = conv3x3(xp, w1_ref, b1_ref, 1)                     # dilate1(x), pre-relu
        d2 = conv1x1_relu(conv3x3(xp, w2_ref, b2_ref, 3))       # relu(1x1(dilate2(x)))
        t2b = conv3x3(pad_flat(t1), w2_ref, b2_ref, 3)          # dilate2(dilate1(x))
        d3 = conv1x1_relu(t2b)
        t3 = conv3x3(pad_flat(t2b), w3_ref, b3_ref, 7)          # dilate3(dilate2(dilate1(x)))
        d4 = conv1x1_relu(t3)

        out = xv + jnp.maximum(t1, 0.0) + d2 + d3 + d4
        o_ref[0] = out.astype(o_ref.dtype)

    # ---- weight / bias repacking for the (C, HW) layout (tiny, stays in XLA) ----
    def to_mat(w):        # (Co,Ci,3,3) OIHW -> (Co, 9*Ci), tap-major / ci-minor
        return jnp.transpose(w, (0, 2, 3, 1)).reshape(C, 9 * C).astype(jnp.float32)

    w1m, w2m, w3m = to_mat(w1), to_mat(w2), to_mat(w3)
    wcm = wc.reshape(C, C).astype(jnp.float32)
    b1c, b2c, b3c, bcc = (b.reshape(C, 1).astype(jnp.float32)
                          for b in (b1, b2, b3, bc))
    xf = x.reshape(B, C, HW)                                    # free metadata reshape

    out = pl.pallas_call(
        kernel,
        out_shape=jax.ShapeDtypeStruct((B, C, HW), x.dtype),
        grid=(B,),
        in_specs=[
            pl.BlockSpec((1, C, HW), lambda b: (b, 0, 0)),      # x (flattened spatial)
            pl.BlockSpec((C, 9 * C), lambda b: (0, 0)),         # w1 (dilate1)
            pl.BlockSpec((C, 9 * C), lambda b: (0, 0)),         # w2 (dilate2)
            pl.BlockSpec((C, 9 * C), lambda b: (0, 0)),         # w3 (dilate3)
            pl.BlockSpec((C, C), lambda b: (0, 0)),             # wc (1x1)
            pl.BlockSpec((C, 1), lambda b: (0, 0)),             # b1
            pl.BlockSpec((C, 1), lambda b: (0, 0)),             # b2
            pl.BlockSpec((C, 1), lambda b: (0, 0)),             # b3
            pl.BlockSpec((C, 1), lambda b: (0, 0)),             # bc
        ],
        out_specs=pl.BlockSpec((1, C, HW), lambda b: (b, 0, 0)),
        compiler_params=pltpu.CompilerParams(
            dimension_semantics=("parallel",)),
    )(xf, w1m, w2m, w3m, wcm, b1c, b2c, b3c, bcc)
    return out.reshape(B, C, H, W)


dacblock137_forward = jax.jit(dacblock137_forward_impl)


# ---------------- pure-JAX reference for verification ----------------
def _ref_forward(x, w1, w2, w3, wc, b1, b2, b3, bc):
    def conv(v, w, b, d):
        y = lax.conv_general_dilated(
            v, w, window_strides=(1, 1),
            padding=((d, d), (d, d)), rhs_dilation=(d, d),
            dimension_numbers=("NCHW", "OIHW", "NCHW"),
            precision=lax.Precision.HIGHEST)
        return y + b.reshape(1, -1, 1, 1)

    def c1(v):
        y = lax.conv_general_dilated(
            v, wc, window_strides=(1, 1), padding=((0, 0), (0, 0)),
            dimension_numbers=("NCHW", "OIHW", "NCHW"),
            precision=lax.Precision.HIGHEST)
        return y + bc.reshape(1, -1, 1, 1)

    relu = lambda v: jnp.maximum(v, 0.0)
    t1 = conv(x, w1, b1, 1)
    d1 = relu(t1)
    d2 = relu(c1(conv(x, w2, b2, 3)))
    t2b = conv(t1, w2, b2, 3)
    d3 = relu(c1(t2b))
    d4 = relu(c1(conv(t2b, w3, b3, 7)))
    return x + d1 + d2 + d3 + d4


if __name__ == "__main__":
    B, C, H, W = 2, 4, 16, 16

    key = jax.random.PRNGKey(0)
    kx, k1, k2, k3, kc = jax.random.split(key, 5)

    # PyTorch-native NCHW input and OIHW weights.
    x = jax.random.normal(kx, (B, C, H, W), dtype=jnp.float32)

    scale3 = 1.0 / (3.0 * 3.0 * C) ** 0.5
    w1 = scale3 * jax.random.normal(k1, (C, C, 3, 3), dtype=jnp.float32)
    w2 = scale3 * jax.random.normal(k2, (C, C, 3, 3), dtype=jnp.float32)
    w3 = scale3 * jax.random.normal(k3, (C, C, 3, 3), dtype=jnp.float32)
    wc = (1.0 / C ** 0.5) * jax.random.normal(kc, (C, C, 1, 1), dtype=jnp.float32)
    # nn.Conv2d biases are zeroed in DACblock137.__init__ (kept separate per conv).
    b1 = jnp.zeros((C,), jnp.float32)
    b2 = jnp.zeros((C,), jnp.float32)
    b3 = jnp.zeros((C,), jnp.float32)
    bc = jnp.zeros((C,), jnp.float32)

    out = dacblock137_forward(x, w1, w2, w3, wc, b1, b2, b3, bc)
    out = jax.block_until_ready(out)

    ref = _ref_forward(x, w1, w2, w3, wc, b1, b2, b3, bc)
    assert out.shape == (B, C, H, W)
    err = float(jnp.max(jnp.abs(out - ref)))
    assert jnp.allclose(out, ref, rtol=1e-3, atol=1e-3), f"mismatch vs reference, max|diff|={err}"

    print("KERNEL_OK")
</pallas_src>

<mosaic_0001>
module attributes {stable_mosaic.version = 11 : i64} {
  func.func @kernel(%arg0: i32, %arg1: memref<1x4x256xf32, #tpu.memory_space<vmem>>, %arg2: memref<4x36xf32, #tpu.memory_space<vmem>>, %arg3: memref<4x36xf32, #tpu.memory_space<vmem>>, %arg4: memref<4x36xf32, #tpu.memory_space<vmem>>, %arg5: memref<4x4xf32, #tpu.memory_space<vmem>>, %arg6: memref<4x1xf32, #tpu.memory_space<vmem>>, %arg7: memref<4x1xf32, #tpu.memory_space<vmem>>, %arg8: memref<4x1xf32, #tpu.memory_space<vmem>>, %arg9: memref<4x1xf32, #tpu.memory_space<vmem>>, %arg10: memref<1x4x256xf32, #tpu.memory_space<vmem>>) attributes {dimension_semantics = [#tpu.dimension_semantics<parallel>], iteration_bounds = array<i64: 2>, scalar_prefetch = 0 : i64, scratch_operands = 0 : i64, tpu.core_type = #tpu.core_type<tc>, window_params = [{transform_indices = @transform_0, window_bounds = array<i64: 1, 4, 256>}, {pipeline_mode = #tpu.pipeline_mode<synchronous>, transform_indices = @transform_1, window_bounds = array<i64: 4, 36>}, {pipeline_mode = #tpu.pipeline_mode<synchronous>, transform_indices = @transform_2, window_bounds = array<i64: 4, 36>}, {pipeline_mode = #tpu.pipeline_mode<synchronous>, transform_indices = @transform_3, window_bounds = array<i64: 4, 36>}, {pipeline_mode = #tpu.pipeline_mode<synchronous>, transform_indices = @transform_4, window_bounds = array<i64: 4, 4>}, {pipeline_mode = #tpu.pipeline_mode<synchronous>, transform_indices = @transform_5, window_bounds = array<i64: 4, 1>}, {pipeline_mode = #tpu.pipeline_mode<synchronous>, transform_indices = @transform_6, window_bounds = array<i64: 4, 1>}, {pipeline_mode = #tpu.pipeline_mode<synchronous>, transform_indices = @transform_7, window_bounds = array<i64: 4, 1>}, {pipeline_mode = #tpu.pipeline_mode<synchronous>, transform_indices = @transform_8, window_bounds = array<i64: 4, 1>}, {transform_indices = @transform_9, window_bounds = array<i64: 1, 4, 256>}]} {
    %c0 = arith.constant 0 : index
    %c0_0 = arith.constant 0 : index
    %c0_1 = arith.constant 0 : index
    %0 = vector.load %arg1[%c0, %c0_0, %c0_1] : memref<1x4x256xf32, #tpu.memory_space<vmem>>, vector<1x4x256xf32>
    %1 = vector.shape_cast %0 : vector<1x4x256xf32> to vector<4x256xf32>
    %2 = tpu.iota {dimensions = array<i32: 1>} : vector<1x256xi32>
    %c16_i32 = arith.constant 16 : i32
    %c0_i32 = arith.constant 0 : i32
    %3 = arith.cmpi eq, %c16_i32, %c0_i32 : i32
    %c1_i32 = arith.constant 1 : i32
    %4 = arith.select %3, %c1_i32, %c16_i32 : i32
    %5 = vector.broadcast %4 : i32 to vector<1x256xi32>
    %6 = arith.remsi %2, %5 : vector<1x256xi32>
    %c0_i32_2 = arith.constant 0 : i32
    %7 = vector.broadcast %c0_i32_2 : i32 to vector<1x256xi32>
    %8 = arith.cmpi ne, %6, %7 : vector<1x256xi32>
    %c0_i32_3 = arith.constant 0 : i32
    %9 = vector.broadcast %c0_i32_3 : i32 to vector<1x256xi32>
    %10 = arith.cmpi slt, %6, %9 : vector<1x256xi32>
    %c0_i32_4 = arith.constant 0 : i32
    %11 = arith.cmpi slt, %4, %c0_i32_4 : i32
    %12 = vector.broadcast %11 : i1 to vector<1x256xi1>
    %13 = vector.broadcast %12 : vector<1x256xi1> to vector<1x256xi1>
    %14 = arith.xori %10, %13 : vector<1x256xi1>
    %15 = arith.andi %14, %8 : vector<1x256xi1>
    %16 = vector.broadcast %4 : i32 to vector<1x256xi32>
    %17 = arith.addi %6, %16 : vector<1x256xi32>
    %18 = arith.select %15, %17, %6 : vector<1x256xi1>, vector<1x256xi32>
    %cst = arith.constant 0.000000e+00 : f32
    %19 = vector.broadcast %cst : f32 to vector<4x128xf32>
    %20 = tpu.concatenate %19, %1, %19 in 1 : vector<4x128xf32>, vector<4x256xf32>, vector<4x128xf32> -> vector<4x512xf32>
    %c0_5 = arith.constant 0 : index
    %c0_6 = arith.constant 0 : index
    %21 = vector.load %arg2[%c0_5, %c0_6] : memref<4x36xf32, #tpu.memory_space<vmem>>, vector<4x36xf32>
    %c1_i32_7 = arith.constant 1 : i32
    %22 = vector.broadcast %c1_i32_7 : i32 to vector<1x256xi32>
    %23 = arith.subi %18, %22 : vector<1x256xi32>
    %c0_i32_8 = arith.constant 0 : i32
    %24 = vector.broadcast %c0_i32_8 : i32 to vector<1x256xi32>
    %25 = arith.cmpi sge, %23, %24 : vector<1x256xi32>
    %c1_i32_9 = arith.constant 1 : i32
    %26 = vector.broadcast %c1_i32_9 : i32 to vector<1x256xi32>
    %27 = arith.addi %18, %26 : vector<1x256xi32>
    %c16_i32_10 = arith.constant 16 : i32
    %28 = vector.broadcast %c16_i32_10 : i32 to vector<1x256xi32>
    %29 = arith.cmpi slt, %27, %28 : vector<1x256xi32>
    %cst_11 = arith.constant 0.000000e+00 : f32
    %30 = vector.broadcast %cst_11 : f32 to vector<4x256xf32>
    %31 = vector.extract_strided_slice %20 {offsets = [0, 111], sizes = [4, 256], strides = [1, 1]} : vector<4x512xf32> to vector<4x256xf32>
    %cst_12 = arith.constant 0.000000e+00 : f32
    %32 = vector.shape_cast %25 : vector<1x256xi1> to vector<1x256xi1>
    %33 = vector.broadcast %32 : vector<1x256xi1> to vector<4x256xi1>
    %34 = vector.broadcast %cst_12 : f32 to vector<4x256xf32>
    %35 = arith.select %33, %31, %34 : vector<4x256xi1>, vector<4x256xf32>
    %36 = vector.extract_strided_slice %21 {offsets = [0, 0], sizes = [4, 4], strides = [1, 1]} : vector<4x36xf32> to vector<4x4xf32>
    %cst_13 = arith.constant dense<0.000000e+00> : vector<4x256xf32>
    %37 = tpu.matmul %36, %35, %cst_13 {dimension_numbers = #tpu.dot_dimension_numbers<[1], [0], [0], [1], [0, 0, 1, 1], [], []>} : vector<4x4xf32>, vector<4x256xf32>, vector<4x256xf32> -> vector<4x256xf32>
    %38 = arith.addf %30, %37 : vector<4x256xf32>
    %39 = vector.extract_strided_slice %20 {offsets = [0, 112], sizes = [4, 256], strides = [1, 1]} : vector<4x512xf32> to vector<4x256xf32>
    %40 = vector.extract_strided_slice %21 {offsets = [0, 4], sizes = [4, 4], strides = [1, 1]} : vector<4x36xf32> to vector<4x4xf32>
    %cst_14 = arith.constant dense<0.000000e+00> : vector<4x256xf32>
    %41 = tpu.matmul %40, %39, %cst_14 {dimension_numbers = #tpu.dot_dimension_numbers<[1], [0], [0], [1], [0, 0, 1, 1], [], []>} : vector<4x4xf32>, vector<4x256xf32>, vector<4x256xf32> -> vector<4x256xf32>
    %42 = arith.addf %38, %41 : vector<4x256xf32>
    %43 = vector.extract_strided_slice %20 {offsets = [0, 113], sizes = [4, 256], strides = [1, 1]} : vector<4x512xf32> to vector<4x256xf32>
    %cst_15 = arith.constant 0.000000e+00 : f32
    %44 = vector.shape_cast %29 : vector<1x256xi1> to vector<1x256xi1>
    %45 = vector.broadcast %44 : vector<1x256xi1> to vector<4x256xi1>
    %46 = vector.broadcast %cst_15 : f32 to vector<4x256xf32>
    %47 = arith.select %45, %43, %46 : vector<4x256xi1>, vector<4x256xf32>
    %48 = vector.extract_strided_slice %21 {offsets = [0, 8], sizes = [4, 4], strides = [1, 1]} : vector<4x36xf32> to vector<4x4xf32>
    %cst_16 = arith.constant dense<0.000000e+00> : vector<4x256xf32>
    %49 = tpu.matmul %48, %47, %cst_16 {dimension_numbers = #tpu.dot_dimension_numbers<[1], [0], [0], [1], [0, 0, 1, 1], [], []>} : vector<4x4xf32>, vector<4x256xf32>, vector<4x256xf32> -> vector<4x256xf32>
    %50 = arith.addf %42, %49 : vector<4x256xf32>
    %51 = vector.extract_strided_slice %20 {offsets = [0, 127], sizes = [4, 256], strides = [1, 1]} : vector<4x512xf32> to vector<4x256xf32>
    %cst_17 = arith.constant 0.000000e+00 : f32
    %52 = vector.shape_cast %25 : vector<1x256xi1> to vector<1x256xi1>
    %53 = vector.broadcast %52 : vector<1x256xi1> to vector<4x256xi1>
    %54 = vector.broadcast %cst_17 : f32 to vector<4x256xf32>
    %55 = arith.select %53, %51, %54 : vector<4x256xi1>, vector<4x256xf32>
    %56 = vector.extract_strided_slice %21 {offsets = [0, 12], sizes = [4, 4], strides = [1, 1]} : vector<4x36xf32> to vector<4x4xf32>
    %cst_18 = arith.constant dense<0.000000e+00> : vector<4x256xf32>
    %57 = tpu.matmul %56, %55, %cst_18 {dimension_numbers = #tpu.dot_dimension_numbers<[1], [0], [0], [1], [0, 0, 1, 1], [], []>} : vector<4x4xf32>, vector<4x256xf32>, vector<4x256xf32> -> vector<4x256xf32>
    %58 = arith.addf %50, %57 : vector<4x256xf32>
    %59 = vector.extract_strided_slice %20 {offsets = [0, 128], sizes = [4, 256], strides = [1, 1]} : vector<4x512xf32> to vector<4x256xf32>
    %60 = vector.extract_strided_slice %21 {offsets = [0, 16], sizes = [4, 4], strides = [1, 1]} : vector<4x36xf32> to vector<4x4xf32>
    %cst_19 = arith.constant dense<0.000000e+00> : vector<4x256xf32>
    %61 = tpu.matmul %60, %59, %cst_19 {dimension_numbers = #tpu.dot_dimension_numbers<[1], [0], [0], [1], [0, 0, 1, 1], [], []>} : vector<4x4xf32>, vector<4x256xf32>, vector<4x256xf32> -> vector<4x256xf32>
    %62 = arith.addf %58, %61 : vector<4x256xf32>
    %63 = vector.extract_strided_slice %20 {offsets = [0, 129], sizes = [4, 256], strides = [1, 1]} : vector<4x512xf32> to vector<4x256xf32>
    %cst_20 = arith.constant 0.000000e+00 : f32
    %64 = vector.shape_cast %29 : vector<1x256xi1> to vector<1x256xi1>
    %65 = vector.broadcast %64 : vector<1x256xi1> to vector<4x256xi1>
    %66 = vector.broadcast %cst_20 : f32 to vector<4x256xf32>
    %67 = arith.select %65, %63, %66 : vector<4x256xi1>, vector<4x256xf32>
    %68 = vector.extract_strided_slice %21 {offsets = [0, 20], sizes = [4, 4], strides = [1, 1]} : vector<4x36xf32> to vector<4x4xf32>
    %cst_21 = arith.constant dense<0.000000e+00> : vector<4x256xf32>
    %69 = tpu.matmul %68, %67, %cst_21 {dimension_numbers = #tpu.dot_dimension_numbers<[1], [0], [0], [1], [0, 0, 1, 1], [], []>} : vector<4x4xf32>, vector<4x256xf32>, vector<4x256xf32> -> vector<4x256xf32>
    %70 = arith.addf %62, %69 : vector<4x256xf32>
    %71 = vector.extract_strided_slice %20 {offsets = [0, 143], sizes = [4, 256], strides = [1, 1]} : vector<4x512xf32> to vector<4x256xf32>
    %cst_22 = arith.constant 0.000000e+00 : f32
    %72 = vector.shape_cast %25 : vector<1x256xi1> to vector<1x256xi1>
    %73 = vector.broadcast %72 : vector<1x256xi1> to vector<4x256xi1>
    %74 = vector.broadcast %cst_22 : f32 to vector<4x256xf32>
    %75 = arith.select %73, %71, %74 : vector<4x256xi1>, vector<4x256xf32>
    %76 = vector.extract_strided_slice %21 {offsets = [0, 24], sizes = [4, 4], strides = [1, 1]} : vector<4x36xf32> to vector<4x4xf32>
    %cst_23 = arith.constant dense<0.000000e+00> : vector<4x256xf32>
    %77 = tpu.matmul %76, %75, %cst_23 {dimension_numbers = #tpu.dot_dimension_numbers<[1], [0], [0], [1], [0, 0, 1, 1], [], []>} : vector<4x4xf32>, vector<4x256xf32>, vector<4x256xf32> -> vector<4x256xf32>
    %78 = arith.addf %70, %77 : vector<4x256xf32>
    %79 = vector.extract_strided_slice %20 {offsets = [0, 144], sizes = [4, 256], strides = [1, 1]} : vector<4x512xf32> to vector<4x256xf32>
    %80 = vector.extract_strided_slice %21 {offsets = [0, 28], sizes = [4, 4], strides = [1, 1]} : vector<4x36xf32> to vector<4x4xf32>
    %cst_24 = arith.constant dense<0.000000e+00> : vector<4x256xf32>
    %81 = tpu.matmul %80, %79, %cst_24 {dimension_numbers = #tpu.dot_dimension_numbers<[1], [0], [0], [1], [0, 0, 1, 1], [], []>} : vector<4x4xf32>, vector<4x256xf32>, vector<4x256xf32> -> vector<4x256xf32>
    %82 = arith.addf %78, %81 : vector<4x256xf32>
    %83 = vector.extract_strided_slice %20 {offsets = [0, 145], sizes = [4, 256], strides = [1, 1]} : vector<4x512xf32> to vector<4x256xf32>
    %cst_25 = arith.constant 0.000000e+00 : f32
    %84 = vector.shape_cast %29 : vector<1x256xi1> to vector<1x256xi1>
    %85 = vector.broadcast %84 : vector<1x256xi1> to vector<4x256xi1>
    %86 = vector.broadcast %cst_25 : f32 to vector<4x256xf32>
    %87 = arith.select %85, %83, %86 : vector<4x256xi1>, vector<4x256xf32>
    %88 = vector.extract_strided_slice %21 {offsets = [0, 32], sizes = [4, 4], strides = [1, 1]} : vector<4x36xf32> to vector<4x4xf32>
    %cst_26 = arith.constant dense<0.000000e+00> : vector<4x256xf32>
    %89 = tpu.matmul %88, %87, %cst_26 {dimension_numbers = #tpu.dot_dimension_numbers<[1], [0], [0], [1], [0, 0, 1, 1], [], []>} : vector<4x4xf32>, vector<4x256xf32>, vector<4x256xf32> -> vector<4x256xf32>
    %90 = arith.addf %82, %89 : vector<4x256xf32>
    %c0_27 = arith.constant 0 : index
    %c0_28 = arith.constant 0 : index
    %91 = vector.load %arg6[%c0_27, %c0_28] : memref<4x1xf32, #tpu.memory_space<vmem>>, vector<4x1xf32>
    %92 = vector.broadcast %91 : vector<4x1xf32> to vector<4x256xf32>
    %93 = arith.addf %90, %92 : vector<4x256xf32>
    %c0_29 = arith.constant 0 : index
    %c0_30 = arith.constant 0 : index
    %94 = vector.load %arg3[%c0_29, %c0_30] : memref<4x36xf32, #tpu.memory_space<vmem>>, vector<4x36xf32>
    %c3_i32 = arith.constant 3 : i32
    %95 = vector.broadcast %c3_i32 : i32 to vector<1x256xi32>
    %96 = arith.subi %18, %95 : vector<1x256xi32>
    %c0_i32_31 = arith.constant 0 : i32
    %97 = vector.broadcast %c0_i32_31 : i32 to vector<1x256xi32>
    %98 = arith.cmpi sge, %96, %97 : vector<1x256xi32>
    %c3_i32_32 = arith.constant 3 : i32
    %99 = vector.broadcast %c3_i32_32 : i32 to vector<1x256xi32>
    %100 = arith.addi %18, %99 : vector<1x256xi32>
    %c16_i32_33 = arith.constant 16 : i32
    %101 = vector.broadcast %c16_i32_33 : i32 to vector<1x256xi32>
    %102 = arith.cmpi slt, %100, %101 : vector<1x256xi32>
    %cst_34 = arith.constant 0.000000e+00 : f32
    %103 = vector.broadcast %cst_34 : f32 to vector<4x256xf32>
    %104 = vector.extract_strided_slice %20 {offsets = [0, 77], sizes = [4, 256], strides = [1, 1]} : vector<4x512xf32> to vector<4x256xf32>
    %cst_35 = arith.constant 0.000000e+00 : f32
    %105 = vector.shape_cast %98 : vector<1x256xi1> to vector<1x256xi1>
    %106 = vector.broadcast %105 : vector<1x256xi1> to vector<4x256xi1>
    %107 = vector.broadcast %cst_35 : f32 to vector<4x256xf32>
    %108 = arith.select %106, %104, %107 : vector<4x256xi1>, vector<4x256xf32>
    %109 = vector.extract_strided_slice %94 {offsets = [0, 0], sizes = [4, 4], strides = [1, 1]} : vector<4x36xf32> to vector<4x4xf32>
    %cst_36 = arith.constant dense<0.000000e+00> : vector<4x256xf32>
    %110 = tpu.matmul %109, %108, %cst_36 {dimension_numbers = #tpu.dot_dimension_numbers<[1], [0], [0], [1], [0, 0, 1, 1], [], []>} : vector<4x4xf32>, vector<4x256xf32>, vector<4x256xf32> -> vector<4x256xf32>
    %111 = arith.addf %103, %110 : vector<4x256xf32>
    %112 = vector.extract_strided_slice %20 {offsets = [0, 80], sizes = [4, 256], strides = [1, 1]} : vector<4x512xf32> to vector<4x256xf32>
    %113 = vector.extract_strided_slice %94 {offsets = [0, 4], sizes = [4, 4], strides = [1, 1]} : vector<4x36xf32> to vector<4x4xf32>
    %cst_37 = arith.constant dense<0.000000e+00> : vector<4x256xf32>
    %114 = tpu.matmul %113, %112, %cst_37 {dimension_numbers = #tpu.dot_dimension_numbers<[1], [0], [0], [1], [0, 0, 1, 1], [], []>} : vector<4x4xf32>, vector<4x256xf32>, vector<4x256xf32> -> vector<4x256xf32>
    %115 = arith.addf %111, %114 : vector<4x256xf32>
    %116 = vector.extract_strided_slice %20 {offsets = [0, 83], sizes = [4, 256], strides = [1, 1]} : vector<4x512xf32> to vector<4x256xf32>
    %cst_38 = arith.constant 0.000000e+00 : f32
    %117 = vector.shape_cast %102 : vector<1x256xi1> to vector<1x256xi1>
    %118 = vector.broadcast %117 : vector<1x256xi1> to vector<4x256xi1>
    %119 = vector.broadcast %cst_38 : f32 to vector<4x256xf32>
    %120 = arith.select %118, %116, %119 : vector<4x256xi1>, vector<4x256xf32>
    %121 = vector.extract_strided_slice %94 {offsets = [0, 8], sizes = [4, 4], strides = [1, 1]} : vector<4x36xf32> to vector<4x4xf32>
    %cst_39 = arith.constant dense<0.000000e+00> : vector<4x256xf32>
    %122 = tpu.matmul %121, %120, %cst_39 {dimension_numbers = #tpu.dot_dimension_numbers<[1], [0], [0], [1], [0, 0, 1, 1], [], []>} : vector<4x4xf32>, vector<4x256xf32>, vector<4x256xf32> -> vector<4x256xf32>
    %123 = arith.addf %115, %122 : vector<4x256xf32>
    %124 = vector.extract_strided_slice %20 {offsets = [0, 125], sizes = [4, 256], strides = [1, 1]} : vector<4x512xf32> to vector<4x256xf32>
    %cst_40 = arith.constant 0.000000e+00 : f32
    %125 = vector.shape_cast %98 : vector<1x256xi1> to vector<1x256xi1>
    %126 = vector.broadcast %125 : vector<1x256xi1> to vector<4x256xi1>
    %127 = vector.broadcast %cst_40 : f32 to vector<4x256xf32>
    %128 = arith.select %126, %124, %127 : vector<4x256xi1>, vector<4x256xf32>
    %129 = vector.extract_strided_slice %94 {offsets = [0, 12], sizes = [4, 4], strides = [1, 1]} : vector<4x36xf32> to vector<4x4xf32>
    %cst_41 = arith.constant dense<0.000000e+00> : vector<4x256xf32>
    %130 = tpu.matmul %129, %128, %cst_41 {dimension_numbers = #tpu.dot_dimension_numbers<[1], [0], [0], [1], [0, 0, 1, 1], [], []>} : vector<4x4xf32>, vector<4x256xf32>, vector<4x256xf32> -> vector<4x256xf32>
    %131 = arith.addf %123, %130 : vector<4x256xf32>
    %132 = vector.extract_strided_slice %20 {offsets = [0, 128], sizes = [4, 256], strides = [1, 1]} : vector<4x512xf32> to vector<4x256xf32>
    %133 = vector.extract_strided_slice %94 {offsets = [0, 16], sizes = [4, 4], strides = [1, 1]} : vector<4x36xf32> to vector<4x4xf32>
    %cst_42 = arith.constant dense<0.000000e+00> : vector<4x256xf32>
    %134 = tpu.matmul %133, %132, %cst_42 {dimension_numbers = #tpu.dot_dimension_numbers<[1], [0], [0], [1], [0, 0, 1, 1], [], []>} : vector<4x4xf32>, vector<4x256xf32>, vector<4x256xf32> -> vector<4x256xf32>
    %135 = arith.addf %131, %134 : vector<4x256xf32>
    %136 = vector.extract_strided_slice %20 {offsets = [0, 131], sizes = [4, 256], strides = [1, 1]} : vector<4x512xf32> to vector<4x256xf32>
    %cst_43 = arith.constant 0.000000e+00 : f32
    %137 = vector.shape_cast %102 : vector<1x256xi1> to vector<1x256xi1>
    %138 = vector.broadcast %137 : vector<1x256xi1> to vector<4x256xi1>
    %139 = vector.broadcast %cst_43 : f32 to vector<4x256xf32>
    %140 = arith.select %138, %136, %139 : vector<4x256xi1>, vector<4x256xf32>
    %141 = vector.extract_strided_slice %94 {offsets = [0, 20], sizes = [4, 4], strides = [1, 1]} : vector<4x36xf32> to vector<4x4xf32>
    %cst_44 = arith.constant dense<0.000000e+00> : vector<4x256xf32>
    %142 = tpu.matmul %141, %140, %cst_44 {dimension_numbers = #tpu.dot_dimension_numbers<[1], [0], [0], [1], [0, 0, 1, 1], [], []>} : vector<4x4xf32>, vector<4x256xf32>, vector<4x256xf32> -> vector<4x256xf32>
    %143 = arith.addf %135, %142 : vector<4x256xf32>
    %144 = vector.extract_strided_slice %20 {offsets = [0, 173], sizes = [4, 256], strides = [1, 1]} : vector<4x512xf32> to vector<4x256xf32>
    %cst_45 = arith.constant 0.000000e+00 : f32
    %145 = vector.shape_cast %98 : vector<1x256xi1> to vector<1x256xi1>
    %146 = vector.broadcast %145 : vector<1x256xi1> to vector<4x256xi1>
    %147 = vector.broadcast %cst_45 : f32 to vector<4x256xf32>
    %148 = arith.select %146, %144, %147 : vector<4x256xi1>, vector<4x256xf32>
    %149 = vector.extract_strided_slice %94 {offsets = [0, 24], sizes = [4, 4], strides = [1, 1]} : vector<4x36xf32> to vector<4x4xf32>
    %cst_46 = arith.constant dense<0.000000e+00> : vector<4x256xf32>
    %150 = tpu.matmul %149, %148, %cst_46 {dimension_numbers = #tpu.dot_dimension_numbers<[1], [0], [0], [1], [0, 0, 1, 1], [], []>} : vector<4x4xf32>, vector<4x256xf32>, vector<4x256xf32> -> vector<4x256xf32>
    %151 = arith.addf %143, %150 : vector<4x256xf32>
    %152 = vector.extract_strided_slice %20 {offsets = [0, 176], sizes = [4, 256], strides = [1, 1]} : vector<4x512xf32> to vector<4x256xf32>
    %153 = vector.extract_strided_slice %94 {offsets = [0, 28], sizes = [4, 4], strides = [1, 1]} : vector<4x36xf32> to vector<4x4xf32>
    %cst_47 = arith.constant dense<0.000000e+00> : vector<4x256xf32>
    %154 = tpu.matmul %153, %152, %cst_47 {dimension_numbers = #tpu.dot_dimension_numbers<[1], [0], [0], [1], [0, 0, 1, 1], [], []>} : vector<4x4xf32>, vector<4x256xf32>, vector<4x256xf32> -> vector<4x256xf32>
    %155 = arith.addf %151, %154 : vector<4x256xf32>
    %156 = vector.extract_strided_slice %20 {offsets = [0, 179], sizes = [4, 256], strides = [1, 1]} : vector<4x512xf32> to vector<4x256xf32>
    %cst_48 = arith.constant 0.000000e+00 : f32
    %157 = vector.shape_cast %102 : vector<1x256xi1> to vector<1x256xi1>
    %158 = vector.broadcast %157 : vector<1x256xi1> to vector<4x256xi1>
    %159 = vector.broadcast %cst_48 : f32 to vector<4x256xf32>
    %160 = arith.select %158, %156, %159 : vector<4x256xi1>, vector<4x256xf32>
    %161 = vector.extract_strided_slice %94 {offsets = [0, 32], sizes = [4, 4], strides = [1, 1]} : vector<4x36xf32> to vector<4x4xf32>
    %cst_49 = arith.constant dense<0.000000e+00> : vector<4x256xf32>
    %162 = tpu.matmul %161, %160, %cst_49 {dimension_numbers = #tpu.dot_dimension_numbers<[1], [0], [0], [1], [0, 0, 1, 1], [], []>} : vector<4x4xf32>, vector<4x256xf32>, vector<4x256xf32> -> vector<4x256xf32>
    %163 = arith.addf %155, %162 : vector<4x256xf32>
    %c0_50 = arith.constant 0 : index
    %c0_51 = arith.constant 0 : index
    %164 = vector.load %arg7[%c0_50, %c0_51] : memref<4x1xf32, #tpu.memory_space<vmem>>, vector<4x1xf32>
    %165 = vector.broadcast %164 : vector<4x1xf32> to vector<4x256xf32>
    %166 = arith.addf %163, %165 : vector<4x256xf32>
    %c0_52 = arith.constant 0 : index
    %c0_53 = arith.constant 0 : index
    %167 = vector.load %arg5[%c0_52, %c0_53] : memref<4x4xf32, #tpu.memory_space<vmem>>, vector<4x4xf32>
    %cst_54 = arith.constant dense<0.000000e+00> : vector<4x256xf32>
    %168 = tpu.matmul %167, %166, %cst_54 {dimension_numbers = #tpu.dot_dimension_numbers<[1], [0], [0], [1], [0, 0, 1, 1], [], []>} : vector<4x4xf32>, vector<4x256xf32>, vector<4x256xf32> -> vector<4x256xf32>
    %c0_55 = arith.constant 0 : index
    %c0_56 = arith.constant 0 : index
    %169 = vector.load %arg9[%c0_55, %c0_56] : memref<4x1xf32, #tpu.memory_space<vmem>>, vector<4x1xf32>
    %170 = vector.broadcast %169 : vector<4x1xf32> to vector<4x256xf32>
    %171 = arith.addf %168, %170 : vector<4x256xf32>
    %cst_57 = arith.constant 0.000000e+00 : f32
    %172 = vector.broadcast %cst_57 : f32 to vector<4x256xf32>
    %173 = arith.maximumf %171, %172 : vector<4x256xf32>
    %174 = tpu.concatenate %19, %93, %19 in 1 : vector<4x128xf32>, vector<4x256xf32>, vector<4x128xf32> -> vector<4x512xf32>
    %c0_58 = arith.constant 0 : index
    %c0_59 = arith.constant 0 : index
    %175 = vector.load %arg3[%c0_58, %c0_59] : memref<4x36xf32, #tpu.memory_space<vmem>>, vector<4x36xf32>
    %c3_i32_60 = arith.constant 3 : i32
    %176 = vector.broadcast %c3_i32_60 : i32 to vector<1x256xi32>
    %177 = arith.subi %18, %176 : vector<1x256xi32>
    %c0_i32_61 = arith.constant 0 : i32
    %178 = vector.broadcast %c0_i32_61 : i32 to vector<1x256xi32>
    %179 = arith.cmpi sge, %177, %178 : vector<1x256xi32>
    %c3_i32_62 = arith.constant 3 : i32
    %180 = vector.broadcast %c3_i32_62 : i32 to vector<1x256xi32>
    %181 = arith.addi %18, %180 : vector<1x256xi32>
    %c16_i32_63 = arith.constant 16 : i32
    %182 = vector.broadcast %c16_i32_63 : i32 to vector<1x256xi32>
    %183 = arith.cmpi slt, %181, %182 : vector<1x256xi32>
    %cst_64 = arith.constant 0.000000e+00 : f32
    %184 = vector.broadcast %cst_64 : f32 to vector<4x256xf32>
    %185 = vector.extract_strided_slice %174 {offsets = [0, 77], sizes = [4, 256], strides = [1, 1]} : vector<4x512xf32> to vector<4x256xf32>
    %cst_65 = arith.constant 0.000000e+00 : f32
    %186 = vector.shape_cast %179 : vector<1x256xi1> to vector<1x256xi1>
    %187 = vector.broadcast %186 : vector<1x256xi1> to vector<4x256xi1>
    %188 = vector.broadcast %cst_65 : f32 to vector<4x256xf32>
    %189 = arith.select %187, %185, %188 : vector<4x256xi1>, vector<4x256xf32>
    %190 = vector.extract_strided_slice %175 {offsets = [0, 0], sizes = [4, 4], strides = [1, 1]} : vector<4x36xf32> to vector<4x4xf32>
    %cst_66 = arith.constant dense<0.000000e+00> : vector<4x256xf32>
    %191 = tpu.matmul %190, %189, %cst_66 {dimension_numbers = #tpu.dot_dimension_numbers<[1], [0], [0], [1], [0, 0, 1, 1], [], []>} : vector<4x4xf32>, vector<4x256xf32>, vector<4x256xf32> -> vector<4x256xf32>
    %192 = arith.addf %184, %191 : vector<4x256xf32>
    %193 = vector.extract_strided_slice %174 {offsets = [0, 80], sizes = [4, 256], strides = [1, 1]} : vector<4x512xf32> to vector<4x256xf32>
    %194 = vector.extract_strided_slice %175 {offsets = [0, 4], sizes = [4, 4], strides = [1, 1]} : vector<4x36xf32> to vector<4x4xf32>
    %cst_67 = arith.constant dense<0.000000e+00> : vector<4x256xf32>
    %195 = tpu.matmul %194, %193, %cst_67 {dimension_numbers = #tpu.dot_dimension_numbers<[1], [0], [0], [1], [0, 0, 1, 1], [], []>} : vector<4x4xf32>, vector<4x256xf32>, vector<4x256xf32> -> vector<4x256xf32>
    %196 = arith.addf %192, %195 : vector<4x256xf32>
    %197 = vector.extract_strided_slice %174 {offsets = [0, 83], sizes = [4, 256], strides = [1, 1]} : vector<4x512xf32> to vector<4x256xf32>
    %cst_68 = arith.constant 0.000000e+00 : f32
    %198 = vector.shape_cast %183 : vector<1x256xi1> to vector<1x256xi1>
    %199 = vector.broadcast %198 : vector<1x256xi1> to vector<4x256xi1>
    %200 = vector.broadcast %cst_68 : f32 to vector<4x256xf32>
    %201 = arith.select %199, %197, %200 : vector<4x256xi1>, vector<4x256xf32>
    %202 = vector.extract_strided_slice %175 {offsets = [0, 8], sizes = [4, 4], strides = [1, 1]} : vector<4x36xf32> to vector<4x4xf32>
    %cst_69 = arith.constant dense<0.000000e+00> : vector<4x256xf32>
    %203 = tpu.matmul %202, %201, %cst_69 {dimension_numbers = #tpu.dot_dimension_numbers<[1], [0], [0], [1], [0, 0, 1, 1], [], []>} : vector<4x4xf32>, vector<4x256xf32>, vector<4x256xf32> -> vector<4x256xf32>
    %204 = arith.addf %196, %203 : vector<4x256xf32>
    %205 = vector.extract_strided_slice %174 {offsets = [0, 125], sizes = [4, 256], strides = [1, 1]} : vector<4x512xf32> to vector<4x256xf32>
    %cst_70 = arith.constant 0.000000e+00 : f32
    %206 = vector.shape_cast %179 : vector<1x256xi1> to vector<1x256xi1>
    %207 = vector.broadcast %206 : vector<1x256xi1> to vector<4x256xi1>
    %208 = vector.broadcast %cst_70 : f32 to vector<4x256xf32>
    %209 = arith.select %207, %205, %208 : vector<4x256xi1>, vector<4x256xf32>
    %210 = vector.extract_strided_slice %175 {offsets = [0, 12], sizes = [4, 4], strides = [1, 1]} : vector<4x36xf32> to vector<4x4xf32>
    %cst_71 = arith.constant dense<0.000000e+00> : vector<4x256xf32>
    %211 = tpu.matmul %210, %209, %cst_71 {dimension_numbers = #tpu.dot_dimension_numbers<[1], [0], [0], [1], [0, 0, 1, 1], [], []>} : vector<4x4xf32>, vector<4x256xf32>, vector<4x256xf32> -> vector<4x256xf32>
    %212 = arith.addf %204, %211 : vector<4x256xf32>
    %213 = vector.extract_strided_slice %174 {offsets = [0, 128], sizes = [4, 256], strides = [1, 1]} : vector<4x512xf32> to vector<4x256xf32>
    %214 = vector.extract_strided_slice %175 {offsets = [0, 16], sizes = [4, 4], strides = [1, 1]} : vector<4x36xf32> to vector<4x4xf32>
    %cst_72 = arith.constant dense<0.000000e+00> : vector<4x256xf32>
    %215 = tpu.matmul %214, %213, %cst_72 {dimension_numbers = #tpu.dot_dimension_numbers<[1], [0], [0], [1], [0, 0, 1, 1], [], []>} : vector<4x4xf32>, vector<4x256xf32>, vector<4x256xf32> -> vector<4x256xf32>
    %216 = arith.addf %212, %215 : vector<4x256xf32>
    %217 = vector.extract_strided_slice %174 {offsets = [0, 131], sizes = [4, 256], strides = [1, 1]} : vector<4x512xf32> to vector<4x256xf32>
    %cst_73 = arith.constant 0.000000e+00 : f32
    %218 = vector.shape_cast %183 : vector<1x256xi1> to vector<1x256xi1>
    %219 = vector.broadcast %218 : vector<1x256xi1> to vector<4x256xi1>
    %220 = vector.broadcast %cst_73 : f32 to vector<4x256xf32>
    %221 = arith.select %219, %217, %220 : vector<4x256xi1>, vector<4x256xf32>
    %222 = vector.extract_strided_slice %175 {offsets = [0, 20], sizes = [4, 4], strides = [1, 1]} : vector<4x36xf32> to vector<4x4xf32>
    %cst_74 = arith.constant dense<0.000000e+00> : vector<4x256xf32>
    %223 = tpu.matmul %222, %221, %cst_74 {dimension_numbers = #tpu.dot_dimension_numbers<[1], [0], [0], [1], [0, 0, 1, 1], [], []>} : vector<4x4xf32>, vector<4x256xf32>, vector<4x256xf32> -> vector<4x256xf32>
    %224 = arith.addf %216, %223 : vector<4x256xf32>
    %225 = vector.extract_strided_slice %174 {offsets = [0, 173], sizes = [4, 256], strides = [1, 1]} : vector<4x512xf32> to vector<4x256xf32>
    %cst_75 = arith.constant 0.000000e+00 : f32
    %226 = vector.shape_cast %179 : vector<1x256xi1> to vector<1x256xi1>
    %227 = vector.broadcast %226 : vector<1x256xi1> to vector<4x256xi1>
    %228 = vector.broadcast %cst_75 : f32 to vector<4x256xf32>
    %229 = arith.select %227, %225, %228 : vector<4x256xi1>, vector<4x256xf32>
    %230 = vector.extract_strided_slice %175 {offsets = [0, 24], sizes = [4, 4], strides = [1, 1]} : vector<4x36xf32> to vector<4x4xf32>
    %cst_76 = arith.constant dense<0.000000e+00> : vector<4x256xf32>
    %231 = tpu.matmul %230, %229, %cst_76 {dimension_numbers = #tpu.dot_dimension_numbers<[1], [0], [0], [1], [0, 0, 1, 1], [], []>} : vector<4x4xf32>, vector<4x256xf32>, vector<4x256xf32> -> vector<4x256xf32>
    %232 = arith.addf %224, %231 : vector<4x256xf32>
    %233 = vector.extract_strided_slice %174 {offsets = [0, 176], sizes = [4, 256], strides = [1, 1]} : vector<4x512xf32> to vector<4x256xf32>
    %234 = vector.extract_strided_slice %175 {offsets = [0, 28], sizes = [4, 4], strides = [1, 1]} : vector<4x36xf32> to vector<4x4xf32>
    %cst_77 = arith.constant dense<0.000000e+00> : vector<4x256xf32>
    %235 = tpu.matmul %234, %233, %cst_77 {dimension_numbers = #tpu.dot_dimension_numbers<[1], [0], [0], [1], [0, 0, 1, 1], [], []>} : vector<4x4xf32>, vector<4x256xf32>, vector<4x256xf32> -> vector<4x256xf32>
    %236 = arith.addf %232, %235 : vector<4x256xf32>
    %237 = vector.extract_strided_slice %174 {offsets = [0, 179], sizes = [4, 256], strides = [1, 1]} : vector<4x512xf32> to vector<4x256xf32>
    %cst_78 = arith.constant 0.000000e+00 : f32
    %238 = vector.shape_cast %183 : vector<1x256xi1> to vector<1x256xi1>
    %239 = vector.broadcast %238 : vector<1x256xi1> to vector<4x256xi1>
    %240 = vector.broadcast %cst_78 : f32 to vector<4x256xf32>
    %241 = arith.select %239, %237, %240 : vector<4x256xi1>, vector<4x256xf32>
    %242 = vector.extract_strided_slice %175 {offsets = [0, 32], sizes = [4, 4], strides = [1, 1]} : vector<4x36xf32> to vector<4x4xf32>
    %cst_79 = arith.constant dense<0.000000e+00> : vector<4x256xf32>
    %243 = tpu.matmul %242, %241, %cst_79 {dimension_numbers = #tpu.dot_dimension_numbers<[1], [0], [0], [1], [0, 0, 1, 1], [], []>} : vector<4x4xf32>, vector<4x256xf32>, vector<4x256xf32> -> vector<4x256xf32>
    %244 = arith.addf %236, %243 : vector<4x256xf32>
    %c0_80 = arith.constant 0 : index
    %c0_81 = arith.constant 0 : index
    %245 = vector.load %arg7[%c0_80, %c0_81] : memref<4x1xf32, #tpu.memory_space<vmem>>, vector<4x1xf32>
    %246 = vector.broadcast %245 : vector<4x1xf32> to vector<4x256xf32>
    %247 = arith.addf %244, %246 : vector<4x256xf32>
    %c0_82 = arith.constant 0 : index
    %c0_83 = arith.constant 0 : index
    %248 = vector.load %arg5[%c0_82, %c0_83] : memref<4x4xf32, #tpu.memory_space<vmem>>, vector<4x4xf32>
    %cst_84 = arith.constant dense<0.000000e+00> : vector<4x256xf32>
    %249 = tpu.matmul %248, %247, %cst_84 {dimension_numbers = #tpu.dot_dimension_numbers<[1], [0], [0], [1], [0, 0, 1, 1], [], []>} : vector<4x4xf32>, vector<4x256xf32>, vector<4x256xf32> -> vector<4x256xf32>
    %c0_85 = arith.constant 0 : index
    %c0_86 = arith.constant 0 : index
    %250 = vector.load %arg9[%c0_85, %c0_86] : memref<4x1xf32, #tpu.memory_space<vmem>>, vector<4x1xf32>
    %251 = vector.broadcast %250 : vector<4x1xf32> to vector<4x256xf32>
    %252 = arith.addf %249, %251 : vector<4x256xf32>
    %cst_87 = arith.constant 0.000000e+00 : f32
    %253 = vector.broadcast %cst_87 : f32 to vector<4x256xf32>
    %254 = arith.maximumf %252, %253 : vector<4x256xf32>
    %255 = tpu.concatenate %19, %247, %19 in 1 : vector<4x128xf32>, vector<4x256xf32>, vector<4x128xf32> -> vector<4x512xf32>
    %c0_88 = arith.constant 0 : index
    %c0_89 = arith.constant 0 : index
    %256 = vector.load %arg4[%c0_88, %c0_89] : memref<4x36xf32, #tpu.memory_space<vmem>>, vector<4x36xf32>
    %c7_i32 = arith.constant 7 : i32
    %257 = vector.broadcast %c7_i32 : i32 to vector<1x256xi32>
    %258 = arith.subi %18, %257 : vector<1x256xi32>
    %c0_i32_90 = arith.constant 0 : i32
    %259 = vector.broadcast %c0_i32_90 : i32 to vector<1x256xi32>
    %260 = arith.cmpi sge, %258, %259 : vector<1x256xi32>
    %c7_i32_91 = arith.constant 7 : i32
    %261 = vector.broadcast %c7_i32_91 : i32 to vector<1x256xi32>
    %262 = arith.addi %18, %261 : vector<1x256xi32>
    %c16_i32_92 = arith.constant 16 : i32
    %263 = vector.broadcast %c16_i32_92 : i32 to vector<1x256xi32>
    %264 = arith.cmpi slt, %262, %263 : vector<1x256xi32>
    %cst_93 = arith.constant 0.000000e+00 : f32
    %265 = vector.broadcast %cst_93 : f32 to vector<4x256xf32>
    %266 = vector.extract_strided_slice %255 {offsets = [0, 9], sizes = [4, 256], strides = [1, 1]} : vector<4x512xf32> to vector<4x256xf32>
    %cst_94 = arith.constant 0.000000e+00 : f32
    %267 = vector.shape_cast %260 : vector<1x256xi1> to vector<1x256xi1>
    %268 = vector.broadcast %267 : vector<1x256xi1> to vector<4x256xi1>
    %269 = vector.broadcast %cst_94 : f32 to vector<4x256xf32>
    %270 = arith.select %268, %266, %269 : vector<4x256xi1>, vector<4x256xf32>
    %271 = vector.extract_strided_slice %256 {offsets = [0, 0], sizes = [4, 4], strides = [1, 1]} : vector<4x36xf32> to vector<4x4xf32>
    %cst_95 = arith.constant dense<0.000000e+00> : vector<4x256xf32>
    %272 = tpu.matmul %271, %270, %cst_95 {dimension_numbers = #tpu.dot_dimension_numbers<[1], [0], [0], [1], [0, 0, 1, 1], [], []>} : vector<4x4xf32>, vector<4x256xf32>, vector<4x256xf32> -> vector<4x256xf32>
    %273 = arith.addf %265, %272 : vector<4x256xf32>
    %274 = vector.extract_strided_slice %255 {offsets = [0, 16], sizes = [4, 256], strides = [1, 1]} : vector<4x512xf32> to vector<4x256xf32>
    %275 = vector.extract_strided_slice %256 {offsets = [0, 4], sizes = [4, 4], strides = [1, 1]} : vector<4x36xf32> to vector<4x4xf32>
    %cst_96 = arith.constant dense<0.000000e+00> : vector<4x256xf32>
    %276 = tpu.matmul %275, %274, %cst_96 {dimension_numbers = #tpu.dot_dimension_numbers<[1], [0], [0], [1], [0, 0, 1, 1], [], []>} : vector<4x4xf32>, vector<4x256xf32>, vector<4x256xf32> -> vector<4x256xf32>
    %277 = arith.addf %273, %276 : vector<4x256xf32>
    %278 = vector.extract_strided_slice %255 {offsets = [0, 23], sizes = [4, 256], strides = [1, 1]} : vector<4x512xf32> to vector<4x256xf32>
    %cst_97 = arith.constant 0.000000e+00 : f32
    %279 = vector.shape_cast %264 : vector<1x256xi1> to vector<1x256xi1>
    %280 = vector.broadcast %279 : vector<1x256xi1> to vector<4x256xi1>
    %281 = vector.broadcast %cst_97 : f32 to vector<4x256xf32>
    %282 = arith.select %280, %278, %281 : vector<4x256xi1>, vector<4x256xf32>
    %283 = vector.extract_strided_slice %256 {offsets = [0, 8], sizes = [4, 4], strides = [1, 1]} : vector<4x36xf32> to vector<4x4xf32>
    %cst_98 = arith.constant dense<0.000000e+00> : vector<4x256xf32>
    %284 = tpu.matmul %283, %282, %cst_98 {dimension_numbers = #tpu.dot_dimension_numbers<[1], [0], [0], [1], [0, 0, 1, 1], [], []>} : vector<4x4xf32>, vector<4x256xf32>, vector<4x256xf32> -> vector<4x256xf32>
    %285 = arith.addf %277, %284 : vector<4x256xf32>
    %286 = vector.extract_strided_slice %255 {offsets = [0, 121], sizes = [4, 256], strides = [1, 1]} : vector<4x512xf32> to vector<4x256xf32>
    %cst_99 = arith.constant 0.000000e+00 : f32
    %287 = vector.shape_cast %260 : vector<1x256xi1> to vector<1x256xi1>
    %288 = vector.broadcast %287 : vector<1x256xi1> to vector<4x256xi1>
    %289 = vector.broadcast %cst_99 : f32 to vector<4x256xf32>
    %290 = arith.select %288, %286, %289 : vector<4x256xi1>, vector<4x256xf32>
    %291 = vector.extract_strided_slice %256 {offsets = [0, 12], sizes = [4, 4], strides = [1, 1]} : vector<4x36xf32> to vector<4x4xf32>
    %cst_100 = arith.constant dense<0.000000e+00> : vector<4x256xf32>
    %292 = tpu.matmul %291, %290, %cst_100 {dimension_numbers = #tpu.dot_dimension_numbers<[1], [0], [0], [1], [0, 0, 1, 1], [], []>} : vector<4x4xf32>, vector<4x256xf32>, vector<4x256xf32> -> vector<4x256xf32>
    %293 = arith.addf %285, %292 : vector<4x256xf32>
    %294 = vector.extract_strided_slice %255 {offsets = [0, 128], sizes = [4, 256], strides = [1, 1]} : vector<4x512xf32> to vector<4x256xf32>
    %295 = vector.extract_strided_slice %256 {offsets = [0, 16], sizes = [4, 4], strides = [1, 1]} : vector<4x36xf32> to vector<4x4xf32>
    %cst_101 = arith.constant dense<0.000000e+00> : vector<4x256xf32>
    %296 = tpu.matmul %295, %294, %cst_101 {dimension_numbers = #tpu.dot_dimension_numbers<[1], [0], [0], [1], [0, 0, 1, 1], [], []>} : vector<4x4xf32>, vector<4x256xf32>, vector<4x256xf32> -> vector<4x256xf32>
    %297 = arith.addf %293, %296 : vector<4x256xf32>
    %298 = vector.extract_strided_slice %255 {offsets = [0, 135], sizes = [4, 256], strides = [1, 1]} : vector<4x512xf32> to vector<4x256xf32>
    %cst_102 = arith.constant 0.000000e+00 : f32
    %299 = vector.shape_cast %264 : vector<1x256xi1> to vector<1x256xi1>
    %300 = vector.broadcast %299 : vector<1x256xi1> to vector<4x256xi1>
    %301 = vector.broadcast %cst_102 : f32 to vector<4x256xf32>
    %302 = arith.select %300, %298, %301 : vector<4x256xi1>, vector<4x256xf32>
    %303 = vector.extract_strided_slice %256 {offsets = [0, 20], sizes = [4, 4], strides = [1, 1]} : vector<4x36xf32> to vector<4x4xf32>
    %cst_103 = arith.constant dense<0.000000e+00> : vector<4x256xf32>
    %304 = tpu.matmul %303, %302, %cst_103 {dimension_numbers = #tpu.dot_dimension_numbers<[1], [0], [0], [1], [0, 0, 1, 1], [], []>} : vector<4x4xf32>, vector<4x256xf32>, vector<4x256xf32> -> vector<4x256xf32>
    %305 = arith.addf %297, %304 : vector<4x256xf32>
    %306 = vector.extract_strided_slice %255 {offsets = [0, 233], sizes = [4, 256], strides = [1, 1]} : vector<4x512xf32> to vector<4x256xf32>
    %cst_104 = arith.constant 0.000000e+00 : f32
    %307 = vector.shape_cast %260 : vector<1x256xi1> to vector<1x256xi1>
    %308 = vector.broadcast %307 : vector<1x256xi1> to vector<4x256xi1>
    %309 = vector.broadcast %cst_104 : f32 to vector<4x256xf32>
    %310 = arith.select %308, %306, %309 : vector<4x256xi1>, vector<4x256xf32>
    %311 = vector.extract_strided_slice %256 {offsets = [0, 24], sizes = [4, 4], strides = [1, 1]} : vector<4x36xf32> to vector<4x4xf32>
    %cst_105 = arith.constant dense<0.000000e+00> : vector<4x256xf32>
    %312 = tpu.matmul %311, %310, %cst_105 {dimension_numbers = #tpu.dot_dimension_numbers<[1], [0], [0], [1], [0, 0, 1, 1], [], []>} : vector<4x4xf32>, vector<4x256xf32>, vector<4x256xf32> -> vector<4x256xf32>
    %313 = arith.addf %305, %312 : vector<4x256xf32>
    %314 = vector.extract_strided_slice %255 {offsets = [0, 240], sizes = [4, 256], strides = [1, 1]} : vector<4x512xf32> to vector<4x256xf32>
    %315 = vector.extract_strided_slice %256 {offsets = [0, 28], sizes = [4, 4], strides = [1, 1]} : vector<4x36xf32> to vector<4x4xf32>
    %cst_106 = arith.constant dense<0.000000e+00> : vector<4x256xf32>
    %316 = tpu.matmul %315, %314, %cst_106 {dimension_numbers = #tpu.dot_dimension_numbers<[1], [0], [0], [1], [0, 0, 1, 1], [], []>} : vector<4x4xf32>, vector<4x256xf32>, vector<4x256xf32> -> vector<4x256xf32>
    %317 = arith.addf %313, %316 : vector<4x256xf32>
    %318 = vector.extract_strided_slice %255 {offsets = [0, 247], sizes = [4, 256], strides = [1, 1]} : vector<4x512xf32> to vector<4x256xf32>
    %cst_107 = arith.constant 0.000000e+00 : f32
    %319 = vector.shape_cast %264 : vector<1x256xi1> to vector<1x256xi1>
    %320 = vector.broadcast %319 : vector<1x256xi1> to vector<4x256xi1>
    %321 = vector.broadcast %cst_107 : f32 to vector<4x256xf32>
    %322 = arith.select %320, %318, %321 : vector<4x256xi1>, vector<4x256xf32>
    %323 = vector.extract_strided_slice %256 {offsets = [0, 32], sizes = [4, 4], strides = [1, 1]} : vector<4x36xf32> to vector<4x4xf32>
    %cst_108 = arith.constant dense<0.000000e+00> : vector<4x256xf32>
    %324 = tpu.matmul %323, %322, %cst_108 {dimension_numbers = #tpu.dot_dimension_numbers<[1], [0], [0], [1], [0, 0, 1, 1], [], []>} : vector<4x4xf32>, vector<4x256xf32>, vector<4x256xf32> -> vector<4x256xf32>
    %325 = arith.addf %317, %324 : vector<4x256xf32>
    %c0_109 = arith.constant 0 : index
    %c0_110 = arith.constant 0 : index
    %326 = vector.load %arg8[%c0_109, %c0_110] : memref<4x1xf32, #tpu.memory_space<vmem>>, vector<4x1xf32>
    %327 = vector.broadcast %326 : vector<4x1xf32> to vector<4x256xf32>
    %328 = arith.addf %325, %327 : vector<4x256xf32>
    %c0_111 = arith.constant 0 : index
    %c0_112 = arith.constant 0 : index
    %329 = vector.load %arg5[%c0_111, %c0_112] : memref<4x4xf32, #tpu.memory_space<vmem>>, vector<4x4xf32>
    %cst_113 = arith.constant dense<0.000000e+00> : vector<4x256xf32>
    %330 = tpu.matmul %329, %328, %cst_113 {dimension_numbers = #tpu.dot_dimension_numbers<[1], [0], [0], [1], [0, 0, 1, 1], [], []>} : vector<4x4xf32>, vector<4x256xf32>, vector<4x256xf32> -> vector<4x256xf32>
    %c0_114 = arith.constant 0 : index
    %c0_115 = arith.constant 0 : index
    %331 = vector.load %arg9[%c0_114, %c0_115] : memref<4x1xf32, #tpu.memory_space<vmem>>, vector<4x1xf32>
    %332 = vector.broadcast %331 : vector<4x1xf32> to vector<4x256xf32>
    %333 = arith.addf %330, %332 : vector<4x256xf32>
    %cst_116 = arith.constant 0.000000e+00 : f32
    %334 = vector.broadcast %cst_116 : f32 to vector<4x256xf32>
    %335 = arith.maximumf %333, %334 : vector<4x256xf32>
    %cst_117 = arith.constant 0.000000e+00 : f32
    %336 = vector.broadcast %cst_117 : f32 to vector<4x256xf32>
    %337 = arith.maximumf %93, %336 : vector<4x256xf32>
    %338 = arith.addf %1, %337 : vector<4x256xf32>
    %339 = arith.addf %338, %173 : vector<4x256xf32>
    %340 = arith.addf %339, %254 : vector<4x256xf32>
    %341 = arith.addf %340, %335 : vector<4x256xf32>
    %c0_118 = arith.constant 0 : index
    %c0_119 = arith.constant 0 : index
    %c0_120 = arith.constant 0 : index
    %342 = vector.load %arg10[%c0_118, %c0_119, %c0_120] : memref<1x4x256xf32, #tpu.memory_space<vmem>>, vector<1x4x256xf32>
    %343 = vector.shape_cast %342 : vector<1x4x256xf32> to vector<4x256xf32>
    %344 = vector.shape_cast %341 : vector<4x256xf32> to vector<1x4x256xf32>
    tpu.vector_store %arg10[%c0_118, %c0_119, %c0_120], %344 {strides = array<i32>} : memref<1x4x256xf32, #tpu.memory_space<vmem>>, vector<1x4x256xf32>,
    return
  }
  func.func @transform_0(%arg0: i32) -> (i32, i32, i32) {
    %c0_i32 = arith.constant 0 : i32
    %c0_i32_0 = arith.constant 0 : i32
    %c0_i32_1 = arith.constant 0 : i32
    return %arg0, %c0_i32, %c0_i32_0 : i32, i32, i32
  }
  func.func @transform_1(%arg0: i32) -> (i32, i32) {
    %c0_i32 = arith.constant 0 : i32
    %c0_i32_0 = arith.constant 0 : i32
    %c0_i32_1 = arith.constant 0 : i32
    return %c0_i32, %c0_i32_0 : i32, i32
  }
  func.func @transform_2(%arg0: i32) -> (i32, i32) {
    %c0_i32 = arith.constant 0 : i32
    %c0_i32_0 = arith.constant 0 : i32
    %c0_i32_1 = arith.constant 0 : i32
    return %c0_i32, %c0_i32_0 : i32, i32
  }
  func.func @transform_3(%arg0: i32) -> (i32, i32) {
    %c0_i32 = arith.constant 0 : i32
    %c0_i32_0 = arith.constant 0 : i32
    %c0_i32_1 = arith.constant 0 : i32
    return %c0_i32, %c0_i32_0 : i32, i32
  }
  func.func @transform_4(%arg0: i32) -> (i32, i32) {
    %c0_i32 = arith.constant 0 : i32
    %c0_i32_0 = arith.constant 0 : i32
    %c0_i32_1 = arith.constant 0 : i32
    return %c0_i32, %c0_i32_0 : i32, i32
  }
  func.func @transform_5(%arg0: i32) -> (i32, i32) {
    %c0_i32 = arith.constant 0 : i32
    %c0_i32_0 = arith.constant 0 : i32
    %c0_i32_1 = arith.constant 0 : i32
    return %c0_i32, %c0_i32_0 : i32, i32
  }
  func.func @transform_6(%arg0: i32) -> (i32, i32) {
    %c0_i32 = arith.constant 0 : i32
    %c0_i32_0 = arith.constant 0 : i32
    %c0_i32_1 = arith.constant 0 : i32
    return %c0_i32, %c0_i32_0 : i32, i32
  }
  func.func @transform_7(%arg0: i32) -> (i32, i32) {
    %c0_i32 = arith.constant 0 : i32
    %c0_i32_0 = arith.constant 0 : i32
    %c0_i32_1 = arith.constant 0 : i32
    return %c0_i32, %c0_i32_0 : i32, i32
  }
  func.func @transform_8(%arg0: i32) -> (i32, i32) {
    %c0_i32 = arith.constant 0 : i32
    %c0_i32_0 = arith.constant 0 : i32
    %c0_i32_1 = arith.constant 0 : i32
    return %c0_i32, %c0_i32_0 : i32, i32
  }
  func.func @transform_9(%arg0: i32) -> (i32, i32, i32) {
    %c0_i32 = arith.constant 0 : i32
    %c0_i32_0 = arith.constant 0 : i32
    %c0_i32_1 = arith.constant 0 : i32
    return %arg0, %c0_i32, %c0_i32_0 : i32, i32, i32
  }
}

</mosaic_0001>

<llo_original>
// kernel: dacblock137_forward_impl.1
$region0: #{dacblock137_forward_impl.1}
  #allocation0 [shape = 'u32[]', space=smem, size = 0x4, offset = 0x4, fixed_abs, tag = 'smem constant byte address 0x4 - core index']
  #allocation1 [shape = 'u32[144,128]{1,0:T(1,128)}', space=vmem, size = 0x12000, scoped, tag = 'internal scratch']
  %s0 = inlined_call_operand.vmem [shape: f32[2,4,256], index: 0, kind: input, shape index: {}]
  %s1 = inlined_call_operand.vmem [shape: f32[4,36], index: 1, kind: input, shape index: {}]
  %s2 = inlined_call_operand.vmem [shape: f32[4,36], index: 2, kind: input, shape index: {}]
  %s3 = inlined_call_operand.vmem [shape: f32[4,36], index: 3, kind: input, shape index: {}]
  %s4 = inlined_call_operand.vmem [shape: f32[4,4], index: 4, kind: input, shape index: {}]
  %s5 = inlined_call_operand.vmem [shape: f32[4,1], index: 5, kind: input, shape index: {}]
  %s6 = inlined_call_operand.vmem [shape: f32[4,1], index: 6, kind: input, shape index: {}]
  %s7 = inlined_call_operand.vmem [shape: f32[4,1], index: 7, kind: input, shape index: {}]
  %s8 = inlined_call_operand.vmem [shape: f32[4,1], index: 8, kind: input, shape index: {}]
  %s9 = inlined_call_operand.vmem [shape: f32[2,4,256], index: 9, kind: output, shape index: {}]
  %s10 = sld [smem:[#allocation0]]
  $region69: #{dacblock137_forward_impl.1} parent=0
    _
  %s12 = ssub.s32 1, %s10
  %s13 = scalar_select 0, %s12, %s10
  loop: start=0, step=1, limit=4
  $region2: #{dacblock137_forward_impl.1} parent=0 // loop_pre_header
    _
  $region3: #{dacblock137_forward_impl.1} parent=0 // loop_header
    %s15 = sphi 0, %s19
    %p16 = scmp.ge.s32.totalorder %s15, 4
    %s25 = sphi 0, %s27
    %s28 = sphi 0, %s25
    %s29 = sphi 0, %s28
    %s45 = sphi 0, %s29
    %s49 = sphi 0, %s49
    %s51 = sphi 0, %s49
    %s52 = sphi 0, %s51
    %s66 = sphi 0, %s52
    %s70 = sphi 0, %s70
    %s72 = sphi 0, %s70
    %s73 = sphi 0, %s72
    %s87 = sphi 0, %s73
    %s91 = sphi 0, %s91
    %s93 = sphi 0, %s91
    %s94 = sphi 0, %s93
    %s108 = sphi 0, %s94
    %s112 = sphi 0, %s112
    %s114 = sphi 0, %s112
    %s115 = sphi 0, %s114
    %s129 = sphi 0, %s115
    %s133 = sphi 0, %s133
    %s135 = sphi 0, %s133
    %s136 = sphi 0, %s135
    %s150 = sphi 0, %s136
    %s154 = sphi 0, %s154
    %s156 = sphi 0, %s154
    %s157 = sphi 0, %s156
    %s171 = sphi 0, %s157
    %s175 = sphi 0, %s175
    %s177 = sphi 0, %s175
    %s178 = sphi 0, %s177
    %s192 = sphi 0, %s178
    %s196 = sphi 0, %s196
    %s198 = sphi 0, %s196
    %s199 = sphi 0, %s198
    %s213 = sphi 0, %s199
    %s219 = sphi 0, %s221
    %s222 = sphi 0, %s219
    %s223 = sphi 0, %s222
    %s239 = sphi 0, %s223
  $region4: #{dacblock137_forward_impl.1} parent=0 // loop_header_branch
    %18 = sbr.rel (%p16) target = $region8
  $region5: #{dacblock137_forward_impl.1} parent=0 // loop_body
    %s20 = ssub.s32 %s15, 1
    %s21 = ssub.s32 %s15, 2
    %s22 = sadd.s32 %s15, 1
    %s23 = ssub.s32 %s15, %s22
    %p24 = scmp.eq.s32.totalorder %s23, 0
    %s26 = sadd.s32 %s25, 1
    %s27 = scalar_select %p24, %s25, %s26
    %p30 = pneg %p24
    %p31 = scmp.eq.s32.totalorder %s15, 1
    %p32 = por %p30, %p31
    %p33 = scmp.ne.s32.totalorder %s25, %s28
    %p34 = scmp.eq.s32.totalorder %s15, 0
    %p35 = por %p33, %p34
    %p36 = scmp.ne.s32.totalorder %s25, %s28
    %p37 = scmp.eq.s32.totalorder %s20, 1
    %p38 = por %p36, %p37
    %p39 = scmp.ne.s32.totalorder %s28, %s29
    %p40 = scmp.eq.s32.totalorder %s20, 0
    %p41 = por %p39, %p40
    %p42 = scmp.ne.s32.totalorder %s28, %s29
    %p43 = scmp.eq.s32.totalorder %s21, 1
    %p44 = por %p42, %p43
    %p46 = scmp.ne.s32.totalorder %s29, %s45
    %p47 = scmp.eq.s32.totalorder %s21, 0
    %p48 = por %p46, %p47
    %s50 = sadd.s32 %s49, 1
    %p53 = scmp.eq.s32.totalorder %s15, 1
    %p54 = scmp.ne.s32.totalorder %s49, %s51
    %p55 = scmp.eq.s32.totalorder %s15, 0
    %p56 = por %p54, %p55
    %p57 = scmp.ne.s32.totalorder %s49, %s51
    %p58 = scmp.eq.s32.totalorder %s20, 1
    %p59 = por %p57, %p58
    %p60 = scmp.ne.s32.totalorder %s51, %s52
    %p61 = scmp.eq.s32.totalorder %s20, 0
    %p62 = por %p60, %p61
    %p63 = scmp.ne.s32.totalorder %s51, %s52
    %p64 = scmp.eq.s32.totalorder %s21, 1
    %p65 = por %p63, %p64
    %p67 = scmp.ne.s32.totalorder %s52, %s66
    %p68 = scmp.eq.s32.totalorder %s21, 0
    %p69 = por %p67, %p68
    %s71 = sadd.s32 %s70, 1
    %p74 = scmp.eq.s32.totalorder %s15, 1
    %p75 = scmp.ne.s32.totalorder %s70, %s72
    %p76 = scmp.eq.s32.totalorder %s15, 0
    %p77 = por %p75, %p76
    %p78 = scmp.ne.s32.totalorder %s70, %s72
    %p79 = scmp.eq.s32.totalorder %s20, 1
    %p80 = por %p78, %p79
    %p81 = scmp.ne.s32.totalorder %s72, %s73
    %p82 = scmp.eq.s32.totalorder %s20, 0
    %p83 = por %p81, %p82
    %p84 = scmp.ne.s32.totalorder %s72, %s73
    %p85 = scmp.eq.s32.totalorder %s21, 1
    %p86 = por %p84, %p85
    %p88 = scmp.ne.s32.totalorder %s73, %s87
    %p89 = scmp.eq.s32.totalorder %s21, 0
    %p90 = por %p88, %p89
    %s92 = sadd.s32 %s91, 1
    %p95 = scmp.eq.s32.totalorder %s15, 1
    %p96 = scmp.ne.s32.totalorder %s91, %s93
    %p97 = scmp.eq.s32.totalorder %s15, 0
    %p98 = por %p96, %p97
    %p99 = scmp.ne.s32.totalorder %s91, %s93
    %p100 = scmp.eq.s32.totalorder %s20, 1
    %p101 = por %p99, %p100
    %p102 = scmp.ne.s32.totalorder %s93, %s94
    %p103 = scmp.eq.s32.totalorder %s20, 0
    %p104 = por %p102, %p103
    %p105 = scmp.ne.s32.totalorder %s93, %s94
    %p106 = scmp.eq.s32.totalorder %s21, 1
    %p107 = por %p105, %p106
    %p109 = scmp.ne.s32.totalorder %s94, %s108
    %p110 = scmp.eq.s32.totalorder %s21, 0
    %p111 = por %p109, %p110
    %s113 = sadd.s32 %s112, 1
    %p116 = scmp.eq.s32.totalorder %s15, 1
    %p117 = scmp.ne.s32.totalorder %s112, %s114
    %p118 = scmp.eq.s32.totalorder %s15, 0
    %p119 = por %p117, %p118
    %p120 = scmp.ne.s32.totalorder %s112, %s114
    %p121 = scmp.eq.s32.totalorder %s20, 1
    %p122 = por %p120, %p121
    %p123 = scmp.ne.s32.totalorder %s114, %s115
    %p124 = scmp.eq.s32.totalorder %s20, 0
    %p125 = por %p123, %p124
    %p126 = scmp.ne.s32.totalorder %s114, %s115
    %p127 = scmp.eq.s32.totalorder %s21, 1
    %p128 = por %p126, %p127
    %p130 = scmp.ne.s32.totalorder %s115, %s129
    %p131 = scmp.eq.s32.totalorder %s21, 0
    %p132 = por %p130, %p131
    %s134 = sadd.s32 %s133, 1
    %p137 = scmp.eq.s32.totalorder %s15, 1
    %p138 = scmp.ne.s32.totalorder %s133, %s135
    %p139 = scmp.eq.s32.totalorder %s15, 0
    %p140 = por %p138, %p139
    %p141 = scmp.ne.s32.totalorder %s133, %s135
    %p142 = scmp.eq.s32.totalorder %s20, 1
    %p143 = por %p141, %p142
    %p144 = scmp.ne.s32.totalorder %s135, %s136
    %p145 = scmp.eq.s32.totalorder %s20, 0
    %p146 = por %p144, %p145
    %p147 = scmp.ne.s32.totalorder %s135, %s136
    %p148 = scmp.eq.s32.totalorder %s21, 1
    %p149 = por %p147, %p148
    %p151 = scmp.ne.s32.totalorder %s136, %s150
    %p152 = scmp.eq.s32.totalorder %s21, 0
    %p153 = por %p151, %p152
    %s155 = sadd.s32 %s154, 1
    %p158 = scmp.eq.s32.totalorder %s15, 1
    %p159 = scmp.ne.s32.totalorder %s154, %s156
    %p160 = scmp.eq.s32.totalorder %s15, 0
    %p161 = por %p159, %p160
    %p162 = scmp.ne.s32.totalorder %s154, %s156
    %p163 = scmp.eq.s32.totalorder %s20, 1
    %p164 = por %p162, %p163
    %p165 = scmp.ne.s32.totalorder %s156, %s157
    %p166 = scmp.eq.s32.totalorder %s20, 0
    %p167 = por %p165, %p166
    %p168 = scmp.ne.s32.totalorder %s156, %s157
    %p169 = scmp.eq.s32.totalorder %s21, 1
    %p170 = por %p168, %p169
    %p172 = scmp.ne.s32.totalorder %s157, %s171
    %p173 = scmp.eq.s32.totalorder %s21, 0
    %p174 = por %p172, %p173
    %s176 = sadd.s32 %s175, 1
    %p179 = scmp.eq.s32.totalorder %s15, 1
    %p180 = scmp.ne.s32.totalorder %s175, %s177
    %p181 = scmp.eq.s32.totalorder %s15, 0
    %p182 = por %p180, %p181
    %p183 = scmp.ne.s32.totalorder %s175, %s177
    %p184 = scmp.eq.s32.totalorder %s20, 1
    %p185 = por %p183, %p184
    %p186 = scmp.ne.s32.totalorder %s177, %s178
    %p187 = scmp.eq.s32.totalorder %s20, 0
    %p188 = por %p186, %p187
    %p189 = scmp.ne.s32.totalorder %s177, %s178
    %p190 = scmp.eq.s32.totalorder %s21, 1
    %p191 = por %p189, %p190
    %p193 = scmp.ne.s32.totalorder %s178, %s192
    %p194 = scmp.eq.s32.totalorder %s21, 0
    %p195 = por %p193, %p194
    %s197 = sadd.s32 %s196, 1
    %p200 = scmp.eq.s32.totalorder %s15, 1
    %p201 = scmp.ne.s32.totalorder %s196, %s198
    %p202 = scmp.eq.s32.totalorder %s15, 0
    %p203 = por %p201, %p202
    %p204 = scmp.ne.s32.totalorder %s196, %s198
    %p205 = scmp.eq.s32.totalorder %s20, 1
    %p206 = por %p204, %p205
    %p207 = scmp.ne.s32.totalorder %s198, %s199
    %p208 = scmp.eq.s32.totalorder %s20, 0
    %p209 = por %p207, %p208
    %p210 = scmp.ne.s32.totalorder %s198, %s199
    %p211 = scmp.eq.s32.totalorder %s21, 1
    %p212 = por %p210, %p211
    %p214 = scmp.ne.s32.totalorder %s199, %s213
    %p215 = scmp.eq.s32.totalorder %s21, 0
    %p216 = por %p214, %p215
    %s217 = ssub.s32 %s15, %s22
    %p218 = scmp.eq.s32.totalorder %s217, 0
    %s220 = sadd.s32 %s219, 1
    %s221 = scalar_select %p218, %s219, %s220
    %p224 = pneg %p218
    %p225 = scmp.eq.s32.totalorder %s15, 1
    %p226 = por %p224, %p225
    %p227 = scmp.ne.s32.totalorder %s219, %s222
    %p228 = scmp.eq.s32.totalorder %s15, 0
    %p229 = por %p227, %p228
    %p230 = scmp.ne.s32.totalorder %s219, %s222
    %p231 = scmp.eq.s32.totalorder %s20, 1
    %p232 = por %p230, %p231
    %p233 = scmp.ne.s32.totalorder %s222, %s223
    %p234 = scmp.eq.s32.totalorder %s20, 0
    %p235 = por %p233, %p234
    %p236 = scmp.ne.s32.totalorder %s222, %s223
    %p237 = scmp.eq.s32.totalorder %s21, 1
    %p238 = por %p236, %p237
    %p240 = scmp.ne.s32.totalorder %s223, %s239
    %p241 = scmp.eq.s32.totalorder %s21, 0
    %p242 = por %p240, %p241
    %p243 = scmp.le.s32.totalorder 1, %s15
    %p244 = scmp.lt.s32.totalorder %s15, 3
    %p245 = pnand %p243, %p244
    %p246 = pneg %p245
    // Predicated region
    $region9: #{dacblock137_forward_impl.1} parent=5 // pred_check
      _
    $region10: #{dacblock137_forward_impl.1} parent=5 // pred_check_branch
      %248 = sbr.rel (%p245) target = $region12
    $region11: #{dacblock137_forward_impl.1} parent=5 // pred_region
      %s249 = ssub.s32 %s15, 1
      // Predicated region
      $region13: #{dacblock137_forward_impl.1} parent=11 // pred_check
        %p250 = pneg %p62
      $region14: #{dacblock137_forward_impl.1} parent=11 // pred_check_branch
        %252 = sbr.rel (%p250) target = $region16
      $region15: #{dacblock137_forward_impl.1} parent=11 // pred_region
        _
      $region16: #{dacblock137_forward_impl.1} parent=11 // pred_fallthru
        _
      // Predicated region
      $region17: #{dacblock137_forward_impl.1} parent=11 // pred_check
        %p253 = pneg %p83
      $region18: #{dacblock137_forward_impl.1} parent=11 // pred_check_branch
        %255 = sbr.rel (%p253) target = $region20
      $region19: #{dacblock137_forward_impl.1} parent=11 // pred_region
        _
      $region20: #{dacblock137_forward_impl.1} parent=11 // pred_fallthru
        _
      // Predicated region
      $region21: #{dacblock137_forward_impl.1} parent=11 // pred_check
        %p256 = pneg %p104
      $region22: #{dacblock137_forward_impl.1} parent=11 // pred_check_branch
        %258 = sbr.rel (%p256) target = $region24
      $region23: #{dacblock137_forward_impl.1} parent=11 // pred_region
        _
      $region24: #{dacblock137_forward_impl.1} parent=11 // pred_fallthru
        _
      // Predicated region
      $region25: #{dacblock137_forward_impl.1} parent=11 // pred_check
        %p259 = pneg %p125
      $region26: #{dacblock137_forward_impl.1} parent=11 // pred_check_branch
        %261 = sbr.rel (%p259) target = $region28
      $region27: #{dacblock137_forward_impl.1} parent=11 // pred_region
        _
      $region28: #{dacblock137_forward_impl.1} parent=11 // pred_fallthru
        _
      // Predicated region
      $region29: #{dacblock137_forward_impl.1} parent=11 // pred_check
        %p262 = pneg %p146
      $region30: #{dacblock137_forward_impl.1} parent=11 // pred_check_branch
        %264 = sbr.rel (%p262) target = $region32
      $region31: #{dacblock137_forward_impl.1} parent=11 // pred_region
        _
      $region32: #{dacblock137_forward_impl.1} parent=11 // pred_fallthru
        _
      // Predicated region
      $region33: #{dacblock137_forward_impl.1} parent=11 // pred_check
        %p265 = pneg %p167
      $region34: #{dacblock137_forward_impl.1} parent=11 // pred_check_branch
        %267 = sbr.rel (%p265) target = $region36
      $region35: #{dacblock137_forward_impl.1} parent=11 // pred_region
        _
      $region36: #{dacblock137_forward_impl.1} parent=11 // pred_fallthru
        _
      // Predicated region
      $region37: #{dacblock137_forward_impl.1} parent=11 // pred_check
        %p268 = pneg %p188
      $region38: #{dacblock137_forward_impl.1} parent=11 // pred_check_branch
        %270 = sbr.rel (%p268) target = $region40
      $region39: #{dacblock137_forward_impl.1} parent=11 // pred_region
        _
      $region40: #{dacblock137_forward_impl.1} parent=11 // pred_fallthru
        _
      // Predicated region
      $region41: #{dacblock137_forward_impl.1} parent=11 // pred_check
        %p271 = pneg %p209
      $region42: #{dacblock137_forward_impl.1} parent=11 // pred_check_branch
        %273 = sbr.rel (%p271) target = $region44
      $region43: #{dacblock137_forward_impl.1} parent=11 // pred_region
        _
      $region44: #{dacblock137_forward_impl.1} parent=11 // pred_fallthru
        _
    $region12: #{dacblock137_forward_impl.1} parent=5 // pred_fallthru
      _
    %p274 = scmp.lt.s32.totalorder %s15, 2
    // Predicated region
    $region45: #{dacblock137_forward_impl.1} parent=5 // pred_check
      %p275 = pneg %p274
    $region46: #{dacblock137_forward_impl.1} parent=5 // pred_check_branch
      %277 = sbr.rel (%p275) target = $region48
    $region47: #{dacblock137_forward_impl.1} parent=5 // pred_region
      // Predicated region
      $region49: #{dacblock137_forward_impl.1} parent=47 // pred_check
        %p278 = pneg %p35
      $region50: #{dacblock137_forward_impl.1} parent=47 // pred_check_branch
        %280 = sbr.rel (%p278) target = $region52
      $region51: #{dacblock137_forward_impl.1} parent=47 // pred_region
        %p281 = scmp.lt.s32.totalorder %s15, 1
        %s282 = scalar_select %p281, %s15, 1
        %s283 = smul.addr %s282, 2
        %s284 = smul.addr %s283, 4
        %s285 = scalar_lea.vmem %s0, %s284
      $region52: #{dacblock137_forward_impl.1} parent=47 // pred_fallthru
        _
    $region48: #{dacblock137_forward_impl.1} parent=5 // pred_fallthru
      _
    %p286 = scmp.le.s32.totalorder 1, %s15
    %p287 = scmp.lt.s32.totalorder %s15, 3
    %p288 = pnand %p286, %p287
    %p289 = pneg %p288
    // Predicated region
    $region53: #{dacblock137_forward_impl.1} parent=5 // pred_check
      _
    $region54: #{dacblock137_forward_impl.1} parent=5 // pred_check_branch
      %291 = sbr.rel (%p288) target = $region56
    $region55: #{dacblock137_forward_impl.1} parent=5 // pred_region
      %s292 = ssub.s32 %s15, 1
      %p293 = scmp.lt.s32.totalorder %s20, 1
      %s294 = scalar_select %p293, %s20, 1
      %s295 = smul.addr %s294, 2
      %s296 = smul.addr %s295, 4
      %s297 = scalar_lea.vmem %s0, %s296
      %p298 = pneg %p41
      %p299 = pneg %p38
      %p300 = pneg %p62
      %p301 = pneg %p59
      %p302 = pneg %p83
      %p303 = pneg %p80
      %p304 = pneg %p104
      %p305 = pneg %p101
      %p306 = pneg %p125
      %p307 = pneg %p122
      %p308 = pneg %p146
      %p309 = pneg %p143
      %p310 = pneg %p167
      %p311 = pneg %p164
      %p312 = pneg %p188
      %p313 = pneg %p185
      %p314 = pneg %p209
      %p315 = pneg %p206
      %p316 = pneg %p235
      %p317 = pneg %p232
      %p318 = scmp.lt.s32.totalorder %s20, 1
      %s319 = scalar_select %p318, %s20, 1
      %s320 = smul.addr %s319, 2
      %s321 = smul.addr %s320, 4
      %s322 = scalar_lea.vmem %s9, %s321
      %p323 = scmp.lt.s32.totalorder %s20, 1
      %s324 = scalar_select %p323, %s20, 1
      %s325 = smul.addr %s324, 2
      %s326 = smul.addr %s325, 4
      %s327 = scalar_lea.vmem %s0, %s326
      %p328 = scmp.lt.s32.totalorder %s20, 1
      %s329 = scalar_select %p328, %s20, 1
      %s330 = smul.addr %s329, 2
      %s331 = smul.addr %s330, 4
      %s332 = scalar_lea.vmem %s9, %s331
      %v333 = vld [vmem:[%s327] sm:$0xff]
      %v334 = vlaneseq
      %v335 = vand.u32 %v334, 127
      %v336 = vadd.s32 %v335, 128
      %vm337 = vcmp.lt.s32.totalorder %v335, 0
      %v338 = vsub.s32 0, %v335
      %v339 = vsel %vm337, %v338, %v335
      %v340 = vshrl.u32 %v339, 4
      %v341 = vand.u32 %v339, 15
      %v342 = vsub.s32 0, %v341
      %v343 = vsel %vm337, %v342, %v341
      %vm344 = vcmp.lt.s32.totalorder %v336, 0
      %v345 = vsub.s32 0, %v336
      %v346 = vsel %vm344, %v345, %v336
      %v347 = vshrl.u32 %v346, 4
      %v348 = vand.u32 %v346, 15
      %v349 = vsub.s32 0, %v348
      %v350 = vsel %vm344, %v349, %v348
      %vm351 = vcmp.ne.s32.totalorder %v343, 0
      %vm352 = vcmp.ne.s32.totalorder %v350, 0
      %vm353 = vcmp.lt.s32.totalorder %v343, 0
      %vm354 = vcmp.lt.s32.totalorder %v350, 0
      %vm355 = vmand %vm353, %vm351
      %vm356 = vmand %vm354, %vm352
      %v357 = vadd.s32 %v343, 16
      %v358 = vadd.s32 %v350, 16
      %v359 = vsel %vm355, %v357, %v343
      %v360 = vsel %vm356, %v358, %v350
      %v362 = vcombine.high %v333, %v333
      %v363 = vld [vmem:[%s1] sm:$0xf]
      %v364 = vsub.s32 %v359, 1
      %v365 = vsub.s32 %v360, 1
      %vm366 = vcmp.ge.s32.totalorder %v364, 0
      %vm367 = vcmp.ge.s32.totalorder %v365, 0
      %v368 = vadd.s32 %v359, 1
      %v369 = vadd.s32 %v360, 1
      %vm370 = vcmp.lt.s32.totalorder %v368, 16
      %vm371 = vcmp.lt.s32.totalorder %v369, 16
      %v372 = vsel %vm366, 1, 0
      %v373 = vsel %vm367, 1, 0
      %vm374 = vcmp.eq.s32.totalorder %v372, 1
      %vm375 = vcmp.eq.s32.totalorder %v373, 1
      %377 = vrot.lane.b32.xlu0 0.0, 17
      %v378 = vpop.permute.xlu0 %377
      %379 = vrot.lane.b32.xlu0 %v333, 17
      %v380 = vpop.permute.xlu0 %379
      %381 = vrot.lane.b32.xlu0 %v362, 17
      %v382 = vpop.permute.xlu0 %381
      %vm383 = vcmask 138240
      %v384 = vsel %vm383, %v378, %v380
      %v385 = vsel %vm383, %v380, %v382
      %v388 = vsel %vm374, %v384, 0.0
      %v389 = vsel %vm375, %v385, 0.0
      %391 = vrot.lane.b32.xlu0 %v363, 124
      %v392 = vpop.permute.xlu0 %391
      %393 = vrot.lane.b32.xlu0 0.0, 16
      %v394 = vpop.permute.xlu0 %393
      %395 = vrot.lane.b32.xlu0 %v333, 16
      %v396 = vpop.permute.xlu0 %395
      %397 = vrot.lane.b32.xlu0 %v362, 16
      %v398 = vpop.permute.xlu0 %397
      %vm399 = vcmask 130048
      %v400 = vsel %vm399, %v394, %v396
      %v401 = vsel %vm399, %v396, %v398
      %vm402 = vcmask 31744
      %v403 = vsel %vm402, %v392, 0
      %vm405 = vcmask 1043456
      %v406 = vsel %vm405, %v400, 0
      %v408 = vsel %vm405, %v401, 0
      %410 = vmatprep.subr.mxu0 %v408
      %411 = vmatpush1.msra.mxu0 %v406
      %412 = vmatprep.subr.mxu0 0.0
      %413 = vmatpush1.msra.mxu0 0.0
      %414 = vmatprep.subr.mxu0 0.0
      %415 = vmatpush1.msra.mxu0 0.0
      %416 = vmatprep.subr.mxu0 0.0
      %417 = vmatpush1.msra.mxu0 0.0
      %418 = vmatprep.subr.mxu0 0.0
      %419 = vmatpush1.msra.mxu0 0.0
      %420 = vmatprep.subr.mxu0 0.0
      %421 = vmatpush1.msra.mxu0 0.0
      %422 = vmatprep.subr.mxu0 0.0
      %423 = vmatpush1.msra.mxu0 0.0
      %424 = vmatprep.subr.mxu0 0.0
      %425 = vmatpush1.msra.mxu0 0.0
      %426 = vmatprep.subr.mxu0 0.0
      %427 = vmatpush1.msra.mxu0 0.0
      %428 = vmatprep.subr.mxu0 0.0
      %429 = vmatpush1.msra.mxu0 0.0
      %430 = vmatprep.subr.mxu0 0.0
      %431 = vmatpush1.msra.mxu0 0.0
      %432 = vmatprep.subr.mxu0 0.0
      %433 = vmatpush1.msra.mxu0 0.0
      %434 = vmatprep.subr.mxu0 0.0
      %435 = vmatpush1.msra.mxu0 0.0
      %436 = vmatprep.subr.mxu0 0.0
      %437 = vmatpush1.msra.mxu0 0.0
      %438 = vmatprep.subr.mxu0 0.0
      %439 = vmatpush1.msra.mxu0 0.0
      %440 = vmatprep.subr.mxu0 0.0
      %441 = vmatpush1.msra.mxu0 0.0
      %442 = vmatprep.subr.mxu0 0.0
      %443 = vmatpush1.msra.mxu0 0.0
      %444 = vmatprep.subr.mxu0 0.0
      %445 = vmatpush1.msra.mxu0 0.0
      %446 = vmatprep.subr.mxu0 0.0
      %447 = vmatpush1.msra.mxu0 0.0
      %448 = vmatprep.subr.mxu0 0.0
      %449 = vmatpush1.msra.mxu0 0.0
      %450 = vmatprep.subr.mxu0 0.0
      %451 = vmatpush1.msra.mxu0 0.0
      %452 = vmatprep.subr.mxu0 0.0
      %453 = vmatpush1.msra.mxu0 0.0
      %454 = vmatprep.subr.mxu0 0.0
      %455 = vmatpush1.msra.mxu0 0.0
      %456 = vmatprep.subr.mxu0 0.0
      %457 = vmatpush1.msra.mxu0 0.0
      %458 = vmatprep.subr.mxu0 0.0
      %459 = vmatpush1.msra.mxu0 0.0
      %460 = vmatprep.subr.mxu0 0.0
      %461 = vmatpush1.msra.mxu0 0.0
      %462 = vmatprep.subr.mxu0 0.0
      %463 = vmatpush1.msra.mxu0 0.0
      %464 = vmatprep.subr.mxu0 0.0
      %465 = vmatpush1.msra.mxu0 0.0
      %466 = vmatprep.subr.mxu0 0.0
      %467 = vmatpush1.msra.mxu0 0.0
      %468 = vmatprep.subr.mxu0 0.0
      %469 = vmatpush1.msra.mxu0 0.0
      %470 = vmatprep.subr.mxu0 0.0
      %471 = vmatpush1.msra.mxu0 0.0
      %472 = vmatprep.subr.mxu0 0.0
      %473 = vmatpush1.msra.mxu0 0.0
      %474 = vmatprep.mubr.f32.mxu0 0.0
      %475 = vmatmul.mubr.f32.gmra.mrb[0].mxu0 %v403
      %v476 = vpop.f32.mrb[0].mxu0
      %v477 = vadd.f32 0.0, %v476
      %v478 = vpop.f32.mrb[0].mxu0
      %v479 = vadd.f32 0.0, %v478
      %480 = vdwg.mxu0
      %v481 = vsel %vm402, %v363, 0
      %v484 = vsel %vm405, %v388, 0
      %v487 = vsel %vm405, %v389, 0
      %489 = vmatprep.subr.mxu0 %v487
      %490 = vmatpush1.msra.mxu0 %v484
      %491 = vmatprep.subr.mxu0 0.0
      %492 = vmatpush1.msra.mxu0 0.0
      %493 = vmatprep.subr.mxu0 0.0
      %494 = vmatpush1.msra.mxu0 0.0
      %495 = vmatprep.subr.mxu0 0.0
      %496 = vmatpush1.msra.mxu0 0.0
      %497 = vmatprep.subr.mxu0 0.0
      %498 = vmatpush1.msra.mxu0 0.0
      %499 = vmatprep.subr.mxu0 0.0
      %500 = vmatpush1.msra.mxu0 0.0
      %501 = vmatprep.subr.mxu0 0.0
      %502 = vmatpush1.msra.mxu0 0.0
      %503 = vmatprep.subr.mxu0 0.0
      %504 = vmatpush1.msra.mxu0 0.0
      %505 = vmatprep.subr.mxu0 0.0
      %506 = vmatpush1.msra.mxu0 0.0
      %507 = vmatprep.subr.mxu0 0.0
      %508 = vmatpush1.msra.mxu0 0.0
      %509 = vmatprep.subr.mxu0 0.0
      %510 = vmatpush1.msra.mxu0 0.0
      %511 = vmatprep.subr.mxu0 0.0
      %512 = vmatpush1.msra.mxu0 0.0
      %513 = vmatprep.subr.mxu0 0.0
      %514 = vmatpush1.msra.mxu0 0.0
      %515 = vmatprep.subr.mxu0 0.0
      %516 = vmatpush1.msra.mxu0 0.0
      %517 = vmatprep.subr.mxu0 0.0
      %518 = vmatpush1.msra.mxu0 0.0
      %519 = vmatprep.subr.mxu0 0.0
      %520 = vmatpush1.msra.mxu0 0.0
      %521 = vmatprep.subr.mxu0 0.0
      %522 = vmatpush1.msra.mxu0 0.0
      %523 = vmatprep.subr.mxu0 0.0
      %524 = vmatpush1.msra.mxu0 0.0
      %525 = vmatprep.subr.mxu0 0.0
      %526 = vmatpush1.msra.mxu0 0.0
      %527 = vmatprep.subr.mxu0 0.0
      %528 = vmatpush1.msra.mxu0 0.0
      %529 = vmatprep.subr.mxu0 0.0
      %530 = vmatpush1.msra.mxu0 0.0
      %531 = vmatprep.subr.mxu0 0.0
      %532 = vmatpush1.msra.mxu0 0.0
      %533 = vmatprep.subr.mxu0 0.0
      %534 = vmatpush1.msra.mxu0 0.0
      %535 = vmatprep.subr.mxu0 0.0
      %536 = vmatpush1.msra.mxu0 0.0
      %537 = vmatprep.subr.mxu0 0.0
      %538 = vmatpush1.msra.mxu0 0.0
      %539 = vmatprep.subr.mxu0 0.0
      %540 = vmatpush1.msra.mxu0 0.0
      %541 = vmatprep.subr.mxu0 0.0
      %542 = vmatpush1.msra.mxu0 0.0
      %543 = vmatprep.subr.mxu0 0.0
      %544 = vmatpush1.msra.mxu0 0.0
      %545 = vmatprep.subr.mxu0 0.0
      %546 = vmatpush1.msra.mxu0 0.0
      %547 = vmatprep.subr.mxu0 0.0
      %548 = vmatpush1.msra.mxu0 0.0
      %549 = vmatprep.subr.mxu0 0.0
      %550 = vmatpush1.msra.mxu0 0.0
      %551 = vmatprep.subr.mxu0 0.0
      %552 = vmatpush1.msra.mxu0 0.0
      %553 = vmatprep.mubr.f32.mxu0 0.0
      %554 = vmatmul.mubr.f32.gmra.mrb[0].mxu0 %v481
      %v555 = vpop.f32.mrb[0].mxu0
      %v556 = vadd.f32 %v477, %v555
      %v557 = vpop.f32.mrb[0].mxu0
      %v558 = vadd.f32 %v479, %v557
      %559 = vdwg.mxu0
      %v560 = vsel %vm370, 1, 0
      %v561 = vsel %vm371, 1, 0
      %vm562 = vcmp.eq.s32.totalorder %v560, 1
      %vm563 = vcmp.eq.s32.totalorder %v561, 1
      %564 = vrot.lane.b32.xlu0 0.0, 15
      %v565 = vpop.permute.xlu0 %564
      %566 = vrot.lane.b32.xlu0 %v333, 15
      %v567 = vpop.permute.xlu0 %566
      %568 = vrot.lane.b32.xlu0 %v362, 15
      %v569 = vpop.permute.xlu0 %568
      %vm570 = vcmask 121856
      %v571 = vsel %vm570, %v565, %v567
      %v572 = vsel %vm570, %v567, %v569
      %v575 = vsel %vm562, %v571, 0.0
      %v576 = vsel %vm563, %v572, 0.0
      %577 = vrot.lane.b32.xlu0 %v363, 120
      %v578 = vpop.permute.xlu0 %577
      %v579 = vsel %vm402, %v578, 0
      %v582 = vsel %vm405, %v575, 0
      %v585 = vsel %vm405, %v576, 0
      %587 = vmatprep.subr.mxu0 %v585
      %588 = vmatpush1.msra.mxu0 %v582
      %589 = vmatprep.subr.mxu0 0.0
      %590 = vmatpush1.msra.mxu0 0.0
      %591 = vmatprep.subr.mxu0 0.0
      %592 = vmatpush1.msra.mxu0 0.0
      %593 = vmatprep.subr.mxu0 0.0
      %594 = vmatpush1.msra.mxu0 0.0
      %595 = vmatprep.subr.mxu0 0.0
      %596 = vmatpush1.msra.mxu0 0.0
      %597 = vmatprep.subr.mxu0 0.0
      %598 = vmatpush1.msra.mxu0 0.0
      %599 = vmatprep.subr.mxu0 0.0
      %600 = vmatpush1.msra.mxu0 0.0
      %601 = vmatprep.subr.mxu0 0.0
      %602 = vmatpush1.msra.mxu0 0.0
      %603 = vmatprep.subr.mxu0 0.0
      %604 = vmatpush1.msra.mxu0 0.0
      %605 = vmatprep.subr.mxu0 0.0
      %606 = vmatpush1.msra.mxu0 0.0
      %607 = vmatprep.subr.mxu0 0.0
      %608 = vmatpush1.msra.mxu0 0.0
      %609 = vmatprep.subr.mxu0 0.0
      %610 = vmatpush1.msra.mxu0 0.0
      %611 = vmatprep.subr.mxu0 0.0
      %612 = vmatpush1.msra.mxu0 0.0
      %613 = vmatprep.subr.mxu0 0.0
      %614 = vmatpush1.msra.mxu0 0.0
      %615 = vmatprep.subr.mxu0 0.0
      %616 = vmatpush1.msra.mxu0 0.0
      %617 = vmatprep.subr.mxu0 0.0
      %618 = vmatpush1.msra.mxu0 0.0
      %619 = vmatprep.subr.mxu0 0.0
      %620 = vmatpush1.msra.mxu0 0.0
      %621 = vmatprep.subr.mxu0 0.0
      %622 = vmatpush1.msra.mxu0 0.0
      %623 = vmatprep.subr.mxu0 0.0
      %624 = vmatpush1.msra.mxu0 0.0
      %625 = vmatprep.subr.mxu0 0.0
      %626 = vmatpush1.msra.mxu0 0.0
      %627 = vmatprep.subr.mxu0 0.0
      %628 = vmatpush1.msra.mxu0 0.0
      %629 = vmatprep.subr.mxu0 0.0
      %630 = vmatpush1.msra.mxu0 0.0
      %631 = vmatprep.subr.mxu0 0.0
      %632 = vmatpush1.msra.mxu0 0.0
      %633 = vmatprep.subr.mxu0 0.0
      %634 = vmatpush1.msra.mxu0 0.0
      %635 = vmatprep.subr.mxu0 0.0
      %636 = vmatpush1.msra.mxu0 0.0
      %637 = vmatprep.subr.mxu0 0.0
      %638 = vmatpush1.msra.mxu0 0.0
      %639 = vmatprep.subr.mxu0 0.0
      %640 = vmatpush1.msra.mxu0 0.0
      %641 = vmatprep.subr.mxu0 0.0
      %642 = vmatpush1.msra.mxu0 0.0
      %643 = vmatprep.subr.mxu0 0.0
      %644 = vmatpush1.msra.mxu0 0.0
      %645 = vmatprep.subr.mxu0 0.0
      %646 = vmatpush1.msra.mxu0 0.0
      %647 = vmatprep.subr.mxu0 0.0
      %648 = vmatpush1.msra.mxu0 0.0
      %649 = vmatprep.subr.mxu0 0.0
      %650 = vmatpush1.msra.mxu0 0.0
      %651 = vmatprep.mubr.f32.mxu0 0.0
      %652 = vmatmul.mubr.f32.gmra.mrb[0].mxu0 %v579
      %v653 = vpop.f32.mrb[0].mxu0
      %v654 = vadd.f32 0.0, %v653
      %v655 = vpop.f32.mrb[0].mxu0
      %v656 = vadd.f32 0.0, %v655
      %657 = vdwg.mxu0
      %v658 = vadd.f32 %v556, %v654
      %v659 = vadd.f32 %v558, %v656
      %660 = vrot.lane.b32.xlu0 0.0, 1
      %v661 = vpop.permute.xlu0 %660
      %662 = vrot.lane.b32.xlu0 %v333, 1
      %v663 = vpop.permute.xlu0 %662
      %664 = vrot.lane.b32.xlu0 %v362, 1
      %v665 = vpop.permute.xlu0 %664
      %vm666 = vcmask 7168
      %v667 = vsel %vm666, %v661, %v663
      %v668 = vsel %vm666, %v663, %v665
      %v671 = vsel %vm374, %v667, 0.0
      %v672 = vsel %vm375, %v668, 0.0
      %673 = vrot.lane.b32.xlu0 %v363, 116
      %v674 = vpop.permute.xlu0 %673
      %v675 = vsel %vm402, %v674, 0
      %v678 = vsel %vm405, %v671, 0
      %v681 = vsel %vm405, %v672, 0
      %683 = vmatprep.subr.mxu0 %v681
      %684 = vmatpush1.msra.mxu0 %v678
      %685 = vmatprep.subr.mxu0 0.0
      %686 = vmatpush1.msra.mxu0 0.0
      %687 = vmatprep.subr.mxu0 0.0
      %688 = vmatpush1.msra.mxu0 0.0
      %689 = vmatprep.subr.mxu0 0.0
      %690 = vmatpush1.msra.mxu0 0.0
      %691 = vmatprep.subr.mxu0 0.0
      %692 = vmatpush1.msra.mxu0 0.0
      %693 = vmatprep.subr.mxu0 0.0
      %694 = vmatpush1.msra.mxu0 0.0
      %695 = vmatprep.subr.mxu0 0.0
      %696 = vmatpush1.msra.mxu0 0.0
      %697 = vmatprep.subr.mxu0 0.0
      %698 = vmatpush1.msra.mxu0 0.0
      %699 = vmatprep.subr.mxu0 0.0
      %700 = vmatpush1.msra.mxu0 0.0
      %701 = vmatprep.subr.mxu0 0.0
      %702 = vmatpush1.msra.mxu0 0.0
      %703 = vmatprep.subr.mxu0 0.0
      %704 = vmatpush1.msra.mxu0 0.0
      %705 = vmatprep.subr.mxu0 0.0
      %706 = vmatpush1.msra.mxu0 0.0
      %707 = vmatprep.subr.mxu0 0.0
      %708 = vmatpush1.msra.mxu0 0.0
      %709 = vmatprep.subr.mxu0 0.0
      %710 = vmatpush1.msra.mxu0 0.0
      %711 = vmatprep.subr.mxu0 0.0
      %712 = vmatpush1.msra.mxu0 0.0
      %713 = vmatprep.subr.mxu0 0.0
      %714 = vmatpush1.msra.mxu0 0.0
      %715 = vmatprep.subr.mxu0 0.0
      %716 = vmatpush1.msra.mxu0 0.0
      %717 = vmatprep.subr.mxu0 0.0
      %718 = vmatpush1.msra.mxu0 0.0
      %719 = vmatprep.subr.mxu0 0.0
      %720 = vmatpush1.msra.mxu0 0.0
      %721 = vmatprep.subr.mxu0 0.0
      %722 = vmatpush1.msra.mxu0 0.0
      %723 = vmatprep.subr.mxu0 0.0
      %724 = vmatpush1.msra.mxu0 0.0
      %725 = vmatprep.subr.mxu0 0.0
      %726 = vmatpush1.msra.mxu0 0.0
      %727 = vmatprep.subr.mxu0 0.0
      %728 = vmatpush1.msra.mxu0 0.0
      %729 = vmatprep.subr.mxu0 0.0
      %730 = vmatpush1.msra.mxu0 0.0
      %731 = vmatprep.subr.mxu0 0.0
      %732 = vmatpush1.msra.mxu0 0.0
      %733 = vmatprep.subr.mxu0 0.0
      %734 = vmatpush1.msra.mxu0 0.0
      %735 = vmatprep.subr.mxu0 0.0
      %736 = vmatpush1.msra.mxu0 0.0
      %737 = vmatprep.subr.mxu0 0.0
      %738 = vmatpush1.msra.mxu0 0.0
      %739 = vmatprep.subr.mxu0 0.0
      %740 = vmatpush1.msra.mxu0 0.0
      %741 = vmatprep.subr.mxu0 0.0
      %742 = vmatpush1.msra.mxu0 0.0
      %743 = vmatprep.subr.mxu0 0.0
      %744 = vmatpush1.msra.mxu0 0.0
      %745 = vmatprep.subr.mxu0 0.0
      %746 = vmatpush1.msra.mxu0 0.0
      %747 = vmatprep.mubr.f32.mxu0 0.0
      %748 = vmatmul.mubr.f32.gmra.mrb[0].mxu0 %v675
      %v749 = vpop.f32.mrb[0].mxu0
      %v750 = vadd.f32 0.0, %v749
      %v751 = vpop.f32.mrb[0].mxu0
      %v752 = vadd.f32 0.0, %v751
      %753 = vdwg.mxu0
      %v754 = vadd.f32 %v658, %v750
      %v755 = vadd.f32 %v659, %v752
      %756 = vrot.lane.b32.xlu0 %v363, 112
      %v757 = vpop.permute.xlu0 %756
      %v758 = vsel %vm402, %v757, 0
      %v760 = vsel %vm405, %v333, 0
      %v762 = vsel %vm405, %v362, 0
      %764 = vmatprep.subr.mxu0 %v762
      %765 = vmatpush1.msra.mxu0 %v760
      %766 = vmatprep.subr.mxu0 0.0
      %767 = vmatpush1.msra.mxu0 0.0
      %768 = vmatprep.subr.mxu0 0.0
      %769 = vmatpush1.msra.mxu0 0.0
      %770 = vmatprep.subr.mxu0 0.0
      %771 = vmatpush1.msra.mxu0 0.0
      %772 = vmatprep.subr.mxu0 0.0
      %773 = vmatpush1.msra.mxu0 0.0
      %774 = vmatprep.subr.mxu0 0.0
      %775 = vmatpush1.msra.mxu0 0.0
      %776 = vmatprep.subr.mxu0 0.0
      %777 = vmatpush1.msra.mxu0 0.0
      %778 = vmatprep.subr.mxu0 0.0
      %779 = vmatpush1.msra.mxu0 0.0
      %780 = vmatprep.subr.mxu0 0.0
      %781 = vmatpush1.msra.mxu0 0.0
      %782 = vmatprep.subr.mxu0 0.0
      %783 = vmatpush1.msra.mxu0 0.0
      %784 = vmatprep.subr.mxu0 0.0
      %785 = vmatpush1.msra.mxu0 0.0
      %786 = vmatprep.subr.mxu0 0.0
      %787 = vmatpush1.msra.mxu0 0.0
      %788 = vmatprep.subr.mxu0 0.0
      %789 = vmatpush1.msra.mxu0 0.0
      %790 = vmatprep.subr.mxu0 0.0
      %791 = vmatpush1.msra.mxu0 0.0
      %792 = vmatprep.subr.mxu0 0.0
      %793 = vmatpush1.msra.mxu0 0.0
      %794 = vmatprep.subr.mxu0 0.0
      %795 = vmatpush1.msra.mxu0 0.0
      %796 = vmatprep.subr.mxu0 0.0
      %797 = vmatpush1.msra.mxu0 0.0
      %798 = vmatprep.subr.mxu0 0.0
      %799 = vmatpush1.msra.mxu0 0.0
      %800 = vmatprep.subr.mxu0 0.0
      %801 = vmatpush1.msra.mxu0 0.0
      %802 = vmatprep.subr.mxu0 0.0
      %803 = vmatpush1.msra.mxu0 0.0
      %804 = vmatprep.subr.mxu0 0.0
      %805 = vmatpush1.msra.mxu0 0.0
      %806 = vmatprep.subr.mxu0 0.0
      %807 = vmatpush1.msra.mxu0 0.0
      %808 = vmatprep.subr.mxu0 0.0
      %809 = vmatpush1.msra.mxu0 0.0
      %810 = vmatprep.subr.mxu0 0.0
      %811 = vmatpush1.msra.mxu0 0.0
      %812 = vmatprep.subr.mxu0 0.0
      %813 = vmatpush1.msra.mxu0 0.0
      %814 = vmatprep.subr.mxu0 0.0
      %815 = vmatpush1.msra.mxu0 0.0
      %816 = vmatprep.subr.mxu0 0.0
      %817 = vmatpush1.msra.mxu0 0.0
      %818 = vmatprep.subr.mxu0 0.0
      %819 = vmatpush1.msra.mxu0 0.0
      %820 = vmatprep.subr.mxu0 0.0
      %821 = vmatpush1.msra.mxu0 0.0
      %822 = vmatprep.subr.mxu0 0.0
      %823 = vmatpush1.msra.mxu0 0.0
      %824 = vmatprep.subr.mxu0 0.0
      %825 = vmatpush1.msra.mxu0 0.0
      %826 = vmatprep.subr.mxu0 0.0
      %827 = vmatpush1.msra.mxu0 0.0
      %828 = vmatprep.mubr.f32.mxu0 0.0
      %829 = vmatmul.mubr.f32.gmra.mrb[0].mxu0 %v758
      %v830 = vpop.f32.mrb[0].mxu0
      %v831 = vadd.f32 0.0, %v830
      %v832 = vpop.f32.mrb[0].mxu0
      %v833 = vadd.f32 0.0, %v832
      %834 = vdwg.mxu0
      %v835 = vadd.f32 %v754, %v831
      %v836 = vadd.f32 %v755, %v833
      %837 = vrot.lane.b32.xlu0 %v333, 127
      %v838 = vpop.permute.xlu0 %837
      %839 = vrot.lane.b32.xlu0 %v362, 127
      %v840 = vpop.permute.xlu0 %839
      %841 = vrot.lane.b32.xlu0 0.0, 127
      %v842 = vpop.permute.xlu0 %841
      %vm843 = vcmask 1039360
      %v844 = vsel %vm843, %v838, %v840
      %v845 = vsel %vm843, %v840, %v842
      %v848 = vsel %vm562, %v844, 0.0
      %v849 = vsel %vm563, %v845, 0.0
      %850 = vrot.lane.b32.xlu0 %v363, 108
      %v851 = vpop.permute.xlu0 %850
      %v852 = vsel %vm402, %v851, 0
      %v855 = vsel %vm405, %v848, 0
      %v858 = vsel %vm405, %v849, 0
      %860 = vmatprep.subr.mxu0 %v858
      %861 = vmatpush1.msra.mxu0 %v855
      %862 = vmatprep.subr.mxu0 0.0
      %863 = vmatpush1.msra.mxu0 0.0
      %864 = vmatprep.subr.mxu0 0.0
      %865 = vmatpush1.msra.mxu0 0.0
      %866 = vmatprep.subr.mxu0 0.0
      %867 = vmatpush1.msra.mxu0 0.0
      %868 = vmatprep.subr.mxu0 0.0
      %869 = vmatpush1.msra.mxu0 0.0
      %870 = vmatprep.subr.mxu0 0.0
      %871 = vmatpush1.msra.mxu0 0.0
      %872 = vmatprep.subr.mxu0 0.0
      %873 = vmatpush1.msra.mxu0 0.0
      %874 = vmatprep.subr.mxu0 0.0
      %875 = vmatpush1.msra.mxu0 0.0
      %876 = vmatprep.subr.mxu0 0.0
      %877 = vmatpush1.msra.mxu0 0.0
      %878 = vmatprep.subr.mxu0 0.0
      %879 = vmatpush1.msra.mxu0 0.0
      %880 = vmatprep.subr.mxu0 0.0
      %881 = vmatpush1.msra.mxu0 0.0
      %882 = vmatprep.subr.mxu0 0.0
      %883 = vmatpush1.msra.mxu0 0.0
      %884 = vmatprep.subr.mxu0 0.0
      %885 = vmatpush1.msra.mxu0 0.0
      %886 = vmatprep.subr.mxu0 0.0
      %887 = vmatpush1.msra.mxu0 0.0
      %888 = vmatprep.subr.mxu0 0.0
      %889 = vmatpush1.msra.mxu0 0.0
      %890 = vmatprep.subr.mxu0 0.0
      %891 = vmatpush1.msra.mxu0 0.0
      %892 = vmatprep.subr.mxu0 0.0
      %893 = vmatpush1.msra.mxu0 0.0
      %894 = vmatprep.subr.mxu0 0.0
      %895 = vmatpush1.msra.mxu0 0.0
      %896 = vmatprep.subr.mxu0 0.0
      %897 = vmatpush1.msra.mxu0 0.0
      %898 = vmatprep.subr.mxu0 0.0
      %899 = vmatpush1.msra.mxu0 0.0
      %900 = vmatprep.subr.mxu0 0.0
      %901 = vmatpush1.msra.mxu0 0.0
      %902 = vmatprep.subr.mxu0 0.0
      %903 = vmatpush1.msra.mxu0 0.0
      %904 = vmatprep.subr.mxu0 0.0
      %905 = vmatpush1.msra.mxu0 0.0
      %906 = vmatprep.subr.mxu0 0.0
      %907 = vmatpush1.msra.mxu0 0.0
      %908 = vmatprep.subr.mxu0 0.0
      %909 = vmatpush1.msra.mxu0 0.0
      %910 = vmatprep.subr.mxu0 0.0
      %911 = vmatpush1.msra.mxu0 0.0
      %912 = vmatprep.subr.mxu0 0.0
      %913 = vmatpush1.msra.mxu0 0.0
      %914 = vmatprep.subr.mxu0 0.0
      %915 = vmatpush1.msra.mxu0 0.0
      %916 = vmatprep.subr.mxu0 0.0
      %917 = vmatpush1.msra.mxu0 0.0
      %918 = vmatprep.subr.mxu0 0.0
      %919 = vmatpush1.msra.mxu0 0.0
      %920 = vmatprep.subr.mxu0 0.0
      %921 = vmatpush1.msra.mxu0 0.0
      %922 = vmatprep.subr.mxu0 0.0
      %923 = vmatpush1.msra.mxu0 0.0
      %924 = vmatprep.mubr.f32.mxu0 0.0
      %925 = vmatmul.mubr.f32.gmra.mrb[0].mxu0 %v852
      %v926 = vpop.f32.mrb[0].mxu0
      %v927 = vadd.f32 0.0, %v926
      %v928 = vpop.f32.mrb[0].mxu0
      %v929 = vadd.f32 0.0, %v928
      %930 = vdwg.mxu0
      %v931 = vadd.f32 %v835, %v927
      %v932 = vadd.f32 %v836, %v929
      %933 = vrot.lane.b32.xlu0 %v333, 113
      %v934 = vpop.permute.xlu0 %933
      %935 = vrot.lane.b32.xlu0 %v362, 113
      %v936 = vpop.permute.xlu0 %935
      %937 = vrot.lane.b32.xlu0 0.0, 113
      %v938 = vpop.permute.xlu0 %937
      %vm939 = vcmask 924672
      %v940 = vsel %vm939, %v934, %v936
      %v941 = vsel %vm939, %v936, %v938
      %v944 = vsel %vm374, %v940, 0.0
      %v945 = vsel %vm375, %v941, 0.0
      %946 = vrot.lane.b32.xlu0 %v363, 104
      %v947 = vpop.permute.xlu0 %946
      %v948 = vsel %vm402, %v947, 0
      %v951 = vsel %vm405, %v944, 0
      %v954 = vsel %vm405, %v945, 0
      %956 = vmatprep.subr.mxu0 %v954
      %957 = vmatpush1.msra.mxu0 %v951
      %958 = vmatprep.subr.mxu0 0.0
      %959 = vmatpush1.msra.mxu0 0.0
      %960 = vmatprep.subr.mxu0 0.0
      %961 = vmatpush1.msra.mxu0 0.0
      %962 = vmatprep.subr.mxu0 0.0
      %963 = vmatpush1.msra.mxu0 0.0
      %964 = vmatprep.subr.mxu0 0.0
      %965 = vmatpush1.msra.mxu0 0.0
      %966 = vmatprep.subr.mxu0 0.0
      %967 = vmatpush1.msra.mxu0 0.0
      %968 = vmatprep.subr.mxu0 0.0
      %969 = vmatpush1.msra.mxu0 0.0
      %970 = vmatprep.subr.mxu0 0.0
      %971 = vmatpush1.msra.mxu0 0.0
      %972 = vmatprep.subr.mxu0 0.0
      %973 = vmatpush1.msra.mxu0 0.0
      %974 = vmatprep.subr.mxu0 0.0
      %975 = vmatpush1.msra.mxu0 0.0
      %976 = vmatprep.subr.mxu0 0.0
      %977 = vmatpush1.msra.mxu0 0.0
      %978 = vmatprep.subr.mxu0 0.0
      %979 = vmatpush1.msra.mxu0 0.0
      %980 = vmatprep.subr.mxu0 0.0
      %981 = vmatpush1.msra.mxu0 0.0
      %982 = vmatprep.subr.mxu0 0.0
      %983 = vmatpush1.msra.mxu0 0.0
      %984 = vmatprep.subr.mxu0 0.0
      %985 = vmatpush1.msra.mxu0 0.0
      %986 = vmatprep.subr.mxu0 0.0
      %987 = vmatpush1.msra.mxu0 0.0
      %988 = vmatprep.subr.mxu0 0.0
      %989 = vmatpush1.msra.mxu0 0.0
      %990 = vmatprep.subr.mxu0 0.0
      %991 = vmatpush1.msra.mxu0 0.0
      %992 = vmatprep.subr.mxu0 0.0
      %993 = vmatpush1.msra.mxu0 0.0
      %994 = vmatprep.subr.mxu0 0.0
      %995 = vmatpush1.msra.mxu0 0.0
      %996 = vmatprep.subr.mxu0 0.0
      %997 = vmatpush1.msra.mxu0 0.0
      %998 = vmatprep.subr.mxu0 0.0
      %999 = vmatpush1.msra.mxu0 0.0
      %1000 = vmatprep.subr.mxu0 0.0
      %1001 = vmatpush1.msra.mxu0 0.0
      %1002 = vmatprep.subr.mxu0 0.0
      %1003 = vmatpush1.msra.mxu0 0.0
      %1004 = vmatprep.subr.mxu0 0.0
      %1005 = vmatpush1.msra.mxu0 0.0
      %1006 = vmatprep.subr.mxu0 0.0
      %1007 = vmatpush1.msra.mxu0 0.0
      %1008 = vmatprep.subr.mxu0 0.0
      %1009 = vmatpush1.msra.mxu0 0.0
      %1010 = vmatprep.subr.mxu0 0.0
      %1011 = vmatpush1.msra.mxu0 0.0
      %1012 = vmatprep.subr.mxu0 0.0
      %1013 = vmatpush1.msra.mxu0 0.0
      %1014 = vmatprep.subr.mxu0 0.0
      %1015 = vmatpush1.msra.mxu0 0.0
      %1016 = vmatprep.subr.mxu0 0.0
      %1017 = vmatpush1.msra.mxu0 0.0
      %1018 = vmatprep.subr.mxu0 0.0
      %1019 = vmatpush1.msra.mxu0 0.0
      %1020 = vmatprep.mubr.f32.mxu0 0.0
      %1021 = vmatmul.mubr.f32.gmra.mrb[0].mxu0 %v948
      %v1022 = vpop.f32.mrb[0].mxu0
      %v1023 = vadd.f32 0.0, %v1022
      %v1024 = vpop.f32.mrb[0].mxu0
      %v1025 = vadd.f32 0.0, %v1024
      %1026 = vdwg.mxu0
      %v1027 = vadd.f32 %v931, %v1023
      %v1028 = vadd.f32 %v932, %v1025
      %1029 = vrot.lane.b32.xlu0 %v363, 100
      %v1030 = vpop.permute.xlu0 %1029
      %1031 = vrot.lane.b32.xlu0 %v333, 112
      %v1032 = vpop.permute.xlu0 %1031
      %1033 = vrot.lane.b32.xlu0 %v362, 112
      %v1034 = vpop.permute.xlu0 %1033
      %1035 = vrot.lane.b32.xlu0 0.0, 112
      %v1036 = vpop.permute.xlu0 %1035
      %vm1037 = vcmask 916480
      %v1038 = vsel %vm1037, %v1032, %v1034
      %v1039 = vsel %vm1037, %v1034, %v1036
      %v1040 = vsel %vm402, %v1030, 0
      %v1042 = vsel %vm405, %v1038, 0
      %v1044 = vsel %vm405, %v1039, 0
      %1046 = vmatprep.subr.mxu0 %v1044
      %1047 = vmatpush1.msra.mxu0 %v1042
      %1048 = vmatprep.subr.mxu0 0.0
      %1049 = vmatpush1.msra.mxu0 0.0
      %1050 = vmatprep.subr.mxu0 0.0
      %1051 = vmatpush1.msra.mxu0 0.0
      %1052 = vmatprep.subr.mxu0 0.0
      %1053 = vmatpush1.msra.mxu0 0.0
      %1054 = vmatprep.subr.mxu0 0.0
      %1055 = vmatpush1.msra.mxu0 0.0
      %1056 = vmatprep.subr.mxu0 0.0
      %1057 = vmatpush1.msra.mxu0 0.0
      %1058 = vmatprep.subr.mxu0 0.0
      %1059 = vmatpush1.msra.mxu0 0.0
      %1060 = vmatprep.subr.mxu0 0.0
      %1061 = vmatpush1.msra.mxu0 0.0
      %1062 = vmatprep.subr.mxu0 0.0
      %1063 = vmatpush1.msra.mxu0 0.0
      %1064 = vmatprep.subr.mxu0 0.0
      %1065 = vmatpush1.msra.mxu0 0.0
      %1066 = vmatprep.subr.mxu0 0.0
      %1067 = vmatpush1.msra.mxu0 0.0
      %1068 = vmatprep.subr.mxu0 0.0
      %1069 = vmatpush1.msra.mxu0 0.0
      %1070 = vmatprep.subr.mxu0 0.0
      %1071 = vmatpush1.msra.mxu0 0.0
      %1072 = vmatprep.subr.mxu0 0.0
      %1073 = vmatpush1.msra.mxu0 0.0
      %1074 = vmatprep.subr.mxu0 0.0
      %1075 = vmatpush1.msra.mxu0 0.0
      %1076 = vmatprep.subr.mxu0 0.0
      %1077 = vmatpush1.msra.mxu0 0.0
      %1078 = vmatprep.subr.mxu0 0.0
      %1079 = vmatpush1.msra.mxu0 0.0
      %1080 = vmatprep.subr.mxu0 0.0
      %1081 = vmatpush1.msra.mxu0 0.0
      %1082 = vmatprep.subr.mxu0 0.0
      %1083 = vmatpush1.msra.mxu0 0.0
      %1084 = vmatprep.subr.mxu0 0.0
      %1085 = vmatpush1.msra.mxu0 0.0
      %1086 = vmatprep.subr.mxu0 0.0
      %1087 = vmatpush1.msra.mxu0 0.0
      %1088 = vmatprep.subr.mxu0 0.0
      %1089 = vmatpush1.msra.mxu0 0.0
      %1090 = vmatprep.subr.mxu0 0.0
      %1091 = vmatpush1.msra.mxu0 0.0
      %1092 = vmatprep.subr.mxu0 0.0
      %1093 = vmatpush1.msra.mxu0 0.0
      %1094 = vmatprep.subr.mxu0 0.0
      %1095 = vmatpush1.msra.mxu0 0.0
      %1096 = vmatprep.subr.mxu0 0.0
      %1097 = vmatpush1.msra.mxu0 0.0
      %1098 = vmatprep.subr.mxu0 0.0
      %1099 = vmatpush1.msra.mxu0 0.0
      %1100 = vmatprep.subr.mxu0 0.0
      %1101 = vmatpush1.msra.mxu0 0.0
      %1102 = vmatprep.subr.mxu0 0.0
      %1103 = vmatpush1.msra.mxu0 0.0
      %1104 = vmatprep.subr.mxu0 0.0
      %1105 = vmatpush1.msra.mxu0 0.0
      %1106 = vmatprep.subr.mxu0 0.0
      %1107 = vmatpush1.msra.mxu0 0.0
      %1108 = vmatprep.subr.mxu0 0.0
      %1109 = vmatpush1.msra.mxu0 0.0
      %1110 = vmatprep.mubr.f32.mxu0 0.0
      %1111 = vmatmul.mubr.f32.gmra.mrb[0].mxu0 %v1040
      %v1112 = vpop.f32.mrb[0].mxu0
      %v1113 = vadd.f32 0.0, %v1112
      %v1114 = vpop.f32.mrb[0].mxu0
      %v1115 = vadd.f32 0.0, %v1114
      %1116 = vdwg.mxu0
      %v1117 = vadd.f32 %v1027, %v1113
      %v1118 = vadd.f32 %v1028, %v1115
      %1119 = vrot.lane.b32.xlu0 %v333, 111
      %v1120 = vpop.permute.xlu0 %1119
      %1121 = vrot.lane.b32.xlu0 %v362, 111
      %v1122 = vpop.permute.xlu0 %1121
      %1123 = vrot.lane.b32.xlu0 0.0, 111
      %v1124 = vpop.permute.xlu0 %1123
      %vm1125 = vcmask 908288
      %v1126 = vsel %vm1125, %v1120, %v1122
      %v1127 = vsel %vm1125, %v1122, %v1124
      %v1130 = vsel %vm562, %v1126, 0.0
      %v1131 = vsel %vm563, %v1127, 0.0
      %1132 = vrot.lane.b32.xlu0 %v363, 96
      %v1133 = vpop.permute.xlu0 %1132
      %v1134 = vsel %vm402, %v1133, 0
      %v1137 = vsel %vm405, %v1130, 0
      %v1140 = vsel %vm405, %v1131, 0
      %1142 = vmatprep.subr.mxu0 %v1140
      %1143 = vmatpush1.msra.mxu0 %v1137
      %1144 = vmatprep.subr.mxu0 0.0
      %1145 = vmatpush1.msra.mxu0 0.0
      %1146 = vmatprep.subr.mxu0 0.0
      %1147 = vmatpush1.msra.mxu0 0.0
      %1148 = vmatprep.subr.mxu0 0.0
      %1149 = vmatpush1.msra.mxu0 0.0
      %1150 = vmatprep.subr.mxu0 0.0
      %1151 = vmatpush1.msra.mxu0 0.0
      %1152 = vmatprep.subr.mxu0 0.0
      %1153 = vmatpush1.msra.mxu0 0.0
      %1154 = vmatprep.subr.mxu0 0.0
      %1155 = vmatpush1.msra.mxu0 0.0
      %1156 = vmatprep.subr.mxu0 0.0
      %1157 = vmatpush1.msra.mxu0 0.0
      %1158 = vmatprep.subr.mxu0 0.0
      %1159 = vmatpush1.msra.mxu0 0.0
      %1160 = vmatprep.subr.mxu0 0.0
      %1161 = vmatpush1.msra.mxu0 0.0
      %1162 = vmatprep.subr.mxu0 0.0
      %1163 = vmatpush1.msra.mxu0 0.0
      %1164 = vmatprep.subr.mxu0 0.0
      %1165 = vmatpush1.msra.mxu0 0.0
      %1166 = vmatprep.subr.mxu0 0.0
      %1167 = vmatpush1.msra.mxu0 0.0
      %1168 = vmatprep.subr.mxu0 0.0
      %1169 = vmatpush1.msra.mxu0 0.0
      %1170 = vmatprep.subr.mxu0 0.0
      %1171 = vmatpush1.msra.mxu0 0.0
      %1172 = vmatprep.subr.mxu0 0.0
      %1173 = vmatpush1.msra.mxu0 0.0
      %1174 = vmatprep.subr.mxu0 0.0
      %1175 = vmatpush1.msra.mxu0 0.0
      %1176 = vmatprep.subr.mxu0 0.0
      %1177 = vmatpush1.msra.mxu0 0.0
      %1178 = vmatprep.subr.mxu0 0.0
      %1179 = vmatpush1.msra.mxu0 0.0
      %1180 = vmatprep.subr.mxu0 0.0
      %1181 = vmatpush1.msra.mxu0 0.0
      %1182 = vmatprep.subr.mxu0 0.0
      %1183 = vmatpush1.msra.mxu0 0.0
      %1184 = vmatprep.subr.mxu0 0.0
      %1185 = vmatpush1.msra.mxu0 0.0
      %1186 = vmatprep.subr.mxu0 0.0
      %1187 = vmatpush1.msra.mxu0 0.0
      %1188 = vmatprep.subr.mxu0 0.0
      %1189 = vmatpush1.msra.mxu0 0.0
      %1190 = vmatprep.subr.mxu0 0.0
      %1191 = vmatpush1.msra.mxu0 0.0
      %1192 = vmatprep.subr.mxu0 0.0
      %1193 = vmatpush1.msra.mxu0 0.0
      %1194 = vmatprep.subr.mxu0 0.0
      %1195 = vmatpush1.msra.mxu0 0.0
      %1196 = vmatprep.subr.mxu0 0.0
      %1197 = vmatpush1.msra.mxu0 0.0
      %1198 = vmatprep.subr.mxu0 0.0
      %1199 = vmatpush1.msra.mxu0 0.0
      %1200 = vmatprep.subr.mxu0 0.0
      %1201 = vmatpush1.msra.mxu0 0.0
      %1202 = vmatprep.subr.mxu0 0.0
      %1203 = vmatpush1.msra.mxu0 0.0
      %1204 = vmatprep.subr.mxu0 0.0
      %1205 = vmatpush1.msra.mxu0 0.0
      %1206 = vmatprep.mubr.f32.mxu0 0.0
      %1207 = vmatmul.mubr.f32.gmra.mrb[0].mxu0 %v1134
      %v1208 = vpop.f32.mrb[0].mxu0
      %v1209 = vadd.f32 0.0, %v1208
      %v1210 = vpop.f32.mrb[0].mxu0
      %v1211 = vadd.f32 0.0, %v1210
      %1212 = vdwg.mxu0
      %v1213 = vadd.f32 %v1117, %v1209
      %v1214 = vadd.f32 %v1118, %v1211
      %v1215 = vld [vmem:[%s5] sm:$0xf]
      %1217 = vset.pattern.permute.xlu0 0
      %1218 = vperm.xlu0 %1217, %v1215
      %v1219 = vpop.permute.xlu0 %1218
      %v1221 = vadd.f32 %v1213, %v1219
      %v1222 = vadd.f32 %v1214, %v1219
      %v1223 = vld [vmem:[%s2] sm:$0xf]
      %v1224 = vsub.s32 %v359, 3
      %v1225 = vsub.s32 %v360, 3
      %vm1226 = vcmp.ge.s32.totalorder %v1224, 0
      %vm1227 = vcmp.ge.s32.totalorder %v1225, 0
      %v1228 = vadd.s32 %v359, 3
      %v1229 = vadd.s32 %v360, 3
      %vm1230 = vcmp.lt.s32.totalorder %v1228, 16
      %vm1231 = vcmp.lt.s32.totalorder %v1229, 16
      %v1232 = vsel %vm1226, 1, 0
      %v1233 = vsel %vm1227, 1, 0
      %vm1234 = vcmp.eq.s32.totalorder %v1232, 1
      %vm1235 = vcmp.eq.s32.totalorder %v1233, 1
      %1236 = vrot.lane.b32.xlu0 0.0, 51
      %v1237 = vpop.permute.xlu0 %1236
      %1238 = vrot.lane.b32.xlu0 %v333, 51
      %v1239 = vpop.permute.xlu0 %1238
      %1240 = vrot.lane.b32.xlu0 %v362, 51
      %v1241 = vpop.permute.xlu0 %1240
      %vm1242 = vcmask 416768
      %v1243 = vsel %vm1242, %v1237, %v1239
      %v1244 = vsel %vm1242, %v1239, %v1241
      %v1247 = vsel %vm1234, %v1243, 0.0
      %v1248 = vsel %vm1235, %v1244, 0.0
      %1250 = vrot.lane.b32.xlu0 %v1223, 124
      %v1251 = vpop.permute.xlu0 %1250
      %1252 = vrot.lane.b32.xlu0 0.0, 48
      %v1253 = vpop.permute.xlu0 %1252
      %1254 = vrot.lane.b32.xlu0 %v333, 48
      %v1255 = vpop.permute.xlu0 %1254
      %1256 = vrot.lane.b32.xlu0 %v362, 48
      %v1257 = vpop.permute.xlu0 %1256
      %vm1258 = vcmask 392192
      %v1259 = vsel %vm1258, %v1253, %v1255
      %v1260 = vsel %vm1258, %v1255, %v1257
      %v1261 = vsel %vm402, %v1251, 0
      %v1263 = vsel %vm405, %v1259, 0
      %v1265 = vsel %vm405, %v1260, 0
      %1267 = vmatprep.subr.mxu0 %v1265
      %1268 = vmatpush1.msra.mxu0 %v1263
      %1269 = vmatprep.subr.mxu0 0.0
      %1270 = vmatpush1.msra.mxu0 0.0
      %1271 = vmatprep.subr.mxu0 0.0
      %1272 = vmatpush1.msra.mxu0 0.0
      %1273 = vmatprep.subr.mxu0 0.0
      %1274 = vmatpush1.msra.mxu0 0.0
      %1275 = vmatprep.subr.mxu0 0.0
      %1276 = vmatpush1.msra.mxu0 0.0
      %1277 = vmatprep.subr.mxu0 0.0
      %1278 = vmatpush1.msra.mxu0 0.0
      %1279 = vmatprep.subr.mxu0 0.0
      %1280 = vmatpush1.msra.mxu0 0.0
      %1281 = vmatprep.subr.mxu0 0.0
      %1282 = vmatpush1.msra.mxu0 0.0
      %1283 = vmatprep.subr.mxu0 0.0
      %1284 = vmatpush1.msra.mxu0 0.0
      %1285 = vmatprep.subr.mxu0 0.0
      %1286 = vmatpush1.msra.mxu0 0.0
      %1287 = vmatprep.subr.mxu0 0.0
      %1288 = vmatpush1.msra.mxu0 0.0
      %1289 = vmatprep.subr.mxu0 0.0
      %1290 = vmatpush1.msra.mxu0 0.0
      %1291 = vmatprep.subr.mxu0 0.0
      %1292 = vmatpush1.msra.mxu0 0.0
      %1293 = vmatprep.subr.mxu0 0.0
      %1294 = vmatpush1.msra.mxu0 0.0
      %1295 = vmatprep.subr.mxu0 0.0
      %1296 = vmatpush1.msra.mxu0 0.0
      %1297 = vmatprep.subr.mxu0 0.0
      %1298 = vmatpush1.msra.mxu0 0.0
      %1299 = vmatprep.subr.mxu0 0.0
      %1300 = vmatpush1.msra.mxu0 0.0
      %1301 = vmatprep.subr.mxu0 0.0
      %1302 = vmatpush1.msra.mxu0 0.0
      %1303 = vmatprep.subr.mxu0 0.0
      %1304 = vmatpush1.msra.mxu0 0.0
      %1305 = vmatprep.subr.mxu0 0.0
      %1306 = vmatpush1.msra.mxu0 0.0
      %1307 = vmatprep.subr.mxu0 0.0
      %1308 = vmatpush1.msra.mxu0 0.0
      %1309 = vmatprep.subr.mxu0 0.0
      %1310 = vmatpush1.msra.mxu0 0.0
      %1311 = vmatprep.subr.mxu0 0.0
      %1312 = vmatpush1.msra.mxu0 0.0
      %1313 = vmatprep.subr.mxu0 0.0
      %1314 = vmatpush1.msra.mxu0 0.0
      %1315 = vmatprep.subr.mxu0 0.0
      %1316 = vmatpush1.msra.mxu0 0.0
      %1317 = vmatprep.subr.mxu0 0.0
      %1318 = vmatpush1.msra.mxu0 0.0
      %1319 = vmatprep.subr.mxu0 0.0
      %1320 = vmatpush1.msra.mxu0 0.0
      %1321 = vmatprep.subr.mxu0 0.0
      %1322 = vmatpush1.msra.mxu0 0.0
      %1323 = vmatprep.subr.mxu0 0.0
      %1324 = vmatpush1.msra.mxu0 0.0
      %1325 = vmatprep.subr.mxu0 0.0
      %1326 = vmatpush1.msra.mxu0 0.0
      %1327 = vmatprep.subr.mxu0 0.0
      %1328 = vmatpush1.msra.mxu0 0.0
      %1329 = vmatprep.subr.mxu0 0.0
      %1330 = vmatpush1.msra.mxu0 0.0
      %1331 = vmatprep.mubr.f32.mxu0 0.0
      %1332 = vmatmul.mubr.f32.gmra.mrb[0].mxu0 %v1261
      %v1333 = vpop.f32.mrb[0].mxu0
      %v1334 = vadd.f32 0.0, %v1333
      %v1335 = vpop.f32.mrb[0].mxu0
      %v1336 = vadd.f32 0.0, %v1335
      %1337 = vdwg.mxu0
      %v1338 = vsel %vm402, %v1223, 0
      %v1341 = vsel %vm405, %v1247, 0
      %v1344 = vsel %vm405, %v1248, 0
      %1346 = vmatprep.subr.mxu0 %v1344
      %1347 = vmatpush1.msra.mxu0 %v1341
      %1348 = vmatprep.subr.mxu0 0.0
      %1349 = vmatpush1.msra.mxu0 0.0
      %1350 = vmatprep.subr.mxu0 0.0
      %1351 = vmatpush1.msra.mxu0 0.0
      %1352 = vmatprep.subr.mxu0 0.0
      %1353 = vmatpush1.msra.mxu0 0.0
      %1354 = vmatprep.subr.mxu0 0.0
      %1355 = vmatpush1.msra.mxu0 0.0
      %1356 = vmatprep.subr.mxu0 0.0
      %1357 = vmatpush1.msra.mxu0 0.0
      %1358 = vmatprep.subr.mxu0 0.0
      %1359 = vmatpush1.msra.mxu0 0.0
      %1360 = vmatprep.subr.mxu0 0.0
      %1361 = vmatpush1.msra.mxu0 0.0
      %1362 = vmatprep.subr.mxu0 0.0
      %1363 = vmatpush1.msra.mxu0 0.0
      %1364 = vmatprep.subr.mxu0 0.0
      %1365 = vmatpush1.msra.mxu0 0.0
      %1366 = vmatprep.subr.mxu0 0.0
      %1367 = vmatpush1.msra.mxu0 0.0
      %1368 = vmatprep.subr.mxu0 0.0
      %1369 = vmatpush1.msra.mxu0 0.0
      %1370 = vmatprep.subr.mxu0 0.0
      %1371 = vmatpush1.msra.mxu0 0.0
      %1372 = vmatprep.subr.mxu0 0.0
      %1373 = vmatpush1.msra.mxu0 0.0
      %1374 = vmatprep.subr.mxu0 0.0
      %1375 = vmatpush1.msra.mxu0 0.0
      %1376 = vmatprep.subr.mxu0 0.0
      %1377 = vmatpush1.msra.mxu0 0.0
      %1378 = vmatprep.subr.mxu0 0.0
      %1379 = vmatpush1.msra.mxu0 0.0
      %1380 = vmatprep.subr.mxu0 0.0
      %1381 = vmatpush1.msra.mxu0 0.0
      %1382 = vmatprep.subr.mxu0 0.0
      %1383 = vmatpush1.msra.mxu0 0.0
      %1384 = vmatprep.subr.mxu0 0.0
      %1385 = vmatpush1.msra.mxu0 0.0
      %1386 = vmatprep.subr.mxu0 0.0
      %1387 = vmatpush1.msra.mxu0 0.0
      %1388 = vmatprep.subr.mxu0 0.0
      %1389 = vmatpush1.msra.mxu0 0.0
      %1390 = vmatprep.subr.mxu0 0.0
      %1391 = vmatpush1.msra.mxu0 0.0
      %1392 = vmatprep.subr.mxu0 0.0
      %1393 = vmatpush1.msra.mxu0 0.0
      %1394 = vmatprep.subr.mxu0 0.0
      %1395 = vmatpush1.msra.mxu0 0.0
      %1396 = vmatprep.subr.mxu0 0.0
      %1397 = vmatpush1.msra.mxu0 0.0
      %1398 = vmatprep.subr.mxu0 0.0
      %1399 = vmatpush1.msra.mxu0 0.0
      %1400 = vmatprep.subr.mxu0 0.0
      %1401 = vmatpush1.msra.mxu0 0.0
      %1402 = vmatprep.subr.mxu0 0.0
      %1403 = vmatpush1.msra.mxu0 0.0
      %1404 = vmatprep.subr.mxu0 0.0
      %1405 = vmatpush1.msra.mxu0 0.0
      %1406 = vmatprep.subr.mxu0 0.0
      %1407 = vmatpush1.msra.mxu0 0.0
      %1408 = vmatprep.subr.mxu0 0.0
      %1409 = vmatpush1.msra.mxu0 0.0
      %1410 = vmatprep.mubr.f32.mxu0 0.0
      %1411 = vmatmul.mubr.f32.gmra.mrb[0].mxu0 %v1338
      %v1412 = vpop.f32.mrb[0].mxu0
      %v1413 = vadd.f32 %v1334, %v1412
      %v1414 = vpop.f32.mrb[0].mxu0
      %v1415 = vadd.f32 %v1336, %v1414
      %1416 = vdwg.mxu0
      %v1417 = vsel %vm1230, 1, 0
      %v1418 = vsel %vm1231, 1, 0
      %vm1419 = vcmp.eq.s32.totalorder %v1417, 1
      %vm1420 = vcmp.eq.s32.totalorder %v1418, 1
      %1421 = vrot.lane.b32.xlu0 0.0, 45
      %v1422 = vpop.permute.xlu0 %1421
      %1423 = vrot.lane.b32.xlu0 %v333, 45
      %v1424 = vpop.permute.xlu0 %1423
      %1425 = vrot.lane.b32.xlu0 %v362, 45
      %v1426 = vpop.permute.xlu0 %1425
      %vm1427 = vcmask 367616
      %v1428 = vsel %vm1427, %v1422, %v1424
      %v1429 = vsel %vm1427, %v1424, %v1426
      %v1432 = vsel %vm1419, %v1428, 0.0
      %v1433 = vsel %vm1420, %v1429, 0.0
      %1434 = vrot.lane.b32.xlu0 %v1223, 120
      %v1435 = vpop.permute.xlu0 %1434
      %v1436 = vsel %vm402, %v1435, 0
      %v1439 = vsel %vm405, %v1432, 0
      %v1442 = vsel %vm405, %v1433, 0
      %1444 = vmatprep.subr.mxu0 %v1442
      %1445 = vmatpush1.msra.mxu0 %v1439
      %1446 = vmatprep.subr.mxu0 0.0
      %1447 = vmatpush1.msra.mxu0 0.0
      %1448 = vmatprep.subr.mxu0 0.0
      %1449 = vmatpush1.msra.mxu0 0.0
      %1450 = vmatprep.subr.mxu0 0.0
      %1451 = vmatpush1.msra.mxu0 0.0
      %1452 = vmatprep.subr.mxu0 0.0
      %1453 = vmatpush1.msra.mxu0 0.0
      %1454 = vmatprep.subr.mxu0 0.0
      %1455 = vmatpush1.msra.mxu0 0.0
      %1456 = vmatprep.subr.mxu0 0.0
      %1457 = vmatpush1.msra.mxu0 0.0
      %1458 = vmatprep.subr.mxu0 0.0
      %1459 = vmatpush1.msra.mxu0 0.0
      %1460 = vmatprep.subr.mxu0 0.0
      %1461 = vmatpush1.msra.mxu0 0.0
      %1462 = vmatprep.subr.mxu0 0.0
      %1463 = vmatpush1.msra.mxu0 0.0
      %1464 = vmatprep.subr.mxu0 0.0
      %1465 = vmatpush1.msra.mxu0 0.0
      %1466 = vmatprep.subr.mxu0 0.0
      %1467 = vmatpush1.msra.mxu0 0.0
      %1468 = vmatprep.subr.mxu0 0.0
      %1469 = vmatpush1.msra.mxu0 0.0
      %1470 = vmatprep.subr.mxu0 0.0
      %1471 = vmatpush1.msra.mxu0 0.0
      %1472 = vmatprep.subr.mxu0 0.0
      %1473 = vmatpush1.msra.mxu0 0.0
      %1474 = vmatprep.subr.mxu0 0.0
      %1475 = vmatpush1.msra.mxu0 0.0
      %1476 = vmatprep.subr.mxu0 0.0
      %1477 = vmatpush1.msra.mxu0 0.0
      %1478 = vmatprep.subr.mxu0 0.0
      %1479 = vmatpush1.msra.mxu0 0.0
      %1480 = vmatprep.subr.mxu0 0.0
      %1481 = vmatpush1.msra.mxu0 0.0
      %1482 = vmatprep.subr.mxu0 0.0
      %1483 = vmatpush1.msra.mxu0 0.0
      %1484 = vmatprep.subr.mxu0 0.0
      %1485 = vmatpush1.msra.mxu0 0.0
      %1486 = vmatprep.subr.mxu0 0.0
      %1487 = vmatpush1.msra.mxu0 0.0
      %1488 = vmatprep.subr.mxu0 0.0
      %1489 = vmatpush1.msra.mxu0 0.0
      %1490 = vmatprep.subr.mxu0 0.0
      %1491 = vmatpush1.msra.mxu0 0.0
      %1492 = vmatprep.subr.mxu0 0.0
      %1493 = vmatpush1.msra.mxu0 0.0
      %1494 = vmatprep.subr.mxu0 0.0
      %1495 = vmatpush1.msra.mxu0 0.0
      %1496 = vmatprep.subr.mxu0 0.0
      %1497 = vmatpush1.msra.mxu0 0.0
      %1498 = vmatprep.subr.mxu0 0.0
      %1499 = vmatpush1.msra.mxu0 0.0
      %1500 = vmatprep.subr.mxu0 0.0
      %1501 = vmatpush1.msra.mxu0 0.0
      %1502 = vmatprep.subr.mxu0 0.0
      %1503 = vmatpush1.msra.mxu0 0.0
      %1504 = vmatprep.subr.mxu0 0.0
      %1505 = vmatpush1.msra.mxu0 0.0
      %1506 = vmatprep.subr.mxu0 0.0
      %1507 = vmatpush1.msra.mxu0 0.0
      %1508 = vmatprep.mubr.f32.mxu0 0.0
      %1509 = vmatmul.mubr.f32.gmra.mrb[0].mxu0 %v1436
      %v1510 = vpop.f32.mrb[0].mxu0
      %v1511 = vadd.f32 0.0, %v1510
      %v1512 = vpop.f32.mrb[0].mxu0
      %v1513 = vadd.f32 0.0, %v1512
      %1514 = vdwg.mxu0
      %v1515 = vadd.f32 %v1413, %v1511
      %v1516 = vadd.f32 %v1415, %v1513
      %1517 = vrot.lane.b32.xlu0 0.0, 3
      %v1518 = vpop.permute.xlu0 %1517
      %1519 = vrot.lane.b32.xlu0 %v333, 3
      %v1520 = vpop.permute.xlu0 %1519
      %1521 = vrot.lane.b32.xlu0 %v362, 3
      %v1522 = vpop.permute.xlu0 %1521
      %vm1523 = vcmask 23552
      %v1524 = vsel %vm1523, %v1518, %v1520
      %v1525 = vsel %vm1523, %v1520, %v1522
      %v1528 = vsel %vm1234, %v1524, 0.0
      %v1529 = vsel %vm1235, %v1525, 0.0
      %1530 = vrot.lane.b32.xlu0 %v1223, 116
      %v1531 = vpop.permute.xlu0 %1530
      %v1532 = vsel %vm402, %v1531, 0
      %v1535 = vsel %vm405, %v1528, 0
      %v1538 = vsel %vm405, %v1529, 0
      %1540 = vmatprep.subr.mxu0 %v1538
      %1541 = vmatpush1.msra.mxu0 %v1535
      %1542 = vmatprep.subr.mxu0 0.0
      %1543 = vmatpush1.msra.mxu0 0.0
      %1544 = vmatprep.subr.mxu0 0.0
      %1545 = vmatpush1.msra.mxu0 0.0
      %1546 = vmatprep.subr.mxu0 0.0
      %1547 = vmatpush1.msra.mxu0 0.0
      %1548 = vmatprep.subr.mxu0 0.0
      %1549 = vmatpush1.msra.mxu0 0.0
      %1550 = vmatprep.subr.mxu0 0.0
      %1551 = vmatpush1.msra.mxu0 0.0
      %1552 = vmatprep.subr.mxu0 0.0
      %1553 = vmatpush1.msra.mxu0 0.0
      %1554 = vmatprep.subr.mxu0 0.0
      %1555 = vmatpush1.msra.mxu0 0.0
      %1556 = vmatprep.subr.mxu0 0.0
      %1557 = vmatpush1.msra.mxu0 0.0
      %1558 = vmatprep.subr.mxu0 0.0
      %1559 = vmatpush1.msra.mxu0 0.0
      %1560 = vmatprep.subr.mxu0 0.0
      %1561 = vmatpush1.msra.mxu0 0.0
      %1562 = vmatprep.subr.mxu0 0.0
      %1563 = vmatpush1.msra.mxu0 0.0
      %1564 = vmatprep.subr.mxu0 0.0
      %1565 = vmatpush1.msra.mxu0 0.0
      %1566 = vmatprep.subr.mxu0 0.0
      %1567 = vmatpush1.msra.mxu0 0.0
      %1568 = vmatprep.subr.mxu0 0.0
      %1569 = vmatpush1.msra.mxu0 0.0
      %1570 = vmatprep.subr.mxu0 0.0
      %1571 = vmatpush1.msra.mxu0 0.0
      %1572 = vmatprep.subr.mxu0 0.0
      %1573 = vmatpush1.msra.mxu0 0.0
      %1574 = vmatprep.subr.mxu0 0.0
      %1575 = vmatpush1.msra.mxu0 0.0
      %1576 = vmatprep.subr.mxu0 0.0
      %1577 = vmatpush1.msra.mxu0 0.0
      %1578 = vmatprep.subr.mxu0 0.0
      %1579 = vmatpush1.msra.mxu0 0.0
      %1580 = vmatprep.subr.mxu0 0.0
      %1581 = vmatpush1.msra.mxu0 0.0
      %1582 = vmatprep.subr.mxu0 0.0
      %1583 = vmatpush1.msra.mxu0 0.0
      %1584 = vmatprep.subr.mxu0 0.0
      %1585 = vmatpush1.msra.mxu0 0.0
      %1586 = vmatprep.subr.mxu0 0.0
      %1587 = vmatpush1.msra.mxu0 0.0
      %1588 = vmatprep.subr.mxu0 0.0
      %1589 = vmatpush1.msra.mxu0 0.0
      %1590 = vmatprep.subr.mxu0 0.0
      %1591 = vmatpush1.msra.mxu0 0.0
      %1592 = vmatprep.subr.mxu0 0.0
      %1593 = vmatpush1.msra.mxu0 0.0
      %1594 = vmatprep.subr.mxu0 0.0
      %1595 = vmatpush1.msra.mxu0 0.0
      %1596 = vmatprep.subr.mxu0 0.0
      %1597 = vmatpush1.msra.mxu0 0.0
      %1598 = vmatprep.subr.mxu0 0.0
      %1599 = vmatpush1.msra.mxu0 0.0
      %1600 = vmatprep.subr.mxu0 0.0
      %1601 = vmatpush1.msra.mxu0 0.0
      %1602 = vmatprep.subr.mxu0 0.0
      %1603 = vmatpush1.msra.mxu0 0.0
      %1604 = vmatprep.mubr.f32.mxu0 0.0
      %1605 = vmatmul.mubr.f32.gmra.mrb[0].mxu0 %v1532
      %v1606 = vpop.f32.mrb[0].mxu0
      %v1607 = vadd.f32 0.0, %v1606
      %v1608 = vpop.f32.mrb[0].mxu0
      %v1609 = vadd.f32 0.0, %v1608
      %1610 = vdwg.mxu0
      %v1611 = vadd.f32 %v1515, %v1607
      %v1612 = vadd.f32 %v1516, %v1609
      %1613 = vrot.lane.b32.xlu0 %v1223, 112
      %v1614 = vpop.permute.xlu0 %1613
      %v1615 = vsel %vm402, %v1614, 0
      %1617 = vmatprep.subr.mxu0 %v762
      %1618 = vmatpush1.msra.mxu0 %v760
      %1619 = vmatprep.subr.mxu0 0.0
      %1620 = vmatpush1.msra.mxu0 0.0
      %1621 = vmatprep.subr.mxu0 0.0
      %1622 = vmatpush1.msra.mxu0 0.0
      %1623 = vmatprep.subr.mxu0 0.0
      %1624 = vmatpush1.msra.mxu0 0.0
      %1625 = vmatprep.subr.mxu0 0.0
      %1626 = vmatpush1.msra.mxu0 0.0
      %1627 = vmatprep.subr.mxu0 0.0
      %1628 = vmatpush1.msra.mxu0 0.0
      %1629 = vmatprep.subr.mxu0 0.0
      %1630 = vmatpush1.msra.mxu0 0.0
      %1631 = vmatprep.subr.mxu0 0.0
      %1632 = vmatpush1.msra.mxu0 0.0
      %1633 = vmatprep.subr.mxu0 0.0
      %1634 = vmatpush1.msra.mxu0 0.0
      %1635 = vmatprep.subr.mxu0 0.0
      %1636 = vmatpush1.msra.mxu0 0.0
      %1637 = vmatprep.subr.mxu0 0.0
      %1638 = vmatpush1.msra.mxu0 0.0
      %1639 = vmatprep.subr.mxu0 0.0
      %1640 = vmatpush1.msra.mxu0 0.0
      %1641 = vmatprep.subr.mxu0 0.0
      %1642 = vmatpush1.msra.mxu0 0.0
      %1643 = vmatprep.subr.mxu0 0.0
      %1644 = vmatpush1.msra.mxu0 0.0
      %1645 = vmatprep.subr.mxu0 0.0
      %1646 = vmatpush1.msra.mxu0 0.0
      %1647 = vmatprep.subr.mxu0 0.0
      %1648 = vmatpush1.msra.mxu0 0.0
      %1649 = vmatprep.subr.mxu0 0.0
      %1650 = vmatpush1.msra.mxu0 0.0
      %1651 = vmatprep.subr.mxu0 0.0
      %1652 = vmatpush1.msra.mxu0 0.0
      %1653 = vmatprep.subr.mxu0 0.0
      %1654 = vmatpush1.msra.mxu0 0.0
      %1655 = vmatprep.subr.mxu0 0.0
      %1656 = vmatpush1.msra.mxu0 0.0
      %1657 = vmatprep.subr.mxu0 0.0
      %1658 = vmatpush1.msra.mxu0 0.0
      %1659 = vmatprep.subr.mxu0 0.0
      %1660 = vmatpush1.msra.mxu0 0.0
      %1661 = vmatprep.subr.mxu0 0.0
      %1662 = vmatpush1.msra.mxu0 0.0
      %1663 = vmatprep.subr.mxu0 0.0
      %1664 = vmatpush1.msra.mxu0 0.0
      %1665 = vmatprep.subr.mxu0 0.0
      %1666 = vmatpush1.msra.mxu0 0.0
      %1667 = vmatprep.subr.mxu0 0.0
      %1668 = vmatpush1.msra.mxu0 0.0
      %1669 = vmatprep.subr.mxu0 0.0
      %1670 = vmatpush1.msra.mxu0 0.0
      %1671 = vmatprep.subr.mxu0 0.0
      %1672 = vmatpush1.msra.mxu0 0.0
      %1673 = vmatprep.subr.mxu0 0.0
      %1674 = vmatpush1.msra.mxu0 0.0
      %1675 = vmatprep.subr.mxu0 0.0
      %1676 = vmatpush1.msra.mxu0 0.0
      %1677 = vmatprep.subr.mxu0 0.0
      %1678 = vmatpush1.msra.mxu0 0.0
      %1679 = vmatprep.subr.mxu0 0.0
      %1680 = vmatpush1.msra.mxu0 0.0
      %1681 = vmatprep.mubr.f32.mxu0 0.0
      %1682 = vmatmul.mubr.f32.gmra.mrb[0].mxu0 %v1615
      %v1683 = vpop.f32.mrb[0].mxu0
      %v1684 = vadd.f32 0.0, %v1683
      %v1685 = vpop.f32.mrb[0].mxu0
      %v1686 = vadd.f32 0.0, %v1685
      %1687 = vdwg.mxu0
      %v1688 = vadd.f32 %v1611, %v1684
      %v1689 = vadd.f32 %v1612, %v1686
      %1690 = vrot.lane.b32.xlu0 %v333, 125
      %v1691 = vpop.permute.xlu0 %1690
      %1692 = vrot.lane.b32.xlu0 %v362, 125
      %v1693 = vpop.permute.xlu0 %1692
      %1694 = vrot.lane.b32.xlu0 0.0, 125
      %v1695 = vpop.permute.xlu0 %1694
      %vm1696 = vcmask 1022976
      %v1697 = vsel %vm1696, %v1691, %v1693
      %v1698 = vsel %vm1696, %v1693, %v1695
      %v1701 = vsel %vm1419, %v1697, 0.0
      %v1702 = vsel %vm1420, %v1698, 0.0
      %1703 = vrot.lane.b32.xlu0 %v1223, 108
      %v1704 = vpop.permute.xlu0 %1703
      %v1705 = vsel %vm402, %v1704, 0
      %v1708 = vsel %vm405, %v1701, 0
      %v1711 = vsel %vm405, %v1702, 0
      %1713 = vmatprep.subr.mxu0 %v1711
      %1714 = vmatpush1.msra.mxu0 %v1708
      %1715 = vmatprep.subr.mxu0 0.0
      %1716 = vmatpush1.msra.mxu0 0.0
      %1717 = vmatprep.subr.mxu0 0.0
      %1718 = vmatpush1.msra.mxu0 0.0
      %1719 = vmatprep.subr.mxu0 0.0
      %1720 = vmatpush1.msra.mxu0 0.0
      %1721 = vmatprep.subr.mxu0 0.0
      %1722 = vmatpush1.msra.mxu0 0.0
      %1723 = vmatprep.subr.mxu0 0.0
      %1724 = vmatpush1.msra.mxu0 0.0
      %1725 = vmatprep.subr.mxu0 0.0
      %1726 = vmatpush1.msra.mxu0 0.0
      %1727 = vmatprep.subr.mxu0 0.0
      %1728 = vmatpush1.msra.mxu0 0.0
      %1729 = vmatprep.subr.mxu0 0.0
      %1730 = vmatpush1.msra.mxu0 0.0
      %1731 = vmatprep.subr.mxu0 0.0
      %1732 = vmatpush1.msra.mxu0 0.0
      %1733 = vmatprep.subr.mxu0 0.0
      %1734 = vmatpush1.msra.mxu0 0.0
      %1735 = vmatprep.subr.mxu0 0.0
      %1736 = vmatpush1.msra.mxu0 0.0
      %1737 = vmatprep.subr.mxu0 0.0
      %1738 = vmatpush1.msra.mxu0 0.0
      %1739 = vmatprep.subr.mxu0 0.0
      %1740 = vmatpush1.msra.mxu0 0.0
      %1741 = vmatprep.subr.mxu0 0.0
      %1742 = vmatpush1.msra.mxu0 0.0
      %1743 = vmatprep.subr.mxu0 0.0
      %1744 = vmatpush1.msra.mxu0 0.0
      %1745 = vmatprep.subr.mxu0 0.0
      %1746 = vmatpush1.msra.mxu0 0.0
      %1747 = vmatprep.subr.mxu0 0.0
      %1748 = vmatpush1.msra.mxu0 0.0
      %1749 = vmatprep.subr.mxu0 0.0
      %1750 = vmatpush1.msra.mxu0 0.0
      %1751 = vmatprep.subr.mxu0 0.0
      %1752 = vmatpush1.msra.mxu0 0.0
      %1753 = vmatprep.subr.mxu0 0.0
      %1754 = vmatpush1.msra.mxu0 0.0
      %1755 = vmatprep.subr.mxu0 0.0
      %1756 = vmatpush1.msra.mxu0 0.0
      %1757 = vmatprep.subr.mxu0 0.0
      %1758 = vmatpush1.msra.mxu0 0.0
      %1759 = vmatprep.subr.mxu0 0.0
      %1760 = vmatpush1.msra.mxu0 0.0
      %1761 = vmatprep.subr.mxu0 0.0
      %1762 = vmatpush1.msra.mxu0 0.0
      %1763 = vmatprep.subr.mxu0 0.0
      %1764 = vmatpush1.msra.mxu0 0.0
      %1765 = vmatprep.subr.mxu0 0.0
      %1766 = vmatpush1.msra.mxu0 0.0
      %1767 = vmatprep.subr.mxu0 0.0
      %1768 = vmatpush1.msra.mxu0 0.0
      %1769 = vmatprep.subr.mxu0 0.0
      %1770 = vmatpush1.msra.mxu0 0.0
      %1771 = vmatprep.subr.mxu0 0.0
      %1772 = vmatpush1.msra.mxu0 0.0
      %1773 = vmatprep.subr.mxu0 0.0
      %1774 = vmatpush1.msra.mxu0 0.0
      %1775 = vmatprep.subr.mxu0 0.0
      %1776 = vmatpush1.msra.mxu0 0.0
      %1777 = vmatprep.mubr.f32.mxu0 0.0
      %1778 = vmatmul.mubr.f32.gmra.mrb[0].mxu0 %v1705
      %v1779 = vpop.f32.mrb[0].mxu0
      %v1780 = vadd.f32 0.0, %v1779
      %v1781 = vpop.f32.mrb[0].mxu0
      %v1782 = vadd.f32 0.0, %v1781
      %1783 = vdwg.mxu0
      %v1784 = vadd.f32 %v1688, %v1780
      %v1785 = vadd.f32 %v1689, %v1782
      %1786 = vrot.lane.b32.xlu0 %v333, 83
      %v1787 = vpop.permute.xlu0 %1786
      %1788 = vrot.lane.b32.xlu0 %v362, 83
      %v1789 = vpop.permute.xlu0 %1788
      %1790 = vrot.lane.b32.xlu0 0.0, 83
      %v1791 = vpop.permute.xlu0 %1790
      %vm1792 = vcmask 678912
      %v1793 = vsel %vm1792, %v1787, %v1789
      %v1794 = vsel %vm1792, %v1789, %v1791
      %v1797 = vsel %vm1234, %v1793, 0.0
      %v1798 = vsel %vm1235, %v1794, 0.0
      %1799 = vrot.lane.b32.xlu0 %v1223, 104
      %v1800 = vpop.permute.xlu0 %1799
      %v1801 = vsel %vm402, %v1800, 0
      %v1804 = vsel %vm405, %v1797, 0
      %v1807 = vsel %vm405, %v1798, 0
      %1809 = vmatprep.subr.mxu0 %v1807
      %1810 = vmatpush1.msra.mxu0 %v1804
      %1811 = vmatprep.subr.mxu0 0.0
      %1812 = vmatpush1.msra.mxu0 0.0
      %1813 = vmatprep.subr.mxu0 0.0
      %1814 = vmatpush1.msra.mxu0 0.0
      %1815 = vmatprep.subr.mxu0 0.0
      %1816 = vmatpush1.msra.mxu0 0.0
      %1817 = vmatprep.subr.mxu0 0.0
      %1818 = vmatpush1.msra.mxu0 0.0
      %1819 = vmatprep.subr.mxu0 0.0
      %1820 = vmatpush1.msra.mxu0 0.0
      %1821 = vmatprep.subr.mxu0 0.0
      %1822 = vmatpush1.msra.mxu0 0.0
      %1823 = vmatprep.subr.mxu0 0.0
      %1824 = vmatpush1.msra.mxu0 0.0
      %1825 = vmatprep.subr.mxu0 0.0
      %1826 = vmatpush1.msra.mxu0 0.0
      %1827 = vmatprep.subr.mxu0 0.0
      %1828 = vmatpush1.msra.mxu0 0.0
      %1829 = vmatprep.subr.mxu0 0.0
      %1830 = vmatpush1.msra.mxu0 0.0
      %1831 = vmatprep.subr.mxu0 0.0
      %1832 = vmatpush1.msra.mxu0 0.0
      %1833 = vmatprep.subr.mxu0 0.0
      %1834 = vmatpush1.msra.mxu0 0.0
      %1835 = vmatprep.subr.mxu0 0.0
      %1836 = vmatpush1.msra.mxu0 0.0
      %1837 = vmatprep.subr.mxu0 0.0
      %1838 = vmatpush1.msra.mxu0 0.0
      %1839 = vmatprep.subr.mxu0 0.0
      %1840 = vmatpush1.msra.mxu0 0.0
      %1841 = vmatprep.subr.mxu0 0.0
      %1842 = vmatpush1.msra.mxu0 0.0
      %1843 = vmatprep.subr.mxu0 0.0
      %1844 = vmatpush1.msra.mxu0 0.0
      %1845 = vmatprep.subr.mxu0 0.0
      %1846 = vmatpush1.msra.mxu0 0.0
      %1847 = vmatprep.subr.mxu0 0.0
      %1848 = vmatpush1.msra.mxu0 0.0
      %1849 = vmatprep.subr.mxu0 0.0
      %1850 = vmatpush1.msra.mxu0 0.0
      %1851 = vmatprep.subr.mxu0 0.0
      %1852 = vmatpush1.msra.mxu0 0.0
      %1853 = vmatprep.subr.mxu0 0.0
      %1854 = vmatpush1.msra.mxu0 0.0
      %1855 = vmatprep.subr.mxu0 0.0
      %1856 = vmatpush1.msra.mxu0 0.0
      %1857 = vmatprep.subr.mxu0 0.0
      %1858 = vmatpush1.msra.mxu0 0.0
      %1859 = vmatprep.subr.mxu0 0.0
      %1860 = vmatpush1.msra.mxu0 0.0
      %1861 = vmatprep.subr.mxu0 0.0
      %1862 = vmatpush1.msra.mxu0 0.0
      %1863 = vmatprep.subr.mxu0 0.0
      %1864 = vmatpush1.msra.mxu0 0.0
      %1865 = vmatprep.subr.mxu0 0.0
      %1866 = vmatpush1.msra.mxu0 0.0
      %1867 = vmatprep.subr.mxu0 0.0
      %1868 = vmatpush1.msra.mxu0 0.0
      %1869 = vmatprep.subr.mxu0 0.0
      %1870 = vmatpush1.msra.mxu0 0.0
      %1871 = vmatprep.subr.mxu0 0.0
      %1872 = vmatpush1.msra.mxu0 0.0
      %1873 = vmatprep.mubr.f32.mxu0 0.0
      %1874 = vmatmul.mubr.f32.gmra.mrb[0].mxu0 %v1801
      %v1875 = vpop.f32.mrb[0].mxu0
      %v1876 = vadd.f32 0.0, %v1875
      %v1877 = vpop.f32.mrb[0].mxu0
      %v1878 = vadd.f32 0.0, %v1877
      %1879 = vdwg.mxu0
      %v1880 = vadd.f32 %v1784, %v1876
      %v1881 = vadd.f32 %v1785, %v1878
      %1882 = vrot.lane.b32.xlu0 %v1223, 100
      %v1883 = vpop.permute.xlu0 %1882
      %1884 = vrot.lane.b32.xlu0 %v333, 80
      %v1885 = vpop.permute.xlu0 %1884
      %1886 = vrot.lane.b32.xlu0 %v362, 80
      %v1887 = vpop.permute.xlu0 %1886
      %1888 = vrot.lane.b32.xlu0 0.0, 80
      %v1889 = vpop.permute.xlu0 %1888
      %vm1890 = vcmask 654336
      %v1891 = vsel %vm1890, %v1885, %v1887
      %v1892 = vsel %vm1890, %v1887, %v1889
      %v1893 = vsel %vm402, %v1883, 0
      %v1895 = vsel %vm405, %v1891, 0
      %v1897 = vsel %vm405, %v1892, 0
      %1899 = vmatprep.subr.mxu0 %v1897
      %1900 = vmatpush1.msra.mxu0 %v1895
      %1901 = vmatprep.subr.mxu0 0.0
      %1902 = vmatpush1.msra.mxu0 0.0
      %1903 = vmatprep.subr.mxu0 0.0
      %1904 = vmatpush1.msra.mxu0 0.0
      %1905 = vmatprep.subr.mxu0 0.0
      %1906 = vmatpush1.msra.mxu0 0.0
      %1907 = vmatprep.subr.mxu0 0.0
      %1908 = vmatpush1.msra.mxu0 0.0
      %1909 = vmatprep.subr.mxu0 0.0
      %1910 = vmatpush1.msra.mxu0 0.0
      %1911 = vmatprep.subr.mxu0 0.0
      %1912 = vmatpush1.msra.mxu0 0.0
      %1913 = vmatprep.subr.mxu0 0.0
      %1914 = vmatpush1.msra.mxu0 0.0
      %1915 = vmatprep.subr.mxu0 0.0
      %1916 = vmatpush1.msra.mxu0 0.0
      %1917 = vmatprep.subr.mxu0 0.0
      %1918 = vmatpush1.msra.mxu0 0.0
      %1919 = vmatprep.subr.mxu0 0.0
      %1920 = vmatpush1.msra.mxu0 0.0
      %1921 = vmatprep.subr.mxu0 0.0
      %1922 = vmatpush1.msra.mxu0 0.0
      %1923 = vmatprep.subr.mxu0 0.0
      %1924 = vmatpush1.msra.mxu0 0.0
      %1925 = vmatprep.subr.mxu0 0.0
      %1926 = vmatpush1.msra.mxu0 0.0
      %1927 = vmatprep.subr.mxu0 0.0
      %1928 = vmatpush1.msra.mxu0 0.0
      %1929 = vmatprep.subr.mxu0 0.0
      %1930 = vmatpush1.msra.mxu0 0.0
      %1931 = vmatprep.subr.mxu0 0.0
      %1932 = vmatpush1.msra.mxu0 0.0
      %1933 = vmatprep.subr.mxu0 0.0
      %1934 = vmatpush1.msra.mxu0 0.0
      %1935 = vmatprep.subr.mxu0 0.0
      %1936 = vmatpush1.msra.mxu0 0.0
      %1937 = vmatprep.subr.mxu0 0.0
      %1938 = vmatpush1.msra.mxu0 0.0
      %1939 = vmatprep.subr.mxu0 0.0
      %1940 = vmatpush1.msra.mxu0 0.0
      %1941 = vmatprep.subr.mxu0 0.0
      %1942 = vmatpush1.msra.mxu0 0.0
      %1943 = vmatprep.subr.mxu0 0.0
      %1944 = vmatpush1.msra.mxu0 0.0
      %1945 = vmatprep.subr.mxu0 0.0
      %1946 = vmatpush1.msra.mxu0 0.0
      %1947 = vmatprep.subr.mxu0 0.0
      %1948 = vmatpush1.msra.mxu0 0.0
      %1949 = vmatprep.subr.mxu0 0.0
      %1950 = vmatpush1.msra.mxu0 0.0
      %1951 = vmatprep.subr.mxu0 0.0
      %1952 = vmatpush1.msra.mxu0 0.0
      %1953 = vmatprep.subr.mxu0 0.0
      %1954 = vmatpush1.msra.mxu0 0.0
      %1955 = vmatprep.subr.mxu0 0.0
      %1956 = vmatpush1.msra.mxu0 0.0
      %1957 = vmatprep.subr.mxu0 0.0
      %1958 = vmatpush1.msra.mxu0 0.0
      %1959 = vmatprep.subr.mxu0 0.0
      %1960 = vmatpush1.msra.mxu0 0.0
      %1961 = vmatprep.subr.mxu0 0.0
      %1962 = vmatpush1.msra.mxu0 0.0
      %1963 = vmatprep.mubr.f32.mxu0 0.0
      %1964 = vmatmul.mubr.f32.gmra.mrb[0].mxu0 %v1893
      %v1965 = vpop.f32.mrb[0].mxu0
      %v1966 = vadd.f32 0.0, %v1965
      %v1967 = vpop.f32.mrb[0].mxu0
      %v1968 = vadd.f32 0.0, %v1967
      %1969 = vdwg.mxu0
      %v1970 = vadd.f32 %v1880, %v1966
      %v1971 = vadd.f32 %v1881, %v1968
      %1972 = vrot.lane.b32.xlu0 %v333, 77
      %v1973 = vpop.permute.xlu0 %1972
      %1974 = vrot.lane.b32.xlu0 %v362, 77
      %v1975 = vpop.permute.xlu0 %1974
      %1976 = vrot.lane.b32.xlu0 0.0, 77
      %v1977 = vpop.permute.xlu0 %1976
      %vm1978 = vcmask 629760
      %v1979 = vsel %vm1978, %v1973, %v1975
      %v1980 = vsel %vm1978, %v1975, %v1977
      %v1983 = vsel %vm1419, %v1979, 0.0
      %v1984 = vsel %vm1420, %v1980, 0.0
      %1985 = vrot.lane.b32.xlu0 %v1223, 96
      %v1986 = vpop.permute.xlu0 %1985
      %v1987 = vsel %vm402, %v1986, 0
      %v1990 = vsel %vm405, %v1983, 0
      %v1993 = vsel %vm405, %v1984, 0
      %1995 = vmatprep.subr.mxu0 %v1993
      %1996 = vmatpush1.msra.mxu0 %v1990
      %1997 = vmatprep.subr.mxu0 0.0
      %1998 = vmatpush1.msra.mxu0 0.0
      %1999 = vmatprep.subr.mxu0 0.0
      %2000 = vmatpush1.msra.mxu0 0.0
      %2001 = vmatprep.subr.mxu0 0.0
      %2002 = vmatpush1.msra.mxu0 0.0
      %2003 = vmatprep.subr.mxu0 0.0
      %2004 = vmatpush1.msra.mxu0 0.0
      %2005 = vmatprep.subr.mxu0 0.0
      %2006 = vmatpush1.msra.mxu0 0.0
      %2007 = vmatprep.subr.mxu0 0.0
      %2008 = vmatpush1.msra.mxu0 0.0
      %2009 = vmatprep.subr.mxu0 0.0
      %2010 = vmatpush1.msra.mxu0 0.0
      %2011 = vmatprep.subr.mxu0 0.0
      %2012 = vmatpush1.msra.mxu0 0.0
      %2013 = vmatprep.subr.mxu0 0.0
      %2014 = vmatpush1.msra.mxu0 0.0
      %2015 = vmatprep.subr.mxu0 0.0
      %2016 = vmatpush1.msra.mxu0 0.0
      %2017 = vmatprep.subr.mxu0 0.0
      %2018 = vmatpush1.msra.mxu0 0.0
      %2019 = vmatprep.subr.mxu0 0.0
      %2020 = vmatpush1.msra.mxu0 0.0
      %2021 = vmatprep.subr.mxu0 0.0
      %2022 = vmatpush1.msra.mxu0 0.0
      %2023 = vmatprep.subr.mxu0 0.0
      %2024 = vmatpush1.msra.mxu0 0.0
      %2025 = vmatprep.subr.mxu0 0.0
      %2026 = vmatpush1.msra.mxu0 0.0
      %2027 = vmatprep.subr.mxu0 0.0
      %2028 = vmatpush1.msra.mxu0 0.0
      %2029 = vmatprep.subr.mxu0 0.0
      %2030 = vmatpush1.msra.mxu0 0.0
      %2031 = vmatprep.subr.mxu0 0.0
      %2032 = vmatpush1.msra.mxu0 0.0
      %2033 = vmatprep.subr.mxu0 0.0
      %2034 = vmatpush1.msra.mxu0 0.0
      %2035 = vmatprep.subr.mxu0 0.0
      %2036 = vmatpush1.msra.mxu0 0.0
      %2037 = vmatprep.subr.mxu0 0.0
      %2038 = vmatpush1.msra.mxu0 0.0
      %2039 = vmatprep.subr.mxu0 0.0
      %2040 = vmatpush1.msra.mxu0 0.0
      %2041 = vmatprep.subr.mxu0 0.0
      %2042 = vmatpush1.msra.mxu0 0.0
      %2043 = vmatprep.subr.mxu0 0.0
      %2044 = vmatpush1.msra.mxu0 0.0
      %2045 = vmatprep.subr.mxu0 0.0
      %2046 = vmatpush1.msra.mxu0 0.0
      %2047 = vmatprep.subr.mxu0 0.0
      %2048 = vmatpush1.msra.mxu0 0.0
      %2049 = vmatprep.subr.mxu0 0.0
      %2050 = vmatpush1.msra.mxu0 0.0
      %2051 = vmatprep.subr.mxu0 0.0
      %2052 = vmatpush1.msra.mxu0 0.0
      %2053 = vmatprep.subr.mxu0 0.0
      %2054 = vmatpush1.msra.mxu0 0.0
      %2055 = vmatprep.subr.mxu0 0.0
      %2056 = vmatpush1.msra.mxu0 0.0
      %2057 = vmatprep.subr.mxu0 0.0
      %2058 = vmatpush1.msra.mxu0 0.0
      %2059 = vmatprep.mubr.f32.mxu0 0.0
      %2060 = vmatmul.mubr.f32.gmra.mrb[0].mxu0 %v1987
      %v2061 = vpop.f32.mrb[0].mxu0
      %v2062 = vadd.f32 0.0, %v2061
      %v2063 = vpop.f32.mrb[0].mxu0
      %v2064 = vadd.f32 0.0, %v2063
      %2065 = vdwg.mxu0
      %v2066 = vadd.f32 %v1970, %v2062
      %v2067 = vadd.f32 %v1971, %v2064
      %v2068 = vld [vmem:[%s6] sm:$0xf]
      %2070 = vset.pattern.permute.xlu0 0
      %2071 = vperm.xlu0 %2070, %v2068
      %v2072 = vpop.permute.xlu0 %2071
      %v2074 = vadd.f32 %v2066, %v2072
      %v2075 = vadd.f32 %v2067, %v2072
      %v2076 = vld [vmem:[%s4] sm:$0xf]
      %v2077 = vld [vmem:[%s8] sm:$0xf]
      %2079 = vset.pattern.permute.xlu0 0
      %2080 = vperm.xlu0 %2079, %v2077
      %v2081 = vpop.permute.xlu0 %2080
      %v2084 = vsel %vm402, %v2076, 0
      %v2087 = vsel %vm405, %v2074, 0
      %v2090 = vsel %vm405, %v2075, 0
      %2092 = vmatprep.subr.mxu0 %v2090
      %2093 = vmatpush1.msra.mxu0 %v2087
      %2094 = vmatprep.subr.mxu0 0.0
      %2095 = vmatpush1.msra.mxu0 0.0
      %2096 = vmatprep.subr.mxu0 0.0
      %2097 = vmatpush1.msra.mxu0 0.0
      %2098 = vmatprep.subr.mxu0 0.0
      %2099 = vmatpush1.msra.mxu0 0.0
      %2100 = vmatprep.subr.mxu0 0.0
      %2101 = vmatpush1.msra.mxu0 0.0
      %2102 = vmatprep.subr.mxu0 0.0
      %2103 = vmatpush1.msra.mxu0 0.0
      %2104 = vmatprep.subr.mxu0 0.0
      %2105 = vmatpush1.msra.mxu0 0.0
      %2106 = vmatprep.subr.mxu0 0.0
      %2107 = vmatpush1.msra.mxu0 0.0
      %2108 = vmatprep.subr.mxu0 0.0
      %2109 = vmatpush1.msra.mxu0 0.0
      %2110 = vmatprep.subr.mxu0 0.0
      %2111 = vmatpush1.msra.mxu0 0.0
      %2112 = vmatprep.subr.mxu0 0.0
      %2113 = vmatpush1.msra.mxu0 0.0
      %2114 = vmatprep.subr.mxu0 0.0
      %2115 = vmatpush1.msra.mxu0 0.0
      %2116 = vmatprep.subr.mxu0 0.0
      %2117 = vmatpush1.msra.mxu0 0.0
      %2118 = vmatprep.subr.mxu0 0.0
      %2119 = vmatpush1.msra.mxu0 0.0
      %2120 = vmatprep.subr.mxu0 0.0
      %2121 = vmatpush1.msra.mxu0 0.0
      %2122 = vmatprep.subr.mxu0 0.0
      %2123 = vmatpush1.msra.mxu0 0.0
      %2124 = vmatprep.subr.mxu0 0.0
      %2125 = vmatpush1.msra.mxu0 0.0
      %2126 = vmatprep.subr.mxu0 0.0
      %2127 = vmatpush1.msra.mxu0 0.0
      %2128 = vmatprep.subr.mxu0 0.0
      %2129 = vmatpush1.msra.mxu0 0.0
      %2130 = vmatprep.subr.mxu0 0.0
      %2131 = vmatpush1.msra.mxu0 0.0
      %2132 = vmatprep.subr.mxu0 0.0
      %2133 = vmatpush1.msra.mxu0 0.0
      %2134 = vmatprep.subr.mxu0 0.0
      %2135 = vmatpush1.msra.mxu0 0.0
      %2136 = vmatprep.subr.mxu0 0.0
      %2137 = vmatpush1.msra.mxu0 0.0
      %2138 = vmatprep.subr.mxu0 0.0
      %2139 = vmatpush1.msra.mxu0 0.0
      %2140 = vmatprep.subr.mxu0 0.0
      %2141 = vmatpush1.msra.mxu0 0.0
      %2142 = vmatprep.subr.mxu0 0.0
      %2143 = vmatpush1.msra.mxu0 0.0
      %2144 = vmatprep.subr.mxu0 0.0
      %2145 = vmatpush1.msra.mxu0 0.0
      %2146 = vmatprep.subr.mxu0 0.0
      %2147 = vmatpush1.msra.mxu0 0.0
      %2148 = vmatprep.subr.mxu0 0.0
      %2149 = vmatpush1.msra.mxu0 0.0
      %2150 = vmatprep.subr.mxu0 0.0
      %2151 = vmatpush1.msra.mxu0 0.0
      %2152 = vmatprep.subr.mxu0 0.0
      %2153 = vmatpush1.msra.mxu0 0.0
      %2154 = vmatprep.subr.mxu0 0.0
      %2155 = vmatpush1.msra.mxu0 0.0
      %2156 = vmatprep.mubr.f32.mxu0 0.0
      %2157 = vmatmul.mubr.f32.gmra.mrb[0].mxu0 %v2084
      %v2158 = vpop.f32.mrb[0].mxu0
      %v2159 = vadd.f32 %v2081, %v2158
      %v2160 = vpop.f32.mrb[0].mxu0
      %v2161 = vadd.f32 %v2081, %v2160
      %2162 = vdwg.mxu0
      %v2163 = vmax.f32 %v2159, 0.0
      %v2164 = vmax.f32 %v2161, 0.0
      %2167 = vrot.lane.b32.xlu0 %v1221, 51
      %v2168 = vpop.permute.xlu0 %2167
      %2169 = vrot.lane.b32.xlu0 %v1222, 51
      %v2170 = vpop.permute.xlu0 %2169
      %v2171 = vsel %vm1242, %v1237, %v2168
      %v2172 = vsel %vm1242, %v2168, %v2170
      %v2175 = vsel %vm1234, %v2171, 0.0
      %v2176 = vsel %vm1235, %v2172, 0.0
      %2177 = vrot.lane.b32.xlu0 %v1221, 48
      %v2178 = vpop.permute.xlu0 %2177
      %2179 = vrot.lane.b32.xlu0 %v1222, 48
      %v2180 = vpop.permute.xlu0 %2179
      %v2181 = vsel %vm1258, %v1253, %v2178
      %v2182 = vsel %vm1258, %v2178, %v2180
      %v2183 = vsel %vm405, %v2181, 0
      %v2185 = vsel %vm405, %v2182, 0
      %2187 = vmatprep.subr.mxu0 %v2185
      %2188 = vmatpush1.msra.mxu0 %v2183
      %2189 = vmatprep.subr.mxu0 0.0
      %2190 = vmatpush1.msra.mxu0 0.0
      %2191 = vmatprep.subr.mxu0 0.0
      %2192 = vmatpush1.msra.mxu0 0.0
      %2193 = vmatprep.subr.mxu0 0.0
      %2194 = vmatpush1.msra.mxu0 0.0
      %2195 = vmatprep.subr.mxu0 0.0
      %2196 = vmatpush1.msra.mxu0 0.0
      %2197 = vmatprep.subr.mxu0 0.0
      %2198 = vmatpush1.msra.mxu0 0.0
      %2199 = vmatprep.subr.mxu0 0.0
      %2200 = vmatpush1.msra.mxu0 0.0
      %2201 = vmatprep.subr.mxu0 0.0
      %2202 = vmatpush1.msra.mxu0 0.0
      %2203 = vmatprep.subr.mxu0 0.0
      %2204 = vmatpush1.msra.mxu0 0.0
      %2205 = vmatprep.subr.mxu0 0.0
      %2206 = vmatpush1.msra.mxu0 0.0
      %2207 = vmatprep.subr.mxu0 0.0
      %2208 = vmatpush1.msra.mxu0 0.0
      %2209 = vmatprep.subr.mxu0 0.0
      %2210 = vmatpush1.msra.mxu0 0.0
      %2211 = vmatprep.subr.mxu0 0.0
      %2212 = vmatpush1.msra.mxu0 0.0
      %2213 = vmatprep.subr.mxu0 0.0
      %2214 = vmatpush1.msra.mxu0 0.0
      %2215 = vmatprep.subr.mxu0 0.0
      %2216 = vmatpush1.msra.mxu0 0.0
      %2217 = vmatprep.subr.mxu0 0.0
      %2218 = vmatpush1.msra.mxu0 0.0
      %2219 = vmatprep.subr.mxu0 0.0
      %2220 = vmatpush1.msra.mxu0 0.0
      %2221 = vmatprep.subr.mxu0 0.0
      %2222 = vmatpush1.msra.mxu0 0.0
      %2223 = vmatprep.subr.mxu0 0.0
      %2224 = vmatpush1.msra.mxu0 0.0
      %2225 = vmatprep.subr.mxu0 0.0
      %2226 = vmatpush1.msra.mxu0 0.0
      %2227 = vmatprep.subr.mxu0 0.0
      %2228 = vmatpush1.msra.mxu0 0.0
      %2229 = vmatprep.subr.mxu0 0.0
      %2230 = vmatpush1.msra.mxu0 0.0
      %2231 = vmatprep.subr.mxu0 0.0
      %2232 = vmatpush1.msra.mxu0 0.0
      %2233 = vmatprep.subr.mxu0 0.0
      %2234 = vmatpush1.msra.mxu0 0.0
      %2235 = vmatprep.subr.mxu0 0.0
      %2236 = vmatpush1.msra.mxu0 0.0
      %2237 = vmatprep.subr.mxu0 0.0
      %2238 = vmatpush1.msra.mxu0 0.0
      %2239 = vmatprep.subr.mxu0 0.0
      %2240 = vmatpush1.msra.mxu0 0.0
      %2241 = vmatprep.subr.mxu0 0.0
      %2242 = vmatpush1.msra.mxu0 0.0
      %2243 = vmatprep.subr.mxu0 0.0
      %2244 = vmatpush1.msra.mxu0 0.0
      %2245 = vmatprep.subr.mxu0 0.0
      %2246 = vmatpush1.msra.mxu0 0.0
      %2247 = vmatprep.subr.mxu0 0.0
      %2248 = vmatpush1.msra.mxu0 0.0
      %2249 = vmatprep.subr.mxu0 0.0
      %2250 = vmatpush1.msra.mxu0 0.0
      %2251 = vmatprep.mubr.f32.mxu0 0.0
      %2252 = vmatmul.mubr.f32.gmra.mrb[0].mxu0 %v1261
      %v2253 = vpop.f32.mrb[0].mxu0
      %v2254 = vadd.f32 0.0, %v2253
      %v2255 = vpop.f32.mrb[0].mxu0
      %v2256 = vadd.f32 0.0, %v2255
      %2257 = vdwg.mxu0
      %v2259 = vsel %vm405, %v2175, 0
      %v2262 = vsel %vm405, %v2176, 0
      %2264 = vmatprep.subr.mxu0 %v2262
      %2265 = vmatpush1.msra.mxu0 %v2259
      %2266 = vmatprep.subr.mxu0 0.0
      %2267 = vmatpush1.msra.mxu0 0.0
      %2268 = vmatprep.subr.mxu0 0.0
      %2269 = vmatpush1.msra.mxu0 0.0
      %2270 = vmatprep.subr.mxu0 0.0
      %2271 = vmatpush1.msra.mxu0 0.0
      %2272 = vmatprep.subr.mxu0 0.0
      %2273 = vmatpush1.msra.mxu0 0.0
      %2274 = vmatprep.subr.mxu0 0.0
      %2275 = vmatpush1.msra.mxu0 0.0
      %2276 = vmatprep.subr.mxu0 0.0
      %2277 = vmatpush1.msra.mxu0 0.0
      %2278 = vmatprep.subr.mxu0 0.0
      %2279 = vmatpush1.msra.mxu0 0.0
      %2280 = vmatprep.subr.mxu0 0.0
      %2281 = vmatpush1.msra.mxu0 0.0
      %2282 = vmatprep.subr.mxu0 0.0
      %2283 = vmatpush1.msra.mxu0 0.0
      %2284 = vmatprep.subr.mxu0 0.0
      %2285 = vmatpush1.msra.mxu0 0.0
      %2286 = vmatprep.subr.mxu0 0.0
      %2287 = vmatpush1.msra.mxu0 0.0
      %2288 = vmatprep.subr.mxu0 0.0
      %2289 = vmatpush1.msra.mxu0 0.0
      %2290 = vmatprep.subr.mxu0 0.0
      %2291 = vmatpush1.msra.mxu0 0.0
      %2292 = vmatprep.subr.mxu0 0.0
      %2293 = vmatpush1.msra.mxu0 0.0
      %2294 = vmatprep.subr.mxu0 0.0
      %2295 = vmatpush1.msra.mxu0 0.0
      %2296 = vmatprep.subr.mxu0 0.0
      %2297 = vmatpush1.msra.mxu0 0.0
      %2298 = vmatprep.subr.mxu0 0.0
      %2299 = vmatpush1.msra.mxu0 0.0
      %2300 = vmatprep.subr.mxu0 0.0
      %2301 = vmatpush1.msra.mxu0 0.0
      %2302 = vmatprep.subr.mxu0 0.0
      %2303 = vmatpush1.msra.mxu0 0.0
      %2304 = vmatprep.subr.mxu0 0.0
      %2305 = vmatpush1.msra.mxu0 0.0
      %2306 = vmatprep.subr.mxu0 0.0
      %2307 = vmatpush1.msra.mxu0 0.0
      %2308 = vmatprep.subr.mxu0 0.0
      %2309 = vmatpush1.msra.mxu0 0.0
      %2310 = vmatprep.subr.mxu0 0.0
      %2311 = vmatpush1.msra.mxu0 0.0
      %2312 = vmatprep.subr.mxu0 0.0
      %2313 = vmatpush1.msra.mxu0 0.0
      %2314 = vmatprep.subr.mxu0 0.0
      %2315 = vmatpush1.msra.mxu0 0.0
      %2316 = vmatprep.subr.mxu0 0.0
      %2317 = vmatpush1.msra.mxu0 0.0
      %2318 = vmatprep.subr.mxu0 0.0
      %2319 = vmatpush1.msra.mxu0 0.0
      %2320 = vmatprep.subr.mxu0 0.0
      %2321 = vmatpush1.msra.mxu0 0.0
      %2322 = vmatprep.subr.mxu0 0.0
      %2323 = vmatpush1.msra.mxu0 0.0
      %2324 = vmatprep.subr.mxu0 0.0
      %2325 = vmatpush1.msra.mxu0 0.0
      %2326 = vmatprep.subr.mxu0 0.0
      %2327 = vmatpush1.msra.mxu0 0.0
      %2328 = vmatprep.mubr.f32.mxu0 0.0
      %2329 = vmatmul.mubr.f32.gmra.mrb[0].mxu0 %v1338
      %v2330 = vpop.f32.mrb[0].mxu0
      %v2331 = vadd.f32 %v2254, %v2330
      %v2332 = vpop.f32.mrb[0].mxu0
      %v2333 = vadd.f32 %v2256, %v2332
      %2334 = vdwg.mxu0
      %2335 = vrot.lane.b32.xlu0 %v1221, 45
      %v2336 = vpop.permute.xlu0 %2335
      %2337 = vrot.lane.b32.xlu0 %v1222, 45
      %v2338 = vpop.permute.xlu0 %2337
      %v2339 = vsel %vm1427, %v1422, %v2336
      %v2340 = vsel %vm1427, %v2336, %v2338
      %v2343 = vsel %vm1419, %v2339, 0.0
      %v2344 = vsel %vm1420, %v2340, 0.0
      %v2346 = vsel %vm405, %v2343, 0
      %v2349 = vsel %vm405, %v2344, 0
      %2351 = vmatprep.subr.mxu0 %v2349
      %2352 = vmatpush1.msra.mxu0 %v2346
      %2353 = vmatprep.subr.mxu0 0.0
      %2354 = vmatpush1.msra.mxu0 0.0
      %2355 = vmatprep.subr.mxu0 0.0
      %2356 = vmatpush1.msra.mxu0 0.0
      %2357 = vmatprep.subr.mxu0 0.0
      %2358 = vmatpush1.msra.mxu0 0.0
      %2359 = vmatprep.subr.mxu0 0.0
      %2360 = vmatpush1.msra.mxu0 0.0
      %2361 = vmatprep.subr.mxu0 0.0
      %2362 = vmatpush1.msra.mxu0 0.0
      %2363 = vmatprep.subr.mxu0 0.0
      %2364 = vmatpush1.msra.mxu0 0.0
      %2365 = vmatprep.subr.mxu0 0.0
      %2366 = vmatpush1.msra.mxu0 0.0
      %2367 = vmatprep.subr.mxu0 0.0
      %2368 = vmatpush1.msra.mxu0 0.0
      %2369 = vmatprep.subr.mxu0 0.0
      %2370 = vmatpush1.msra.mxu0 0.0
      %2371 = vmatprep.subr.mxu0 0.0
      %2372 = vmatpush1.msra.mxu0 0.0
      %2373 = vmatprep.subr.mxu0 0.0
      %2374 = vmatpush1.msra.mxu0 0.0
      %2375 = vmatprep.subr.mxu0 0.0
      %2376 = vmatpush1.msra.mxu0 0.0
      %2377 = vmatprep.subr.mxu0 0.0
      %2378 = vmatpush1.msra.mxu0 0.0
      %2379 = vmatprep.subr.mxu0 0.0
      %2380 = vmatpush1.msra.mxu0 0.0
      %2381 = vmatprep.subr.mxu0 0.0
      %2382 = vmatpush1.msra.mxu0 0.0
      %2383 = vmatprep.subr.mxu0 0.0
      %2384 = vmatpush1.msra.mxu0 0.0
      %2385 = vmatprep.subr.mxu0 0.0
      %2386 = vmatpush1.msra.mxu0 0.0
      %2387 = vmatprep.subr.mxu0 0.0
      %2388 = vmatpush1.msra.mxu0 0.0
      %2389 = vmatprep.subr.mxu0 0.0
      %2390 = vmatpush1.msra.mxu0 0.0
      %2391 = vmatprep.subr.mxu0 0.0
      %2392 = vmatpush1.msra.mxu0 0.0
      %2393 = vmatprep.subr.mxu0 0.0
      %2394 = vmatpush1.msra.mxu0 0.0
      %2395 = vmatprep.subr.mxu0 0.0
      %2396 = vmatpush1.msra.mxu0 0.0
      %2397 = vmatprep.subr.mxu0 0.0
      %2398 = vmatpush1.msra.mxu0 0.0
      %2399 = vmatprep.subr.mxu0 0.0
      %2400 = vmatpush1.msra.mxu0 0.0
      %2401 = vmatprep.subr.mxu0 0.0
      %2402 = vmatpush1.msra.mxu0 0.0
      %2403 = vmatprep.subr.mxu0 0.0
      %2404 = vmatpush1.msra.mxu0 0.0
      %2405 = vmatprep.subr.mxu0 0.0
      %2406 = vmatpush1.msra.mxu0 0.0
      %2407 = vmatprep.subr.mxu0 0.0
      %2408 = vmatpush1.msra.mxu0 0.0
      %2409 = vmatprep.subr.mxu0 0.0
      %2410 = vmatpush1.msra.mxu0 0.0
      %2411 = vmatprep.subr.mxu0 0.0
      %2412 = vmatpush1.msra.mxu0 0.0
      %2413 = vmatprep.subr.mxu0 0.0
      %2414 = vmatpush1.msra.mxu0 0.0
      %2415 = vmatprep.mubr.f32.mxu0 0.0
      %2416 = vmatmul.mubr.f32.gmra.mrb[0].mxu0 %v1436
      %v2417 = vpop.f32.mrb[0].mxu0
      %v2418 = vadd.f32 0.0, %v2417
      %v2419 = vpop.f32.mrb[0].mxu0
      %v2420 = vadd.f32 0.0, %v2419
      %2421 = vdwg.mxu0
      %v2422 = vadd.f32 %v2331, %v2418
      %v2423 = vadd.f32 %v2333, %v2420
      %2424 = vrot.lane.b32.xlu0 %v1221, 3
      %v2425 = vpop.permute.xlu0 %2424
      %2426 = vrot.lane.b32.xlu0 %v1222, 3
      %v2427 = vpop.permute.xlu0 %2426
      %v2428 = vsel %vm1523, %v1518, %v2425
      %v2429 = vsel %vm1523, %v2425, %v2427
      %v2432 = vsel %vm1234, %v2428, 0.0
      %v2433 = vsel %vm1235, %v2429, 0.0
      %v2435 = vsel %vm405, %v2432, 0
      %v2438 = vsel %vm405, %v2433, 0
      %2440 = vmatprep.subr.mxu0 %v2438
      %2441 = vmatpush1.msra.mxu0 %v2435
      %2442 = vmatprep.subr.mxu0 0.0
      %2443 = vmatpush1.msra.mxu0 0.0
      %2444 = vmatprep.subr.mxu0 0.0
      %2445 = vmatpush1.msra.mxu0 0.0
      %2446 = vmatprep.subr.mxu0 0.0
      %2447 = vmatpush1.msra.mxu0 0.0
      %2448 = vmatprep.subr.mxu0 0.0
      %2449 = vmatpush1.msra.mxu0 0.0
      %2450 = vmatprep.subr.mxu0 0.0
      %2451 = vmatpush1.msra.mxu0 0.0
      %2452 = vmatprep.subr.mxu0 0.0
      %2453 = vmatpush1.msra.mxu0 0.0
      %2454 = vmatprep.subr.mxu0 0.0
      %2455 = vmatpush1.msra.mxu0 0.0
      %2456 = vmatprep.subr.mxu0 0.0
      %2457 = vmatpush1.msra.mxu0 0.0
      %2458 = vmatprep.subr.mxu0 0.0
      %2459 = vmatpush1.msra.mxu0 0.0
      %2460 = vmatprep.subr.mxu0 0.0
      %2461 = vmatpush1.msra.mxu0 0.0
      %2462 = vmatprep.subr.mxu0 0.0
      %2463 = vmatpush1.msra.mxu0 0.0
      %2464 = vmatprep.subr.mxu0 0.0
      %2465 = vmatpush1.msra.mxu0 0.0
      %2466 = vmatprep.subr.mxu0 0.0
      %2467 = vmatpush1.msra.mxu0 0.0
      %2468 = vmatprep.subr.mxu0 0.0
      %2469 = vmatpush1.msra.mxu0 0.0
      %2470 = vmatprep.subr.mxu0 0.0
      %2471 = vmatpush1.msra.mxu0 0.0
      %2472 = vmatprep.subr.mxu0 0.0
      %2473 = vmatpush1.msra.mxu0 0.0
      %2474 = vmatprep.subr.mxu0 0.0
      %2475 = vmatpush1.msra.mxu0 0.0
      %2476 = vmatprep.subr.mxu0 0.0
      %2477 = vmatpush1.msra.mxu0 0.0
      %2478 = vmatprep.subr.mxu0 0.0
      %2479 = vmatpush1.msra.mxu0 0.0
      %2480 = vmatprep.subr.mxu0 0.0
      %2481 = vmatpush1.msra.mxu0 0.0
      %2482 = vmatprep.subr.mxu0 0.0
      %2483 = vmatpush1.msra.mxu0 0.0
      %2484 = vmatprep.subr.mxu0 0.0
      %2485 = vmatpush1.msra.mxu0 0.0
      %2486 = vmatprep.subr.mxu0 0.0
      %2487 = vmatpush1.msra.mxu0 0.0
      %2488 = vmatprep.subr.mxu0 0.0
      %2489 = vmatpush1.msra.mxu0 0.0
      %2490 = vmatprep.subr.mxu0 0.0
      %2491 = vmatpush1.msra.mxu0 0.0
      %2492 = vmatprep.subr.mxu0 0.0
      %2493 = vmatpush1.msra.mxu0 0.0
      %2494 = vmatprep.subr.mxu0 0.0
      %2495 = vmatpush1.msra.mxu0 0.0
      %2496 = vmatprep.subr.mxu0 0.0
      %2497 = vmatpush1.msra.mxu0 0.0
      %2498 = vmatprep.subr.mxu0 0.0
      %2499 = vmatpush1.msra.mxu0 0.0
      %2500 = vmatprep.subr.mxu0 0.0
      %2501 = vmatpush1.msra.mxu0 0.0
      %2502 = vmatprep.subr.mxu0 0.0
      %2503 = vmatpush1.msra.mxu0 0.0
      %2504 = vmatprep.mubr.f32.mxu0 0.0
      %2505 = vmatmul.mubr.f32.gmra.mrb[0].mxu0 %v1532
      %v2506 = vpop.f32.mrb[0].mxu0
      %v2507 = vadd.f32 0.0, %v2506
      %v2508 = vpop.f32.mrb[0].mxu0
      %v2509 = vadd.f32 0.0, %v2508
      %2510 = vdwg.mxu0
      %v2511 = vadd.f32 %v2422, %v2507
      %v2512 = vadd.f32 %v2423, %v2509
      %v2513 = vsel %vm405, %v1221, 0
      %v2515 = vsel %vm405, %v1222, 0
      %2517 = vmatprep.subr.mxu0 %v2515
      %2518 = vmatpush1.msra.mxu0 %v2513
      %2519 = vmatprep.subr.mxu0 0.0
      %2520 = vmatpush1.msra.mxu0 0.0
      %2521 = vmatprep.subr.mxu0 0.0
      %2522 = vmatpush1.msra.mxu0 0.0
      %2523 = vmatprep.subr.mxu0 0.0
      %2524 = vmatpush1.msra.mxu0 0.0
      %2525 = vmatprep.subr.mxu0 0.0
      %2526 = vmatpush1.msra.mxu0 0.0
      %2527 = vmatprep.subr.mxu0 0.0
      %2528 = vmatpush1.msra.mxu0 0.0
      %2529 = vmatprep.subr.mxu0 0.0
      %2530 = vmatpush1.msra.mxu0 0.0
      %2531 = vmatprep.subr.mxu0 0.0
      %2532 = vmatpush1.msra.mxu0 0.0
      %2533 = vmatprep.subr.mxu0 0.0
      %2534 = vmatpush1.msra.mxu0 0.0
      %2535 = vmatprep.subr.mxu0 0.0
      %2536 = vmatpush1.msra.mxu0 0.0
      %2537 = vmatprep.subr.mxu0 0.0
      %2538 = vmatpush1.msra.mxu0 0.0
      %2539 = vmatprep.subr.mxu0 0.0
      %2540 = vmatpush1.msra.mxu0 0.0
      %2541 = vmatprep.subr.mxu0 0.0
      %2542 = vmatpush1.msra.mxu0 0.0
      %2543 = vmatprep.subr.mxu0 0.0
      %2544 = vmatpush1.msra.mxu0 0.0
      %2545 = vmatprep.subr.mxu0 0.0
      %2546 = vmatpush1.msra.mxu0 0.0
      %2547 = vmatprep.subr.mxu0 0.0
      %2548 = vmatpush1.msra.mxu0 0.0
      %2549 = vmatprep.subr.mxu0 0.0
      %2550 = vmatpush1.msra.mxu0 0.0
      %2551 = vmatprep.subr.mxu0 0.0
      %2552 = vmatpush1.msra.mxu0 0.0
      %2553 = vmatprep.subr.mxu0 0.0
      %2554 = vmatpush1.msra.mxu0 0.0
      %2555 = vmatprep.subr.mxu0 0.0
      %2556 = vmatpush1.msra.mxu0 0.0
      %2557 = vmatprep.subr.mxu0 0.0
      %2558 = vmatpush1.msra.mxu0 0.0
      %2559 = vmatprep.subr.mxu0 0.0
      %2560 = vmatpush1.msra.mxu0 0.0
      %2561 = vmatprep.subr.mxu0 0.0
      %2562 = vmatpush1.msra.mxu0 0.0
      %2563 = vmatprep.subr.mxu0 0.0
      %2564 = vmatpush1.msra.mxu0 0.0
      %2565 = vmatprep.subr.mxu0 0.0
      %2566 = vmatpush1.msra.mxu0 0.0
      %2567 = vmatprep.subr.mxu0 0.0
      %2568 = vmatpush1.msra.mxu0 0.0
      %2569 = vmatprep.subr.mxu0 0.0
      %2570 = vmatpush1.msra.mxu0 0.0
      %2571 = vmatprep.subr.mxu0 0.0
      %2572 = vmatpush1.msra.mxu0 0.0
      %2573 = vmatprep.subr.mxu0 0.0
      %2574 = vmatpush1.msra.mxu0 0.0
      %2575 = vmatprep.subr.mxu0 0.0
      %2576 = vmatpush1.msra.mxu0 0.0
      %2577 = vmatprep.subr.mxu0 0.0
      %2578 = vmatpush1.msra.mxu0 0.0
      %2579 = vmatprep.subr.mxu0 0.0
      %2580 = vmatpush1.msra.mxu0 0.0
      %2581 = vmatprep.mubr.f32.mxu0 0.0
      %2582 = vmatmul.mubr.f32.gmra.mrb[0].mxu0 %v1615
      %v2583 = vpop.f32.mrb[0].mxu0
      %v2584 = vadd.f32 0.0, %v2583
      %v2585 = vpop.f32.mrb[0].mxu0
      %v2586 = vadd.f32 0.0, %v2585
      %2587 = vdwg.mxu0
      %v2588 = vadd.f32 %v2511, %v2584
      %v2589 = vadd.f32 %v2512, %v2586
      %2590 = vrot.lane.b32.xlu0 %v1221, 125
      %v2591 = vpop.permute.xlu0 %2590
      %2592 = vrot.lane.b32.xlu0 %v1222, 125
      %v2593 = vpop.permute.xlu0 %2592
      %v2594 = vsel %vm1696, %v2591, %v2593
      %v2595 = vsel %vm1696, %v2593, %v1695
      %v2598 = vsel %vm1419, %v2594, 0.0
      %v2599 = vsel %vm1420, %v2595, 0.0
      %v2601 = vsel %vm405, %v2598, 0
      %v2604 = vsel %vm405, %v2599, 0
      %2606 = vmatprep.subr.mxu0 %v2604
      %2607 = vmatpush1.msra.mxu0 %v2601
      %2608 = vmatprep.subr.mxu0 0.0
      %2609 = vmatpush1.msra.mxu0 0.0
      %2610 = vmatprep.subr.mxu0 0.0
      %2611 = vmatpush1.msra.mxu0 0.0
      %2612 = vmatprep.subr.mxu0 0.0
      %2613 = vmatpush1.msra.mxu0 0.0
      %2614 = vmatprep.subr.mxu0 0.0
      %2615 = vmatpush1.msra.mxu0 0.0
      %2616 = vmatprep.subr.mxu0 0.0
      %2617 = vmatpush1.msra.mxu0 0.0
      %2618 = vmatprep.subr.mxu0 0.0
      %2619 = vmatpush1.msra.mxu0 0.0
      %2620 = vmatprep.subr.mxu0 0.0
      %2621 = vmatpush1.msra.mxu0 0.0
      %2622 = vmatprep.subr.mxu0 0.0
      %2623 = vmatpush1.msra.mxu0 0.0
      %2624 = vmatprep.subr.mxu0 0.0
      %2625 = vmatpush1.msra.mxu0 0.0
      %2626 = vmatprep.subr.mxu0 0.0
      %2627 = vmatpush1.msra.mxu0 0.0
      %2628 = vmatprep.subr.mxu0 0.0
      %2629 = vmatpush1.msra.mxu0 0.0
      %2630 = vmatprep.subr.mxu0 0.0
      %2631 = vmatpush1.msra.mxu0 0.0
      %2632 = vmatprep.subr.mxu0 0.0
      %2633 = vmatpush1.msra.mxu0 0.0
      %2634 = vmatprep.subr.mxu0 0.0
      %2635 = vmatpush1.msra.mxu0 0.0
      %2636 = vmatprep.subr.mxu0 0.0
      %2637 = vmatpush1.msra.mxu0 0.0
      %2638 = vmatprep.subr.mxu0 0.0
      %2639 = vmatpush1.msra.mxu0 0.0
      %2640 = vmatprep.subr.mxu0 0.0
      %2641 = vmatpush1.msra.mxu0 0.0
      %2642 = vmatprep.subr.mxu0 0.0
      %2643 = vmatpush1.msra.mxu0 0.0
      %2644 = vmatprep.subr.mxu0 0.0
      %2645 = vmatpush1.msra.mxu0 0.0
      %2646 = vmatprep.subr.mxu0 0.0
      %2647 = vmatpush1.msra.mxu0 0.0
      %2648 = vmatprep.subr.mxu0 0.0
      %2649 = vmatpush1.msra.mxu0 0.0
      %2650 = vmatprep.subr.mxu0 0.0
      %2651 = vmatpush1.msra.mxu0 0.0
      %2652 = vmatprep.subr.mxu0 0.0
      %2653 = vmatpush1.msra.mxu0 0.0
      %2654 = vmatprep.subr.mxu0 0.0
      %2655 = vmatpush1.msra.mxu0 0.0
      %2656 = vmatprep.subr.mxu0 0.0
      %2657 = vmatpush1.msra.mxu0 0.0
      %2658 = vmatprep.subr.mxu0 0.0
      %2659 = vmatpush1.msra.mxu0 0.0
      %2660 = vmatprep.subr.mxu0 0.0
      %2661 = vmatpush1.msra.mxu0 0.0
      %2662 = vmatprep.subr.mxu0 0.0
      %2663 = vmatpush1.msra.mxu0 0.0
      %2664 = vmatprep.subr.mxu0 0.0
      %2665 = vmatpush1.msra.mxu0 0.0
      %2666 = vmatprep.subr.mxu0 0.0
      %2667 = vmatpush1.msra.mxu0 0.0
      %2668 = vmatprep.subr.mxu0 0.0
      %2669 = vmatpush1.msra.mxu0 0.0
      %2670 = vmatprep.mubr.f32.mxu0 0.0
      %2671 = vmatmul.mubr.f32.gmra.mrb[0].mxu0 %v1705
      %v2672 = vpop.f32.mrb[0].mxu0
      %v2673 = vadd.f32 0.0, %v2672
      %v2674 = vpop.f32.mrb[0].mxu0
      %v2675 = vadd.f32 0.0, %v2674
      %2676 = vdwg.mxu0
      %v2677 = vadd.f32 %v2588, %v2673
      %v2678 = vadd.f32 %v2589, %v2675
      %2679 = vrot.lane.b32.xlu0 %v1221, 83
      %v2680 = vpop.permute.xlu0 %2679
      %2681 = vrot.lane.b32.xlu0 %v1222, 83
      %v2682 = vpop.permute.xlu0 %2681
      %v2683 = vsel %vm1792, %v2680, %v2682
      %v2684 = vsel %vm1792, %v2682, %v1791
      %v2687 = vsel %vm1234, %v2683, 0.0
      %v2688 = vsel %vm1235, %v2684, 0.0
      %v2690 = vsel %vm405, %v2687, 0
      %v2693 = vsel %vm405, %v2688, 0
      %2695 = vmatprep.subr.mxu0 %v2693
      %2696 = vmatpush1.msra.mxu0 %v2690
      %2697 = vmatprep.subr.mxu0 0.0
      %2698 = vmatpush1.msra.mxu0 0.0
      %2699 = vmatprep.subr.mxu0 0.0
      %2700 = vmatpush1.msra.mxu0 0.0
      %2701 = vmatprep.subr.mxu0 0.0
      %2702 = vmatpush1.msra.mxu0 0.0
      %2703 = vmatprep.subr.mxu0 0.0
      %2704 = vmatpush1.msra.mxu0 0.0
      %2705 = vmatprep.subr.mxu0 0.0
      %2706 = vmatpush1.msra.mxu0 0.0
      %2707 = vmatprep.subr.mxu0 0.0
      %2708 = vmatpush1.msra.mxu0 0.0
      %2709 = vmatprep.subr.mxu0 0.0
      %2710 = vmatpush1.msra.mxu0 0.0
      %2711 = vmatprep.subr.mxu0 0.0
      %2712 = vmatpush1.msra.mxu0 0.0
      %2713 = vmatprep.subr.mxu0 0.0
      %2714 = vmatpush1.msra.mxu0 0.0
      %2715 = vmatprep.subr.mxu0 0.0
      %2716 = vmatpush1.msra.mxu0 0.0
      %2717 = vmatprep.subr.mxu0 0.0
      %2718 = vmatpush1.msra.mxu0 0.0
      %2719 = vmatprep.subr.mxu0 0.0
      %2720 = vmatpush1.msra.mxu0 0.0
      %2721 = vmatprep.subr.mxu0 0.0
      %2722 = vmatpush1.msra.mxu0 0.0
      %2723 = vmatprep.subr.mxu0 0.0
      %2724 = vmatpush1.msra.mxu0 0.0
      %2725 = vmatprep.subr.mxu0 0.0
      %2726 = vmatpush1.msra.mxu0 0.0
      %2727 = vmatprep.subr.mxu0 0.0
      %2728 = vmatpush1.msra.mxu0 0.0
      %2729 = vmatprep.subr.mxu0 0.0
      %2730 = vmatpush1.msra.mxu0 0.0
      %2731 = vmatprep.subr.mxu0 0.0
      %2732 = vmatpush1.msra.mxu0 0.0
      %2733 = vmatprep.subr.mxu0 0.0
      %2734 = vmatpush1.msra.mxu0 0.0
      %2735 = vmatprep.subr.mxu0 0.0
      %2736 = vmatpush1.msra.mxu0 0.0
      %2737 = vmatprep.subr.mxu0 0.0
      %2738 = vmatpush1.msra.mxu0 0.0
      %2739 = vmatprep.subr.mxu0 0.0
      %2740 = vmatpush1.msra.mxu0 0.0
      %2741 = vmatprep.subr.mxu0 0.0
      %2742 = vmatpush1.msra.mxu0 0.0
      %2743 = vmatprep.subr.mxu0 0.0
      %2744 = vmatpush1.msra.mxu0 0.0
      %2745 = vmatprep.subr.mxu0 0.0
      %2746 = vmatpush1.msra.mxu0 0.0
      %2747 = vmatprep.subr.mxu0 0.0
      %2748 = vmatpush1.msra.mxu0 0.0
      %2749 = vmatprep.subr.mxu0 0.0
      %2750 = vmatpush1.msra.mxu0 0.0
      %2751 = vmatprep.subr.mxu0 0.0
      %2752 = vmatpush1.msra.mxu0 0.0
      %2753 = vmatprep.subr.mxu0 0.0
      %2754 = vmatpush1.msra.mxu0 0.0
      %2755 = vmatprep.subr.mxu0 0.0
      %2756 = vmatpush1.msra.mxu0 0.0
      %2757 = vmatprep.subr.mxu0 0.0
      %2758 = vmatpush1.msra.mxu0 0.0
      %2759 = vmatprep.mubr.f32.mxu0 0.0
      %2760 = vmatmul.mubr.f32.gmra.mrb[0].mxu0 %v1801
      %v2761 = vpop.f32.mrb[0].mxu0
      %v2762 = vadd.f32 0.0, %v2761
      %v2763 = vpop.f32.mrb[0].mxu0
      %v2764 = vadd.f32 0.0, %v2763
      %2765 = vdwg.mxu0
      %v2766 = vadd.f32 %v2677, %v2762
      %v2767 = vadd.f32 %v2678, %v2764
      %2768 = vrot.lane.b32.xlu0 %v1221, 80
      %v2769 = vpop.permute.xlu0 %2768
      %2770 = vrot.lane.b32.xlu0 %v1222, 80
      %v2771 = vpop.permute.xlu0 %2770
      %v2772 = vsel %vm1890, %v2769, %v2771
      %v2773 = vsel %vm1890, %v2771, %v1889
      %v2774 = vsel %vm405, %v2772, 0
      %v2776 = vsel %vm405, %v2773, 0
      %2778 = vmatprep.subr.mxu0 %v2776
      %2779 = vmatpush1.msra.mxu0 %v2774
      %2780 = vmatprep.subr.mxu0 0.0
      %2781 = vmatpush1.msra.mxu0 0.0
      %2782 = vmatprep.subr.mxu0 0.0
      %2783 = vmatpush1.msra.mxu0 0.0
      %2784 = vmatprep.subr.mxu0 0.0
      %2785 = vmatpush1.msra.mxu0 0.0
      %2786 = vmatprep.subr.mxu0 0.0
      %2787 = vmatpush1.msra.mxu0 0.0
      %2788 = vmatprep.subr.mxu0 0.0
      %2789 = vmatpush1.msra.mxu0 0.0
      %2790 = vmatprep.subr.mxu0 0.0
      %2791 = vmatpush1.msra.mxu0 0.0
      %2792 = vmatprep.subr.mxu0 0.0
      %2793 = vmatpush1.msra.mxu0 0.0
      %2794 = vmatprep.subr.mxu0 0.0
      %2795 = vmatpush1.msra.mxu0 0.0
      %2796 = vmatprep.subr.mxu0 0.0
      %2797 = vmatpush1.msra.mxu0 0.0
      %2798 = vmatprep.subr.mxu0 0.0
      %2799 = vmatpush1.msra.mxu0 0.0
      %2800 = vmatprep.subr.mxu0 0.0
      %2801 = vmatpush1.msra.mxu0 0.0
      %2802 = vmatprep.subr.mxu0 0.0
      %2803 = vmatpush1.msra.mxu0 0.0
      %2804 = vmatprep.subr.mxu0 0.0
      %2805 = vmatpush1.msra.mxu0 0.0
      %2806 = vmatprep.subr.mxu0 0.0
      %2807 = vmatpush1.msra.mxu0 0.0
      %2808 = vmatprep.subr.mxu0 0.0
      %2809 = vmatpush1.msra.mxu0 0.0
      %2810 = vmatprep.subr.mxu0 0.0
      %2811 = vmatpush1.msra.mxu0 0.0
      %2812 = vmatprep.subr.mxu0 0.0
      %2813 = vmatpush1.msra.mxu0 0.0
      %2814 = vmatprep.subr.mxu0 0.0
      %2815 = vmatpush1.msra.mxu0 0.0
      %2816 = vmatprep.subr.mxu0 0.0
      %2817 = vmatpush1.msra.mxu0 0.0
      %2818 = vmatprep.subr.mxu0 0.0
      %2819 = vmatpush1.msra.mxu0 0.0
      %2820 = vmatprep.subr.mxu0 0.0
      %2821 = vmatpush1.msra.mxu0 0.0
      %2822 = vmatprep.subr.mxu0 0.0
      %2823 = vmatpush1.msra.mxu0 0.0
      %2824 = vmatprep.subr.mxu0 0.0
      %2825 = vmatpush1.msra.mxu0 0.0
      %2826 = vmatprep.subr.mxu0 0.0
      %2827 = vmatpush1.msra.mxu0 0.0
      %2828 = vmatprep.subr.mxu0 0.0
      %2829 = vmatpush1.msra.mxu0 0.0
      %2830 = vmatprep.subr.mxu0 0.0
      %2831 = vmatpush1.msra.mxu0 0.0
      %2832 = vmatprep.subr.mxu0 0.0
      %2833 = vmatpush1.msra.mxu0 0.0
      %2834 = vmatprep.subr.mxu0 0.0
      %2835 = vmatpush1.msra.mxu0 0.0
      %2836 = vmatprep.subr.mxu0 0.0
      %2837 = vmatpush1.msra.mxu0 0.0
      %2838 = vmatprep.subr.mxu0 0.0
      %2839 = vmatpush1.msra.mxu0 0.0
      %2840 = vmatprep.subr.mxu0 0.0
      %2841 = vmatpush1.msra.mxu0 0.0
      %2842 = vmatprep.mubr.f32.mxu0 0.0
      %2843 = vmatmul.mubr.f32.gmra.mrb[0].mxu0 %v1893
      %v2844 = vpop.f32.mrb[0].mxu0
      %v2845 = vadd.f32 0.0, %v2844
      %v2846 = vpop.f32.mrb[0].mxu0
      %v2847 = vadd.f32 0.0, %v2846
      %2848 = vdwg.mxu0
      %v2849 = vadd.f32 %v2766, %v2845
      %v2850 = vadd.f32 %v2767, %v2847
      %2851 = vrot.lane.b32.xlu0 %v1221, 77
      %v2852 = vpop.permute.xlu0 %2851
      %2853 = vrot.lane.b32.xlu0 %v1222, 77
      %v2854 = vpop.permute.xlu0 %2853
      %v2855 = vsel %vm1978, %v2852, %v2854
      %v2856 = vsel %vm1978, %v2854, %v1977
      %v2859 = vsel %vm1419, %v2855, 0.0
      %v2860 = vsel %vm1420, %v2856, 0.0
      %v2862 = vsel %vm405, %v2859, 0
      %v2865 = vsel %vm405, %v2860, 0
      %2867 = vmatprep.subr.mxu0 %v2865
      %2868 = vmatpush1.msra.mxu0 %v2862
      %2869 = vmatprep.subr.mxu0 0.0
      %2870 = vmatpush1.msra.mxu0 0.0
      %2871 = vmatprep.subr.mxu0 0.0
      %2872 = vmatpush1.msra.mxu0 0.0
      %2873 = vmatprep.subr.mxu0 0.0
      %2874 = vmatpush1.msra.mxu0 0.0
      %2875 = vmatprep.subr.mxu0 0.0
      %2876 = vmatpush1.msra.mxu0 0.0
      %2877 = vmatprep.subr.mxu0 0.0
      %2878 = vmatpush1.msra.mxu0 0.0
      %2879 = vmatprep.subr.mxu0 0.0
      %2880 = vmatpush1.msra.mxu0 0.0
      %2881 = vmatprep.subr.mxu0 0.0
      %2882 = vmatpush1.msra.mxu0 0.0
      %2883 = vmatprep.subr.mxu0 0.0
      %2884 = vmatpush1.msra.mxu0 0.0
      %2885 = vmatprep.subr.mxu0 0.0
      %2886 = vmatpush1.msra.mxu0 0.0
      %2887 = vmatprep.subr.mxu0 0.0
      %2888 = vmatpush1.msra.mxu0 0.0
      %2889 = vmatprep.subr.mxu0 0.0
      %2890 = vmatpush1.msra.mxu0 0.0
      %2891 = vmatprep.subr.mxu0 0.0
      %2892 = vmatpush1.msra.mxu0 0.0
      %2893 = vmatprep.subr.mxu0 0.0
      %2894 = vmatpush1.msra.mxu0 0.0
      %2895 = vmatprep.subr.mxu0 0.0
      %2896 = vmatpush1.msra.mxu0 0.0
      %2897 = vmatprep.subr.mxu0 0.0
      %2898 = vmatpush1.msra.mxu0 0.0
      %2899 = vmatprep.subr.mxu0 0.0
      %2900 = vmatpush1.msra.mxu0 0.0
      %2901 = vmatprep.subr.mxu0 0.0
      %2902 = vmatpush1.msra.mxu0 0.0
      %2903 = vmatprep.subr.mxu0 0.0
      %2904 = vmatpush1.msra.mxu0 0.0
      %2905 = vmatprep.subr.mxu0 0.0
      %2906 = vmatpush1.msra.mxu0 0.0
      %2907 = vmatprep.subr.mxu0 0.0
      %2908 = vmatpush1.msra.mxu0 0.0
      %2909 = vmatprep.subr.mxu0 0.0
      %2910 = vmatpush1.msra.mxu0 0.0
      %2911 = vmatprep.subr.mxu0 0.0
      %2912 = vmatpush1.msra.mxu0 0.0
      %2913 = vmatprep.subr.mxu0 0.0
      %2914 = vmatpush1.msra.mxu0 0.0
      %2915 = vmatprep.subr.mxu0 0.0
      %2916 = vmatpush1.msra.mxu0 0.0
      %2917 = vmatprep.subr.mxu0 0.0
      %2918 = vmatpush1.msra.mxu0 0.0
      %2919 = vmatprep.subr.mxu0 0.0
      %2920 = vmatpush1.msra.mxu0 0.0
      %2921 = vmatprep.subr.mxu0 0.0
      %2922 = vmatpush1.msra.mxu0 0.0
      %2923 = vmatprep.subr.mxu0 0.0
      %2924 = vmatpush1.msra.mxu0 0.0
      %2925 = vmatprep.subr.mxu0 0.0
      %2926 = vmatpush1.msra.mxu0 0.0
      %2927 = vmatprep.subr.mxu0 0.0
      %2928 = vmatpush1.msra.mxu0 0.0
      %2929 = vmatprep.subr.mxu0 0.0
      %2930 = vmatpush1.msra.mxu0 0.0
      %2931 = vmatprep.mubr.f32.mxu0 0.0
      %2932 = vmatmul.mubr.f32.gmra.mrb[0].mxu0 %v1987
      %v2933 = vpop.f32.mrb[0].mxu0
      %v2934 = vadd.f32 0.0, %v2933
      %v2935 = vpop.f32.mrb[0].mxu0
      %v2936 = vadd.f32 0.0, %v2935
      %2937 = vdwg.mxu0
      %v2938 = vadd.f32 %v2849, %v2934
      %v2939 = vadd.f32 %v2850, %v2936
      %v2940 = vadd.f32 %v2938, %v2072
      %v2941 = vadd.f32 %v2939, %v2072
      %v2943 = vsel %vm405, %v2940, 0
      %v2946 = vsel %vm405, %v2941, 0
      %2948 = vmatprep.subr.mxu0 %v2946
      %2949 = vmatpush1.msra.mxu0 %v2943
      %2950 = vmatprep.subr.mxu0 0.0
      %2951 = vmatpush1.msra.mxu0 0.0
      %2952 = vmatprep.subr.mxu0 0.0
      %2953 = vmatpush1.msra.mxu0 0.0
      %2954 = vmatprep.subr.mxu0 0.0
      %2955 = vmatpush1.msra.mxu0 0.0
      %2956 = vmatprep.subr.mxu0 0.0
      %2957 = vmatpush1.msra.mxu0 0.0
      %2958 = vmatprep.subr.mxu0 0.0
      %2959 = vmatpush1.msra.mxu0 0.0
      %2960 = vmatprep.subr.mxu0 0.0
      %2961 = vmatpush1.msra.mxu0 0.0
      %2962 = vmatprep.subr.mxu0 0.0
      %2963 = vmatpush1.msra.mxu0 0.0
      %2964 = vmatprep.subr.mxu0 0.0
      %2965 = vmatpush1.msra.mxu0 0.0
      %2966 = vmatprep.subr.mxu0 0.0
      %2967 = vmatpush1.msra.mxu0 0.0
      %2968 = vmatprep.subr.mxu0 0.0
      %2969 = vmatpush1.msra.mxu0 0.0
      %2970 = vmatprep.subr.mxu0 0.0
      %2971 = vmatpush1.msra.mxu0 0.0
      %2972 = vmatprep.subr.mxu0 0.0
      %2973 = vmatpush1.msra.mxu0 0.0
      %2974 = vmatprep.subr.mxu0 0.0
      %2975 = vmatpush1.msra.mxu0 0.0
      %2976 = vmatprep.subr.mxu0 0.0
      %2977 = vmatpush1.msra.mxu0 0.0
      %2978 = vmatprep.subr.mxu0 0.0
      %2979 = vmatpush1.msra.mxu0 0.0
      %2980 = vmatprep.subr.mxu0 0.0
      %2981 = vmatpush1.msra.mxu0 0.0
      %2982 = vmatprep.subr.mxu0 0.0
      %2983 = vmatpush1.msra.mxu0 0.0
      %2984 = vmatprep.subr.mxu0 0.0
      %2985 = vmatpush1.msra.mxu0 0.0
      %2986 = vmatprep.subr.mxu0 0.0
      %2987 = vmatpush1.msra.mxu0 0.0
      %2988 = vmatprep.subr.mxu0 0.0
      %2989 = vmatpush1.msra.mxu0 0.0
      %2990 = vmatprep.subr.mxu0 0.0
      %2991 = vmatpush1.msra.mxu0 0.0
      %2992 = vmatprep.subr.mxu0 0.0
      %2993 = vmatpush1.msra.mxu0 0.0
      %2994 = vmatprep.subr.mxu0 0.0
      %2995 = vmatpush1.msra.mxu0 0.0
      %2996 = vmatprep.subr.mxu0 0.0
      %2997 = vmatpush1.msra.mxu0 0.0
      %2998 = vmatprep.subr.mxu0 0.0
      %2999 = vmatpush1.msra.mxu0 0.0
      %3000 = vmatprep.subr.mxu0 0.0
      %3001 = vmatpush1.msra.mxu0 0.0
      %3002 = vmatprep.subr.mxu0 0.0
      %3003 = vmatpush1.msra.mxu0 0.0
      %3004 = vmatprep.subr.mxu0 0.0
      %3005 = vmatpush1.msra.mxu0 0.0
      %3006 = vmatprep.subr.mxu0 0.0
      %3007 = vmatpush1.msra.mxu0 0.0
      %3008 = vmatprep.subr.mxu0 0.0
      %3009 = vmatpush1.msra.mxu0 0.0
      %3010 = vmatprep.subr.mxu0 0.0
      %3011 = vmatpush1.msra.mxu0 0.0
      %3012 = vmatprep.mubr.f32.mxu0 0.0
      %3013 = vmatmul.mubr.f32.gmra.mrb[0].mxu0 %v2084
      %v3014 = vpop.f32.mrb[0].mxu0
      %v3015 = vadd.f32 %v2081, %v3014
      %v3016 = vpop.f32.mrb[0].mxu0
      %v3017 = vadd.f32 %v2081, %v3016
      %3018 = vdwg.mxu0
      %v3019 = vmax.f32 %v3015, 0.0
      %v3020 = vmax.f32 %v3017, 0.0
      %v3021 = vld [vmem:[%s3] sm:$0xf]
      %v3022 = vsub.s32 %v359, 7
      %v3023 = vsub.s32 %v360, 7
      %vm3024 = vcmp.ge.s32.totalorder %v3022, 0
      %vm3025 = vcmp.ge.s32.totalorder %v3023, 0
      %v3026 = vadd.s32 %v359, 7
      %v3027 = vadd.s32 %v360, 7
      %vm3028 = vcmp.lt.s32.totalorder %v3026, 16
      %vm3029 = vcmp.lt.s32.totalorder %v3027, 16
      %v3030 = vsel %vm3024, 1, 0
      %v3031 = vsel %vm3025, 1, 0
      %vm3032 = vcmp.eq.s32.totalorder %v3030, 1
      %vm3033 = vcmp.eq.s32.totalorder %v3031, 1
      %3034 = vrot.lane.b32.xlu0 0.0, 119
      %v3035 = vpop.permute.xlu0 %3034
      %3036 = vrot.lane.b32.xlu0 %v2940, 119
      %v3037 = vpop.permute.xlu0 %3036
      %3038 = vrot.lane.b32.xlu0 %v2941, 119
      %v3039 = vpop.permute.xlu0 %3038
      %vm3040 = vcmask 973824
      %v3041 = vsel %vm3040, %v3035, %v3037
      %v3042 = vsel %vm3040, %v3037, %v3039
      %v3045 = vsel %vm3032, %v3041, 0.0
      %v3046 = vsel %vm3033, %v3042, 0.0
      %3048 = vrot.lane.b32.xlu0 %v3021, 124
      %v3049 = vpop.permute.xlu0 %3048
      %3050 = vrot.lane.b32.xlu0 %v2940, 112
      %v3051 = vpop.permute.xlu0 %3050
      %3052 = vrot.lane.b32.xlu0 %v2941, 112
      %v3053 = vpop.permute.xlu0 %3052
      %v3054 = vsel %vm1037, %v1036, %v3051
      %v3055 = vsel %vm1037, %v3051, %v3053
      %v3056 = vsel %vm402, %v3049, 0
      %v3058 = vsel %vm405, %v3054, 0
      %v3060 = vsel %vm405, %v3055, 0
      %3062 = vmatprep.subr.mxu0 %v3060
      %3063 = vmatpush1.msra.mxu0 %v3058
      %3064 = vmatprep.subr.mxu0 0.0
      %3065 = vmatpush1.msra.mxu0 0.0
      %3066 = vmatprep.subr.mxu0 0.0
      %3067 = vmatpush1.msra.mxu0 0.0
      %3068 = vmatprep.subr.mxu0 0.0
      %3069 = vmatpush1.msra.mxu0 0.0
      %3070 = vmatprep.subr.mxu0 0.0
      %3071 = vmatpush1.msra.mxu0 0.0
      %3072 = vmatprep.subr.mxu0 0.0
      %3073 = vmatpush1.msra.mxu0 0.0
      %3074 = vmatprep.subr.mxu0 0.0
      %3075 = vmatpush1.msra.mxu0 0.0
      %3076 = vmatprep.subr.mxu0 0.0
      %3077 = vmatpush1.msra.mxu0 0.0
      %3078 = vmatprep.subr.mxu0 0.0
      %3079 = vmatpush1.msra.mxu0 0.0
      %3080 = vmatprep.subr.mxu0 0.0
      %3081 = vmatpush1.msra.mxu0 0.0
      %3082 = vmatprep.subr.mxu0 0.0
      %3083 = vmatpush1.msra.mxu0 0.0
      %3084 = vmatprep.subr.mxu0 0.0
      %3085 = vmatpush1.msra.mxu0 0.0
      %3086 = vmatprep.subr.mxu0 0.0
      %3087 = vmatpush1.msra.mxu0 0.0
      %3088 = vmatprep.subr.mxu0 0.0
      %3089 = vmatpush1.msra.mxu0 0.0
      %3090 = vmatprep.subr.mxu0 0.0
      %3091 = vmatpush1.msra.mxu0 0.0
      %3092 = vmatprep.subr.mxu0 0.0
      %3093 = vmatpush1.msra.mxu0 0.0
      %3094 = vmatprep.subr.mxu0 0.0
      %3095 = vmatpush1.msra.mxu0 0.0
      %3096 = vmatprep.subr.mxu0 0.0
      %3097 = vmatpush1.msra.mxu0 0.0
      %3098 = vmatprep.subr.mxu0 0.0
      %3099 = vmatpush1.msra.mxu0 0.0
      %3100 = vmatprep.subr.mxu0 0.0
      %3101 = vmatpush1.msra.mxu0 0.0
      %3102 = vmatprep.subr.mxu0 0.0
      %3103 = vmatpush1.msra.mxu0 0.0
      %3104 = vmatprep.subr.mxu0 0.0
      %3105 = vmatpush1.msra.mxu0 0.0
      %3106 = vmatprep.subr.mxu0 0.0
      %3107 = vmatpush1.msra.mxu0 0.0
      %3108 = vmatprep.subr.mxu0 0.0
      %3109 = vmatpush1.msra.mxu0 0.0
      %3110 = vmatprep.subr.mxu0 0.0
      %3111 = vmatpush1.msra.mxu0 0.0
      %3112 = vmatprep.subr.mxu0 0.0
      %3113 = vmatpush1.msra.mxu0 0.0
      %3114 = vmatprep.subr.mxu0 0.0
      %3115 = vmatpush1.msra.mxu0 0.0
      %3116 = vmatprep.subr.mxu0 0.0
      %3117 = vmatpush1.msra.mxu0 0.0
      %3118 = vmatprep.subr.mxu0 0.0
      %3119 = vmatpush1.msra.mxu0 0.0
      %3120 = vmatprep.subr.mxu0 0.0
      %3121 = vmatpush1.msra.mxu0 0.0
      %3122 = vmatprep.subr.mxu0 0.0
      %3123 = vmatpush1.msra.mxu0 0.0
      %3124 = vmatprep.subr.mxu0 0.0
      %3125 = vmatpush1.msra.mxu0 0.0
      %3126 = vmatprep.mubr.f32.mxu0 0.0
      %3127 = vmatmul.mubr.f32.gmra.mrb[0].mxu0 %v3056
      %v3128 = vpop.f32.mrb[0].mxu0
      %v3129 = vadd.f32 0.0, %v3128
      %v3130 = vpop.f32.mrb[0].mxu0
      %v3131 = vadd.f32 0.0, %v3130
      %3132 = vdwg.mxu0
      %v3133 = vsel %vm402, %v3021, 0
      %v3136 = vsel %vm405, %v3045, 0
      %v3139 = vsel %vm405, %v3046, 0
      %3141 = vmatprep.subr.mxu0 %v3139
      %3142 = vmatpush1.msra.mxu0 %v3136
      %3143 = vmatprep.subr.mxu0 0.0
      %3144 = vmatpush1.msra.mxu0 0.0
      %3145 = vmatprep.subr.mxu0 0.0
      %3146 = vmatpush1.msra.mxu0 0.0
      %3147 = vmatprep.subr.mxu0 0.0
      %3148 = vmatpush1.msra.mxu0 0.0
      %3149 = vmatprep.subr.mxu0 0.0
      %3150 = vmatpush1.msra.mxu0 0.0
      %3151 = vmatprep.subr.mxu0 0.0
      %3152 = vmatpush1.msra.mxu0 0.0
      %3153 = vmatprep.subr.mxu0 0.0
      %3154 = vmatpush1.msra.mxu0 0.0
      %3155 = vmatprep.subr.mxu0 0.0
      %3156 = vmatpush1.msra.mxu0 0.0
      %3157 = vmatprep.subr.mxu0 0.0
      %3158 = vmatpush1.msra.mxu0 0.0
      %3159 = vmatprep.subr.mxu0 0.0
      %3160 = vmatpush1.msra.mxu0 0.0
      %3161 = vmatprep.subr.mxu0 0.0
      %3162 = vmatpush1.msra.mxu0 0.0
      %3163 = vmatprep.subr.mxu0 0.0
      %3164 = vmatpush1.msra.mxu0 0.0
      %3165 = vmatprep.subr.mxu0 0.0
      %3166 = vmatpush1.msra.mxu0 0.0
      %3167 = vmatprep.subr.mxu0 0.0
      %3168 = vmatpush1.msra.mxu0 0.0
      %3169 = vmatprep.subr.mxu0 0.0
      %3170 = vmatpush1.msra.mxu0 0.0
      %3171 = vmatprep.subr.mxu0 0.0
      %3172 = vmatpush1.msra.mxu0 0.0
      %3173 = vmatprep.subr.mxu0 0.0
      %3174 = vmatpush1.msra.mxu0 0.0
      %3175 = vmatprep.subr.mxu0 0.0
      %3176 = vmatpush1.msra.mxu0 0.0
      %3177 = vmatprep.subr.mxu0 0.0
      %3178 = vmatpush1.msra.mxu0 0.0
      %3179 = vmatprep.subr.mxu0 0.0
      %3180 = vmatpush1.msra.mxu0 0.0
      %3181 = vmatprep.subr.mxu0 0.0
      %3182 = vmatpush1.msra.mxu0 0.0
      %3183 = vmatprep.subr.mxu0 0.0
      %3184 = vmatpush1.msra.mxu0 0.0
      %3185 = vmatprep.subr.mxu0 0.0
      %3186 = vmatpush1.msra.mxu0 0.0
      %3187 = vmatprep.subr.mxu0 0.0
      %3188 = vmatpush1.msra.mxu0 0.0
      %3189 = vmatprep.subr.mxu0 0.0
      %3190 = vmatpush1.msra.mxu0 0.0
      %3191 = vmatprep.subr.mxu0 0.0
      %3192 = vmatpush1.msra.mxu0 0.0
      %3193 = vmatprep.subr.mxu0 0.0
      %3194 = vmatpush1.msra.mxu0 0.0
      %3195 = vmatprep.subr.mxu0 0.0
      %3196 = vmatpush1.msra.mxu0 0.0
      %3197 = vmatprep.subr.mxu0 0.0
      %3198 = vmatpush1.msra.mxu0 0.0
      %3199 = vmatprep.subr.mxu0 0.0
      %3200 = vmatpush1.msra.mxu0 0.0
      %3201 = vmatprep.subr.mxu0 0.0
      %3202 = vmatpush1.msra.mxu0 0.0
      %3203 = vmatprep.subr.mxu0 0.0
      %3204 = vmatpush1.msra.mxu0 0.0
      %3205 = vmatprep.mubr.f32.mxu0 0.0
      %3206 = vmatmul.mubr.f32.gmra.mrb[0].mxu0 %v3133
      %v3207 = vpop.f32.mrb[0].mxu0
      %v3208 = vadd.f32 %v3129, %v3207
      %v3209 = vpop.f32.mrb[0].mxu0
      %v3210 = vadd.f32 %v3131, %v3209
      %3211 = vdwg.mxu0
      %v3212 = vsel %vm3028, 1, 0
      %v3213 = vsel %vm3029, 1, 0
      %vm3214 = vcmp.eq.s32.totalorder %v3212, 1
      %vm3215 = vcmp.eq.s32.totalorder %v3213, 1
      %3216 = vrot.lane.b32.xlu0 0.0, 105
      %v3217 = vpop.permute.xlu0 %3216
      %3218 = vrot.lane.b32.xlu0 %v2940, 105
      %v3219 = vpop.permute.xlu0 %3218
      %3220 = vrot.lane.b32.xlu0 %v2941, 105
      %v3221 = vpop.permute.xlu0 %3220
      %vm3222 = vcmask 859136
      %v3223 = vsel %vm3222, %v3217, %v3219
      %v3224 = vsel %vm3222, %v3219, %v3221
      %v3227 = vsel %vm3214, %v3223, 0.0
      %v3228 = vsel %vm3215, %v3224, 0.0
      %3229 = vrot.lane.b32.xlu0 %v3021, 120
      %v3230 = vpop.permute.xlu0 %3229
      %v3231 = vsel %vm402, %v3230, 0
      %v3234 = vsel %vm405, %v3227, 0
      %v3237 = vsel %vm405, %v3228, 0
      %3239 = vmatprep.subr.mxu0 %v3237
      %3240 = vmatpush1.msra.mxu0 %v3234
      %3241 = vmatprep.subr.mxu0 0.0
      %3242 = vmatpush1.msra.mxu0 0.0
      %3243 = vmatprep.subr.mxu0 0.0
      %3244 = vmatpush1.msra.mxu0 0.0
      %3245 = vmatprep.subr.mxu0 0.0
      %3246 = vmatpush1.msra.mxu0 0.0
      %3247 = vmatprep.subr.mxu0 0.0
      %3248 = vmatpush1.msra.mxu0 0.0
      %3249 = vmatprep.subr.mxu0 0.0
      %3250 = vmatpush1.msra.mxu0 0.0
      %3251 = vmatprep.subr.mxu0 0.0
      %3252 = vmatpush1.msra.mxu0 0.0
      %3253 = vmatprep.subr.mxu0 0.0
      %3254 = vmatpush1.msra.mxu0 0.0
      %3255 = vmatprep.subr.mxu0 0.0
      %3256 = vmatpush1.msra.mxu0 0.0
      %3257 = vmatprep.subr.mxu0 0.0
      %3258 = vmatpush1.msra.mxu0 0.0
      %3259 = vmatprep.subr.mxu0 0.0
      %3260 = vmatpush1.msra.mxu0 0.0
      %3261 = vmatprep.subr.mxu0 0.0
      %3262 = vmatpush1.msra.mxu0 0.0
      %3263 = vmatprep.subr.mxu0 0.0
      %3264 = vmatpush1.msra.mxu0 0.0
      %3265 = vmatprep.subr.mxu0 0.0
      %3266 = vmatpush1.msra.mxu0 0.0
      %3267 = vmatprep.subr.mxu0 0.0
      %3268 = vmatpush1.msra.mxu0 0.0
      %3269 = vmatprep.subr.mxu0 0.0
      %3270 = vmatpush1.msra.mxu0 0.0
      %3271 = vmatprep.subr.mxu0 0.0
      %3272 = vmatpush1.msra.mxu0 0.0
      %3273 = vmatprep.subr.mxu0 0.0
      %3274 = vmatpush1.msra.mxu0 0.0
      %3275 = vmatprep.subr.mxu0 0.0
      %3276 = vmatpush1.msra.mxu0 0.0
      %3277 = vmatprep.subr.mxu0 0.0
      %3278 = vmatpush1.msra.mxu0 0.0
      %3279 = vmatprep.subr.mxu0 0.0
      %3280 = vmatpush1.msra.mxu0 0.0
      %3281 = vmatprep.subr.mxu0 0.0
      %3282 = vmatpush1.msra.mxu0 0.0
      %3283 = vmatprep.subr.mxu0 0.0
      %3284 = vmatpush1.msra.mxu0 0.0
      %3285 = vmatprep.subr.mxu0 0.0
      %3286 = vmatpush1.msra.mxu0 0.0
      %3287 = vmatprep.subr.mxu0 0.0
      %3288 = vmatpush1.msra.mxu0 0.0
      %3289 = vmatprep.subr.mxu0 0.0
      %3290 = vmatpush1.msra.mxu0 0.0
      %3291 = vmatprep.subr.mxu0 0.0
      %3292 = vmatpush1.msra.mxu0 0.0
      %3293 = vmatprep.subr.mxu0 0.0
      %3294 = vmatpush1.msra.mxu0 0.0
      %3295 = vmatprep.subr.mxu0 0.0
      %3296 = vmatpush1.msra.mxu0 0.0
      %3297 = vmatprep.subr.mxu0 0.0
      %3298 = vmatpush1.msra.mxu0 0.0
      %3299 = vmatprep.subr.mxu0 0.0
      %3300 = vmatpush1.msra.mxu0 0.0
      %3301 = vmatprep.subr.mxu0 0.0
      %3302 = vmatpush1.msra.mxu0 0.0
      %3303 = vmatprep.mubr.f32.mxu0 0.0
      %3304 = vmatmul.mubr.f32.gmra.mrb[0].mxu0 %v3231
      %v3305 = vpop.f32.mrb[0].mxu0
      %v3306 = vadd.f32 0.0, %v3305
      %v3307 = vpop.f32.mrb[0].mxu0
      %v3308 = vadd.f32 0.0, %v3307
      %3309 = vdwg.mxu0
      %v3310 = vadd.f32 %v3208, %v3306
      %v3311 = vadd.f32 %v3210, %v3308
      %3312 = vrot.lane.b32.xlu0 0.0, 7
      %v3313 = vpop.permute.xlu0 %3312
      %3314 = vrot.lane.b32.xlu0 %v2940, 7
      %v3315 = vpop.permute.xlu0 %3314
      %3316 = vrot.lane.b32.xlu0 %v2941, 7
      %v3317 = vpop.permute.xlu0 %3316
      %vm3318 = vcmask 56320
      %v3319 = vsel %vm3318, %v3313, %v3315
      %v3320 = vsel %vm3318, %v3315, %v3317
      %v3323 = vsel %vm3032, %v3319, 0.0
      %v3324 = vsel %vm3033, %v3320, 0.0
      %3325 = vrot.lane.b32.xlu0 %v3021, 116
      %v3326 = vpop.permute.xlu0 %3325
      %v3327 = vsel %vm402, %v3326, 0
      %v3330 = vsel %vm405, %v3323, 0
      %v3333 = vsel %vm405, %v3324, 0
      %3335 = vmatprep.subr.mxu0 %v3333
      %3336 = vmatpush1.msra.mxu0 %v3330
      %3337 = vmatprep.subr.mxu0 0.0
      %3338 = vmatpush1.msra.mxu0 0.0
      %3339 = vmatprep.subr.mxu0 0.0
      %3340 = vmatpush1.msra.mxu0 0.0
      %3341 = vmatprep.subr.mxu0 0.0
      %3342 = vmatpush1.msra.mxu0 0.0
      %3343 = vmatprep.subr.mxu0 0.0
      %3344 = vmatpush1.msra.mxu0 0.0
      %3345 = vmatprep.subr.mxu0 0.0
      %3346 = vmatpush1.msra.mxu0 0.0
      %3347 = vmatprep.subr.mxu0 0.0
      %3348 = vmatpush1.msra.mxu0 0.0
      %3349 = vmatprep.subr.mxu0 0.0
      %3350 = vmatpush1.msra.mxu0 0.0
      %3351 = vmatprep.subr.mxu0 0.0
      %3352 = vmatpush1.msra.mxu0 0.0
      %3353 = vmatprep.subr.mxu0 0.0
      %3354 = vmatpush1.msra.mxu0 0.0
      %3355 = vmatprep.subr.mxu0 0.0
      %3356 = vmatpush1.msra.mxu0 0.0
      %3357 = vmatprep.subr.mxu0 0.0
      %3358 = vmatpush1.msra.mxu0 0.0
      %3359 = vmatprep.subr.mxu0 0.0
      %3360 = vmatpush1.msra.mxu0 0.0
      %3361 = vmatprep.subr.mxu0 0.0
      %3362 = vmatpush1.msra.mxu0 0.0
      %3363 = vmatprep.subr.mxu0 0.0
      %3364 = vmatpush1.msra.mxu0 0.0
      %3365 = vmatprep.subr.mxu0 0.0
      %3366 = vmatpush1.msra.mxu0 0.0
      %3367 = vmatprep.subr.mxu0 0.0
      %3368 = vmatpush1.msra.mxu0 0.0
      %3369 = vmatprep.subr.mxu0 0.0
      %3370 = vmatpush1.msra.mxu0 0.0
      %3371 = vmatprep.subr.mxu0 0.0
      %3372 = vmatpush1.msra.mxu0 0.0
      %3373 = vmatprep.subr.mxu0 0.0
      %3374 = vmatpush1.msra.mxu0 0.0
      %3375 = vmatprep.subr.mxu0 0.0
      %3376 = vmatpush1.msra.mxu0 0.0
      %3377 = vmatprep.subr.mxu0 0.0
      %3378 = vmatpush1.msra.mxu0 0.0
      %3379 = vmatprep.subr.mxu0 0.0
      %3380 = vmatpush1.msra.mxu0 0.0
      %3381 = vmatprep.subr.mxu0 0.0
      %3382 = vmatpush1.msra.mxu0 0.0
      %3383 = vmatprep.subr.mxu0 0.0
      %3384 = vmatpush1.msra.mxu0 0.0
      %3385 = vmatprep.subr.mxu0 0.0
      %3386 = vmatpush1.msra.mxu0 0.0
      %3387 = vmatprep.subr.mxu0 0.0
      %3388 = vmatpush1.msra.mxu0 0.0
      %3389 = vmatprep.subr.mxu0 0.0
      %3390 = vmatpush1.msra.mxu0 0.0
      %3391 = vmatprep.subr.mxu0 0.0
      %3392 = vmatpush1.msra.mxu0 0.0
      %3393 = vmatprep.subr.mxu0 0.0
      %3394 = vmatpush1.msra.mxu0 0.0
      %3395 = vmatprep.subr.mxu0 0.0
      %3396 = vmatpush1.msra.mxu0 0.0
      %3397 = vmatprep.subr.mxu0 0.0
      %3398 = vmatpush1.msra.mxu0 0.0
      %3399 = vmatprep.mubr.f32.mxu0 0.0
      %3400 = vmatmul.mubr.f32.gmra.mrb[0].mxu0 %v3327
      %v3401 = vpop.f32.mrb[0].mxu0
      %v3402 = vadd.f32 0.0, %v3401
      %v3403 = vpop.f32.mrb[0].mxu0
      %v3404 = vadd.f32 0.0, %v3403
      %3405 = vdwg.mxu0
      %v3406 = vadd.f32 %v3310, %v3402
      %v3407 = vadd.f32 %v3311, %v3404
      %3408 = vrot.lane.b32.xlu0 %v3021, 112
      %v3409 = vpop.permute.xlu0 %3408
      %v3410 = vsel %vm402, %v3409, 0
      %3412 = vmatprep.subr.mxu0 %v2946
      %3413 = vmatpush1.msra.mxu0 %v2943
      %3414 = vmatprep.subr.mxu0 0.0
      %3415 = vmatpush1.msra.mxu0 0.0
      %3416 = vmatprep.subr.mxu0 0.0
      %3417 = vmatpush1.msra.mxu0 0.0
      %3418 = vmatprep.subr.mxu0 0.0
      %3419 = vmatpush1.msra.mxu0 0.0
      %3420 = vmatprep.subr.mxu0 0.0
      %3421 = vmatpush1.msra.mxu0 0.0
      %3422 = vmatprep.subr.mxu0 0.0
      %3423 = vmatpush1.msra.mxu0 0.0
      %3424 = vmatprep.subr.mxu0 0.0
      %3425 = vmatpush1.msra.mxu0 0.0
      %3426 = vmatprep.subr.mxu0 0.0
      %3427 = vmatpush1.msra.mxu0 0.0
      %3428 = vmatprep.subr.mxu0 0.0
      %3429 = vmatpush1.msra.mxu0 0.0
      %3430 = vmatprep.subr.mxu0 0.0
      %3431 = vmatpush1.msra.mxu0 0.0
      %3432 = vmatprep.subr.mxu0 0.0
      %3433 = vmatpush1.msra.mxu0 0.0
      %3434 = vmatprep.subr.mxu0 0.0
      %3435 = vmatpush1.msra.mxu0 0.0
      %3436 = vmatprep.subr.mxu0 0.0
      %3437 = vmatpush1.msra.mxu0 0.0
      %3438 = vmatprep.subr.mxu0 0.0
      %3439 = vmatpush1.msra.mxu0 0.0
      %3440 = vmatprep.subr.mxu0 0.0
      %3441 = vmatpush1.msra.mxu0 0.0
      %3442 = vmatprep.subr.mxu0 0.0
      %3443 = vmatpush1.msra.mxu0 0.0
      %3444 = vmatprep.subr.mxu0 0.0
      %3445 = vmatpush1.msra.mxu0 0.0
      %3446 = vmatprep.subr.mxu0 0.0
      %3447 = vmatpush1.msra.mxu0 0.0
      %3448 = vmatprep.subr.mxu0 0.0
      %3449 = vmatpush1.msra.mxu0 0.0
      %3450 = vmatprep.subr.mxu0 0.0
      %3451 = vmatpush1.msra.mxu0 0.0
      %3452 = vmatprep.subr.mxu0 0.0
      %3453 = vmatpush1.msra.mxu0 0.0
      %3454 = vmatprep.subr.mxu0 0.0
      %3455 = vmatpush1.msra.mxu0 0.0
      %3456 = vmatprep.subr.mxu0 0.0
      %3457 = vmatpush1.msra.mxu0 0.0
      %3458 = vmatprep.subr.mxu0 0.0
      %3459 = vmatpush1.msra.mxu0 0.0
      %3460 = vmatprep.subr.mxu0 0.0
      %3461 = vmatpush1.msra.mxu0 0.0
      %3462 = vmatprep.subr.mxu0 0.0
      %3463 = vmatpush1.msra.mxu0 0.0
      %3464 = vmatprep.subr.mxu0 0.0
      %3465 = vmatpush1.msra.mxu0 0.0
      %3466 = vmatprep.subr.mxu0 0.0
      %3467 = vmatpush1.msra.mxu0 0.0
      %3468 = vmatprep.subr.mxu0 0.0
      %3469 = vmatpush1.msra.mxu0 0.0
      %3470 = vmatprep.subr.mxu0 0.0
      %3471 = vmatpush1.msra.mxu0 0.0
      %3472 = vmatprep.subr.mxu0 0.0
      %3473 = vmatpush1.msra.mxu0 0.0
      %3474 = vmatprep.subr.mxu0 0.0
      %3475 = vmatpush1.msra.mxu0 0.0
      %3476 = vmatprep.mubr.f32.mxu0 0.0
      %3477 = vmatmul.mubr.f32.gmra.mrb[0].mxu0 %v3410
      %v3478 = vpop.f32.mrb[0].mxu0
      %v3479 = vadd.f32 0.0, %v3478
      %v3480 = vpop.f32.mrb[0].mxu0
      %v3481 = vadd.f32 0.0, %v3480
      %3482 = vdwg.mxu0
      %v3483 = vadd.f32 %v3406, %v3479
      %v3484 = vadd.f32 %v3407, %v3481
      %3485 = vrot.lane.b32.xlu0 %v2940, 121
      %v3486 = vpop.permute.xlu0 %3485
      %3487 = vrot.lane.b32.xlu0 %v2941, 121
      %v3488 = vpop.permute.xlu0 %3487
      %3489 = vrot.lane.b32.xlu0 0.0, 121
      %v3490 = vpop.permute.xlu0 %3489
      %vm3491 = vcmask 990208
      %v3492 = vsel %vm3491, %v3486, %v3488
      %v3493 = vsel %vm3491, %v3488, %v3490
      %v3496 = vsel %vm3214, %v3492, 0.0
      %v3497 = vsel %vm3215, %v3493, 0.0
      %3498 = vrot.lane.b32.xlu0 %v3021, 108
      %v3499 = vpop.permute.xlu0 %3498
      %v3500 = vsel %vm402, %v3499, 0
      %v3503 = vsel %vm405, %v3496, 0
      %v3506 = vsel %vm405, %v3497, 0
      %3508 = vmatprep.subr.mxu0 %v3506
      %3509 = vmatpush1.msra.mxu0 %v3503
      %3510 = vmatprep.subr.mxu0 0.0
      %3511 = vmatpush1.msra.mxu0 0.0
      %3512 = vmatprep.subr.mxu0 0.0
      %3513 = vmatpush1.msra.mxu0 0.0
      %3514 = vmatprep.subr.mxu0 0.0
      %3515 = vmatpush1.msra.mxu0 0.0
      %3516 = vmatprep.subr.mxu0 0.0
      %3517 = vmatpush1.msra.mxu0 0.0
      %3518 = vmatprep.subr.mxu0 0.0
      %3519 = vmatpush1.msra.mxu0 0.0
      %3520 = vmatprep.subr.mxu0 0.0
      %3521 = vmatpush1.msra.mxu0 0.0
      %3522 = vmatprep.subr.mxu0 0.0
      %3523 = vmatpush1.msra.mxu0 0.0
      %3524 = vmatprep.subr.mxu0 0.0
      %3525 = vmatpush1.msra.mxu0 0.0
      %3526 = vmatprep.subr.mxu0 0.0
      %3527 = vmatpush1.msra.mxu0 0.0
      %3528 = vmatprep.subr.mxu0 0.0
      %3529 = vmatpush1.msra.mxu0 0.0
      %3530 = vmatprep.subr.mxu0 0.0
      %3531 = vmatpush1.msra.mxu0 0.0
      %3532 = vmatprep.subr.mxu0 0.0
      %3533 = vmatpush1.msra.mxu0 0.0
      %3534 = vmatprep.subr.mxu0 0.0
      %3535 = vmatpush1.msra.mxu0 0.0
      %3536 = vmatprep.subr.mxu0 0.0
      %3537 = vmatpush1.msra.mxu0 0.0
      %3538 = vmatprep.subr.mxu0 0.0
      %3539 = vmatpush1.msra.mxu0 0.0
      %3540 = vmatprep.subr.mxu0 0.0
      %3541 = vmatpush1.msra.mxu0 0.0
      %3542 = vmatprep.subr.mxu0 0.0
      %3543 = vmatpush1.msra.mxu0 0.0
      %3544 = vmatprep.subr.mxu0 0.0
      %3545 = vmatpush1.msra.mxu0 0.0
      %3546 = vmatprep.subr.mxu0 0.0
      %3547 = vmatpush1.msra.mxu0 0.0
      %3548 = vmatprep.subr.mxu0 0.0
      %3549 = vmatpush1.msra.mxu0 0.0
      %3550 = vmatprep.subr.mxu0 0.0
      %3551 = vmatpush1.msra.mxu0 0.0
      %3552 = vmatprep.subr.mxu0 0.0
      %3553 = vmatpush1.msra.mxu0 0.0
      %3554 = vmatprep.subr.mxu0 0.0
      %3555 = vmatpush1.msra.mxu0 0.0
      %3556 = vmatprep.subr.mxu0 0.0
      %3557 = vmatpush1.msra.mxu0 0.0
      %3558 = vmatprep.subr.mxu0 0.0
      %3559 = vmatpush1.msra.mxu0 0.0
      %3560 = vmatprep.subr.mxu0 0.0
      %3561 = vmatpush1.msra.mxu0 0.0
      %3562 = vmatprep.subr.mxu0 0.0
      %3563 = vmatpush1.msra.mxu0 0.0
      %3564 = vmatprep.subr.mxu0 0.0
      %3565 = vmatpush1.msra.mxu0 0.0
      %3566 = vmatprep.subr.mxu0 0.0
      %3567 = vmatpush1.msra.mxu0 0.0
      %3568 = vmatprep.subr.mxu0 0.0
      %3569 = vmatpush1.msra.mxu0 0.0
      %3570 = vmatprep.subr.mxu0 0.0
      %3571 = vmatpush1.msra.mxu0 0.0
      %3572 = vmatprep.mubr.f32.mxu0 0.0
      %3573 = vmatmul.mubr.f32.gmra.mrb[0].mxu0 %v3500
      %v3574 = vpop.f32.mrb[0].mxu0
      %v3575 = vadd.f32 0.0, %v3574
      %v3576 = vpop.f32.mrb[0].mxu0
      %v3577 = vadd.f32 0.0, %v3576
      %3578 = vdwg.mxu0
      %v3579 = vadd.f32 %v3483, %v3575
      %v3580 = vadd.f32 %v3484, %v3577
      %3581 = vrot.lane.b32.xlu0 %v2940, 23
      %v3582 = vpop.permute.xlu0 %3581
      %3583 = vrot.lane.b32.xlu0 %v2941, 23
      %v3584 = vpop.permute.xlu0 %3583
      %3585 = vrot.lane.b32.xlu0 0.0, 23
      %v3586 = vpop.permute.xlu0 %3585
      %vm3587 = vcmask 187392
      %v3588 = vsel %vm3587, %v3582, %v3584
      %v3589 = vsel %vm3587, %v3584, %v3586
      %v3592 = vsel %vm3032, %v3588, 0.0
      %v3593 = vsel %vm3033, %v3589, 0.0
      %3594 = vrot.lane.b32.xlu0 %v3021, 104
      %v3595 = vpop.permute.xlu0 %3594
      %v3596 = vsel %vm402, %v3595, 0
      %v3599 = vsel %vm405, %v3592, 0
      %v3602 = vsel %vm405, %v3593, 0
      %3604 = vmatprep.subr.mxu0 %v3602
      %3605 = vmatpush1.msra.mxu0 %v3599
      %3606 = vmatprep.subr.mxu0 0.0
      %3607 = vmatpush1.msra.mxu0 0.0
      %3608 = vmatprep.subr.mxu0 0.0
      %3609 = vmatpush1.msra.mxu0 0.0
      %3610 = vmatprep.subr.mxu0 0.0
      %3611 = vmatpush1.msra.mxu0 0.0
      %3612 = vmatprep.subr.mxu0 0.0
      %3613 = vmatpush1.msra.mxu0 0.0
      %3614 = vmatprep.subr.mxu0 0.0
      %3615 = vmatpush1.msra.mxu0 0.0
      %3616 = vmatprep.subr.mxu0 0.0
      %3617 = vmatpush1.msra.mxu0 0.0
      %3618 = vmatprep.subr.mxu0 0.0
      %3619 = vmatpush1.msra.mxu0 0.0
      %3620 = vmatprep.subr.mxu0 0.0
      %3621 = vmatpush1.msra.mxu0 0.0
      %3622 = vmatprep.subr.mxu0 0.0
      %3623 = vmatpush1.msra.mxu0 0.0
      %3624 = vmatprep.subr.mxu0 0.0
      %3625 = vmatpush1.msra.mxu0 0.0
      %3626 = vmatprep.subr.mxu0 0.0
      %3627 = vmatpush1.msra.mxu0 0.0
      %3628 = vmatprep.subr.mxu0 0.0
      %3629 = vmatpush1.msra.mxu0 0.0
      %3630 = vmatprep.subr.mxu0 0.0
      %3631 = vmatpush1.msra.mxu0 0.0
      %3632 = vmatprep.subr.mxu0 0.0
      %3633 = vmatpush1.msra.mxu0 0.0
      %3634 = vmatprep.subr.mxu0 0.0
      %3635 = vmatpush1.msra.mxu0 0.0
      %3636 = vmatprep.subr.mxu0 0.0
      %3637 = vmatpush1.msra.mxu0 0.0
      %3638 = vmatprep.subr.mxu0 0.0
      %3639 = vmatpush1.msra.mxu0 0.0
      %3640 = vmatprep.subr.mxu0 0.0
      %3641 = vmatpush1.msra.mxu0 0.0
      %3642 = vmatprep.subr.mxu0 0.0
      %3643 = vmatpush1.msra.mxu0 0.0
      %3644 = vmatprep.subr.mxu0 0.0
      %3645 = vmatpush1.msra.mxu0 0.0
      %3646 = vmatprep.subr.mxu0 0.0
      %3647 = vmatpush1.msra.mxu0 0.0
      %3648 = vmatprep.subr.mxu0 0.0
      %3649 = vmatpush1.msra.mxu0 0.0
      %3650 = vmatprep.subr.mxu0 0.0
      %3651 = vmatpush1.msra.mxu0 0.0
      %3652 = vmatprep.subr.mxu0 0.0
      %3653 = vmatpush1.msra.mxu0 0.0
      %3654 = vmatprep.subr.mxu0 0.0
      %3655 = vmatpush1.msra.mxu0 0.0
      %3656 = vmatprep.subr.mxu0 0.0
      %3657 = vmatpush1.msra.mxu0 0.0
      %3658 = vmatprep.subr.mxu0 0.0
      %3659 = vmatpush1.msra.mxu0 0.0
      %3660 = vmatprep.subr.mxu0 0.0
      %3661 = vmatpush1.msra.mxu0 0.0
      %3662 = vmatprep.subr.mxu0 0.0
      %3663 = vmatpush1.msra.mxu0 0.0
      %3664 = vmatprep.subr.mxu0 0.0
      %3665 = vmatpush1.msra.mxu0 0.0
      %3666 = vmatprep.subr.mxu0 0.0
      %3667 = vmatpush1.msra.mxu0 0.0
      %3668 = vmatprep.mubr.f32.mxu0 0.0
      %3669 = vmatmul.mubr.f32.gmra.mrb[0].mxu0 %v3596
      %v3670 = vpop.f32.mrb[0].mxu0
      %v3671 = vadd.f32 0.0, %v3670
      %v3672 = vpop.f32.mrb[0].mxu0
      %v3673 = vadd.f32 0.0, %v3672
      %3674 = vdwg.mxu0
      %v3675 = vadd.f32 %v3579, %v3671
      %v3676 = vadd.f32 %v3580, %v3673
      %3677 = vrot.lane.b32.xlu0 %v3021, 100
      %v3678 = vpop.permute.xlu0 %3677
      %3679 = vrot.lane.b32.xlu0 %v2940, 16
      %v3680 = vpop.permute.xlu0 %3679
      %3681 = vrot.lane.b32.xlu0 %v2941, 16
      %v3682 = vpop.permute.xlu0 %3681
      %v3683 = vsel %vm399, %v3680, %v3682
      %v3684 = vsel %vm399, %v3682, %v394
      %v3685 = vsel %vm402, %v3678, 0
      %v3687 = vsel %vm405, %v3683, 0
      %v3689 = vsel %vm405, %v3684, 0
      %3691 = vmatprep.subr.mxu0 %v3689
      %3692 = vmatpush1.msra.mxu0 %v3687
      %3693 = vmatprep.subr.mxu0 0.0
      %3694 = vmatpush1.msra.mxu0 0.0
      %3695 = vmatprep.subr.mxu0 0.0
      %3696 = vmatpush1.msra.mxu0 0.0
      %3697 = vmatprep.subr.mxu0 0.0
      %3698 = vmatpush1.msra.mxu0 0.0
      %3699 = vmatprep.subr.mxu0 0.0
      %3700 = vmatpush1.msra.mxu0 0.0
      %3701 = vmatprep.subr.mxu0 0.0
      %3702 = vmatpush1.msra.mxu0 0.0
      %3703 = vmatprep.subr.mxu0 0.0
      %3704 = vmatpush1.msra.mxu0 0.0
      %3705 = vmatprep.subr.mxu0 0.0
      %3706 = vmatpush1.msra.mxu0 0.0
      %3707 = vmatprep.subr.mxu0 0.0
      %3708 = vmatpush1.msra.mxu0 0.0
      %3709 = vmatprep.subr.mxu0 0.0
      %3710 = vmatpush1.msra.mxu0 0.0
      %3711 = vmatprep.subr.mxu0 0.0
      %3712 = vmatpush1.msra.mxu0 0.0
      %3713 = vmatprep.subr.mxu0 0.0
      %3714 = vmatpush1.msra.mxu0 0.0
      %3715 = vmatprep.subr.mxu0 0.0
      %3716 = vmatpush1.msra.mxu0 0.0
      %3717 = vmatprep.subr.mxu0 0.0
      %3718 = vmatpush1.msra.mxu0 0.0
      %3719 = vmatprep.subr.mxu0 0.0
      %3720 = vmatpush1.msra.mxu0 0.0
      %3721 = vmatprep.subr.mxu0 0.0
      %3722 = vmatpush1.msra.mxu0 0.0
      %3723 = vmatprep.subr.mxu0 0.0
      %3724 = vmatpush1.msra.mxu0 0.0
      %3725 = vmatprep.subr.mxu0 0.0
      %3726 = vmatpush1.msra.mxu0 0.0
      %3727 = vmatprep.subr.mxu0 0.0
      %3728 = vmatpush1.msra.mxu0 0.0
      %3729 = vmatprep.subr.mxu0 0.0
      %3730 = vmatpush1.msra.mxu0 0.0
      %3731 = vmatprep.subr.mxu0 0.0
      %3732 = vmatpush1.msra.mxu0 0.0
      %3733 = vmatprep.subr.mxu0 0.0
      %3734 = vmatpush1.msra.mxu0 0.0
      %3735 = vmatprep.subr.mxu0 0.0
      %3736 = vmatpush1.msra.mxu0 0.0
      %3737 = vmatprep.subr.mxu0 0.0
      %3738 = vmatpush1.msra.mxu0 0.0
      %3739 = vmatprep.subr.mxu0 0.0
      %3740 = vmatpush1.msra.mxu0 0.0
      %3741 = vmatprep.subr.mxu0 0.0
      %3742 = vmatpush1.msra.mxu0 0.0
      %3743 = vmatprep.subr.mxu0 0.0
      %3744 = vmatpush1.msra.mxu0 0.0
      %3745 = vmatprep.subr.mxu0 0.0
      %3746 = vmatpush1.msra.mxu0 0.0
      %3747 = vmatprep.subr.mxu0 0.0
      %3748 = vmatpush1.msra.mxu0 0.0
      %3749 = vmatprep.subr.mxu0 0.0
      %3750 = vmatpush1.msra.mxu0 0.0
      %3751 = vmatprep.subr.mxu0 0.0
      %3752 = vmatpush1.msra.mxu0 0.0
      %3753 = vmatprep.subr.mxu0 0.0
      %3754 = vmatpush1.msra.mxu0 0.0
      %3755 = vmatprep.mubr.f32.mxu0 0.0
      %3756 = vmatmul.mubr.f32.gmra.mrb[0].mxu0 %v3685
      %v3757 = vpop.f32.mrb[0].mxu0
      %v3758 = vadd.f32 0.0, %v3757
      %v3759 = vpop.f32.mrb[0].mxu0
      %v3760 = vadd.f32 0.0, %v3759
      %3761 = vdwg.mxu0
      %v3762 = vadd.f32 %v3675, %v3758
      %v3763 = vadd.f32 %v3676, %v3760
      %3764 = vrot.lane.b32.xlu0 %v2940, 9
      %v3765 = vpop.permute.xlu0 %3764
      %3766 = vrot.lane.b32.xlu0 %v2941, 9
      %v3767 = vpop.permute.xlu0 %3766
      %3768 = vrot.lane.b32.xlu0 0.0, 9
      %v3769 = vpop.permute.xlu0 %3768
      %vm3770 = vcmask 72704
      %v3771 = vsel %vm3770, %v3765, %v3767
      %v3772 = vsel %vm3770, %v3767, %v3769
      %v3775 = vsel %vm3214, %v3771, 0.0
      %v3776 = vsel %vm3215, %v3772, 0.0
      %3777 = vrot.lane.b32.xlu0 %v3021, 96
      %v3778 = vpop.permute.xlu0 %3777
      %v3779 = vsel %vm402, %v3778, 0
      %v3782 = vsel %vm405, %v3775, 0
      %v3785 = vsel %vm405, %v3776, 0
      %3787 = vmatprep.subr.mxu0 %v3785
      %3788 = vmatpush1.msra.mxu0 %v3782
      %3789 = vmatprep.subr.mxu0 0.0
      %3790 = vmatpush1.msra.mxu0 0.0
      %3791 = vmatprep.subr.mxu0 0.0
      %3792 = vmatpush1.msra.mxu0 0.0
      %3793 = vmatprep.subr.mxu0 0.0
      %3794 = vmatpush1.msra.mxu0 0.0
      %3795 = vmatprep.subr.mxu0 0.0
      %3796 = vmatpush1.msra.mxu0 0.0
      %3797 = vmatprep.subr.mxu0 0.0
      %3798 = vmatpush1.msra.mxu0 0.0
      %3799 = vmatprep.subr.mxu0 0.0
      %3800 = vmatpush1.msra.mxu0 0.0
      %3801 = vmatprep.subr.mxu0 0.0
      %3802 = vmatpush1.msra.mxu0 0.0
      %3803 = vmatprep.subr.mxu0 0.0
      %3804 = vmatpush1.msra.mxu0 0.0
      %3805 = vmatprep.subr.mxu0 0.0
      %3806 = vmatpush1.msra.mxu0 0.0
      %3807 = vmatprep.subr.mxu0 0.0
      %3808 = vmatpush1.msra.mxu0 0.0
      %3809 = vmatprep.subr.mxu0 0.0
      %3810 = vmatpush1.msra.mxu0 0.0
      %3811 = vmatprep.subr.mxu0 0.0
      %3812 = vmatpush1.msra.mxu0 0.0
      %3813 = vmatprep.subr.mxu0 0.0
      %3814 = vmatpush1.msra.mxu0 0.0
      %3815 = vmatprep.subr.mxu0 0.0
      %3816 = vmatpush1.msra.mxu0 0.0
      %3817 = vmatprep.subr.mxu0 0.0
      %3818 = vmatpush1.msra.mxu0 0.0
      %3819 = vmatprep.subr.mxu0 0.0
      %3820 = vmatpush1.msra.mxu0 0.0
      %3821 = vmatprep.subr.mxu0 0.0
      %3822 = vmatpush1.msra.mxu0 0.0
      %3823 = vmatprep.subr.mxu0 0.0
      %3824 = vmatpush1.msra.mxu0 0.0
      %3825 = vmatprep.subr.mxu0 0.0
      %3826 = vmatpush1.msra.mxu0 0.0
      %3827 = vmatprep.subr.mxu0 0.0
      %3828 = vmatpush1.msra.mxu0 0.0
      %3829 = vmatprep.subr.mxu0 0.0
      %3830 = vmatpush1.msra.mxu0 0.0
      %3831 = vmatprep.subr.mxu0 0.0
      %3832 = vmatpush1.msra.mxu0 0.0
      %3833 = vmatprep.subr.mxu0 0.0
      %3834 = vmatpush1.msra.mxu0 0.0
      %3835 = vmatprep.subr.mxu0 0.0
      %3836 = vmatpush1.msra.mxu0 0.0
      %3837 = vmatprep.subr.mxu0 0.0
      %3838 = vmatpush1.msra.mxu0 0.0
      %3839 = vmatprep.subr.mxu0 0.0
      %3840 = vmatpush1.msra.mxu0 0.0
      %3841 = vmatprep.subr.mxu0 0.0
      %3842 = vmatpush1.msra.mxu0 0.0
      %3843 = vmatprep.subr.mxu0 0.0
      %3844 = vmatpush1.msra.mxu0 0.0
      %3845 = vmatprep.subr.mxu0 0.0
      %3846 = vmatpush1.msra.mxu0 0.0
      %3847 = vmatprep.subr.mxu0 0.0
      %3848 = vmatpush1.msra.mxu0 0.0
      %3849 = vmatprep.subr.mxu0 0.0
      %3850 = vmatpush1.msra.mxu0 0.0
      %3851 = vmatprep.mubr.f32.mxu0 0.0
      %3852 = vmatmul.mubr.f32.gmra.mrb[0].mxu0 %v3779
      %v3853 = vpop.f32.mrb[0].mxu0
      %v3854 = vadd.f32 0.0, %v3853
      %v3855 = vpop.f32.mrb[0].mxu0
      %v3856 = vadd.f32 0.0, %v3855
      %3857 = vdwg.mxu0
      %v3858 = vadd.f32 %v3762, %v3854
      %v3859 = vadd.f32 %v3763, %v3856
      %v3860 = vld [vmem:[%s7] sm:$0xf]
      %3862 = vset.pattern.permute.xlu0 0
      %3863 = vperm.xlu0 %3862, %v3860
      %v3864 = vpop.permute.xlu0 %3863
      %v3866 = vadd.f32 %v3858, %v3864
      %v3867 = vadd.f32 %v3859, %v3864
      %v3869 = vsel %vm405, %v3866, 0
      %v3872 = vsel %vm405, %v3867, 0
      %3874 = vmatprep.subr.mxu0 %v3872
      %3875 = vmatpush1.msra.mxu0 %v3869
      %3876 = vmatprep.subr.mxu0 0.0
      %3877 = vmatpush1.msra.mxu0 0.0
      %3878 = vmatprep.subr.mxu0 0.0
      %3879 = vmatpush1.msra.mxu0 0.0
      %3880 = vmatprep.subr.mxu0 0.0
      %3881 = vmatpush1.msra.mxu0 0.0
      %3882 = vmatprep.subr.mxu0 0.0
      %3883 = vmatpush1.msra.mxu0 0.0
      %3884 = vmatprep.subr.mxu0 0.0
      %3885 = vmatpush1.msra.mxu0 0.0
      %3886 = vmatprep.subr.mxu0 0.0
      %3887 = vmatpush1.msra.mxu0 0.0
      %3888 = vmatprep.subr.mxu0 0.0
      %3889 = vmatpush1.msra.mxu0 0.0
      %3890 = vmatprep.subr.mxu0 0.0
      %3891 = vmatpush1.msra.mxu0 0.0
      %3892 = vmatprep.subr.mxu0 0.0
      %3893 = vmatpush1.msra.mxu0 0.0
      %3894 = vmatprep.subr.mxu0 0.0
      %3895 = vmatpush1.msra.mxu0 0.0
      %3896 = vmatprep.subr.mxu0 0.0
      %3897 = vmatpush1.msra.mxu0 0.0
      %3898 = vmatprep.subr.mxu0 0.0
      %3899 = vmatpush1.msra.mxu0 0.0
      %3900 = vmatprep.subr.mxu0 0.0
      %3901 = vmatpush1.msra.mxu0 0.0
      %3902 = vmatprep.subr.mxu0 0.0
      %3903 = vmatpush1.msra.mxu0 0.0
      %3904 = vmatprep.subr.mxu0 0.0
      %3905 = vmatpush1.msra.mxu0 0.0
      %3906 = vmatprep.subr.mxu0 0.0
      %3907 = vmatpush1.msra.mxu0 0.0
      %3908 = vmatprep.subr.mxu0 0.0
      %3909 = vmatpush1.msra.mxu0 0.0
      %3910 = vmatprep.subr.mxu0 0.0
      %3911 = vmatpush1.msra.mxu0 0.0
      %3912 = vmatprep.subr.mxu0 0.0
      %3913 = vmatpush1.msra.mxu0 0.0
      %3914 = vmatprep.subr.mxu0 0.0
      %3915 = vmatpush1.msra.mxu0 0.0
      %3916 = vmatprep.subr.mxu0 0.0
      %3917 = vmatpush1.msra.mxu0 0.0
      %3918 = vmatprep.subr.mxu0 0.0
      %3919 = vmatpush1.msra.mxu0 0.0
      %3920 = vmatprep.subr.mxu0 0.0
      %3921 = vmatpush1.msra.mxu0 0.0
      %3922 = vmatprep.subr.mxu0 0.0
      %3923 = vmatpush1.msra.mxu0 0.0
      %3924 = vmatprep.subr.mxu0 0.0
      %3925 = vmatpush1.msra.mxu0 0.0
      %3926 = vmatprep.subr.mxu0 0.0
      %3927 = vmatpush1.msra.mxu0 0.0
      %3928 = vmatprep.subr.mxu0 0.0
      %3929 = vmatpush1.msra.mxu0 0.0
      %3930 = vmatprep.subr.mxu0 0.0
      %3931 = vmatpush1.msra.mxu0 0.0
      %3932 = vmatprep.subr.mxu0 0.0
      %3933 = vmatpush1.msra.mxu0 0.0
      %3934 = vmatprep.subr.mxu0 0.0
      %3935 = vmatpush1.msra.mxu0 0.0
      %3936 = vmatprep.subr.mxu0 0.0
      %3937 = vmatpush1.msra.mxu0 0.0
      %3938 = vmatprep.mubr.f32.mxu0 0.0
      %3939 = vmatmul.mubr.f32.gmra.mrb[0].mxu0 %v2084
      %v3940 = vpop.f32.mrb[0].mxu0
      %v3941 = vadd.f32 %v2081, %v3940
      %v3942 = vpop.f32.mrb[0].mxu0
      %v3943 = vadd.f32 %v2081, %v3942
      %3944 = vdwg.mxu0
      %v3945 = vmax.f32 %v3941, 0.0
      %v3946 = vmax.f32 %v3943, 0.0
      %v3947 = vmax.f32 %v1221, 0.0
      %v3948 = vmax.f32 %v1222, 0.0
      %v3951 = vcombine.low %v3947, %v3948
      %v3953 = vadd.f32 %v333, %v3951
      %v3956 = vcombine.low %v2163, %v2164
      %v3958 = vadd.f32 %v3953, %v3956
      %v3961 = vcombine.low %v3019, %v3020
      %v3963 = vadd.f32 %v3958, %v3961
      %v3966 = vcombine.low %v3945, %v3946
      %v3968 = vadd.f32 %v3963, %v3966
      %3969 = vst [vmem:[%s332] sm:$0xff] %v3968
      %p3970 = scmp.lt.s32.totalorder %s20, 1
      %s3971 = scalar_select %p3970, %s20, 1
      %s3972 = smul.addr %s3971, 2
      %s3973 = smul.addr %s3972, 4
      %s3974 = scalar_lea.vmem %s9, %s3973
      // Predicated region
      $region57: #{dacblock137_forward_impl.1} parent=55 // pred_check
        %p3975 = pneg %p232
      $region58: #{dacblock137_forward_impl.1} parent=55 // pred_check_branch
        %3977 = sbr.rel (%p3975) target = $region60
      $region59: #{dacblock137_forward_impl.1} parent=55 // pred_region
        _
      $region60: #{dacblock137_forward_impl.1} parent=55 // pred_fallthru
        _
    $region56: #{dacblock137_forward_impl.1} parent=5 // pred_fallthru
      _
    %p3978 = scmp.le.s32.totalorder 2, %s15
    // Predicated region
    $region61: #{dacblock137_forward_impl.1} parent=5 // pred_check
      %p3979 = pneg %p3978
    $region62: #{dacblock137_forward_impl.1} parent=5 // pred_check_branch
      %3981 = sbr.rel (%p3979) target = $region64
    $region63: #{dacblock137_forward_impl.1} parent=5 // pred_region
      %s3982 = ssub.s32 %s15, 2
      // Predicated region
      $region65: #{dacblock137_forward_impl.1} parent=63 // pred_check
        %p3983 = pneg %p238
      $region66: #{dacblock137_forward_impl.1} parent=63 // pred_check_branch
        %3985 = sbr.rel (%p3983) target = $region68
      $region67: #{dacblock137_forward_impl.1} parent=63 // pred_region
        %p3986 = scmp.lt.s32.totalorder %s21, 1
        %s3987 = scalar_select %p3986, %s21, 1
        %s3988 = smul.addr %s3987, 2
        %s3989 = smul.addr %s3988, 4
        %s3990 = scalar_lea.vmem %s9, %s3989
      $region68: #{dacblock137_forward_impl.1} parent=63 // pred_fallthru
        _
    $region64: #{dacblock137_forward_impl.1} parent=5 // pred_fallthru
      _
  $region6: #{dacblock137_forward_impl.1} parent=0 // loop_footer
    %s19 = sadd.s32 1, %s15
  $region7: #{dacblock137_forward_impl.1} parent=0 // loop_footer_branch
    %14 = sbr.rel target = $region3
  $region8: #{dacblock137_forward_impl.1} parent=0 // loop_exit
    _

</llo_original>
